<compile_context>
chip_gen: v7x
topology: tpu7x:2x2x1
jax: 0.10.0
libtpu: 0.0.40
codegen_flags: <defaults>
</compile_context>

<pallas_src>
import functools

import jax
import jax.numpy as jnp
from jax.experimental import pallas as pl
from jax.experimental.pallas import tpu as pltpu


_PHASES = ((0, 0), (0, 1), (1, 0), (1, 1))   # output parity (ho % 2, wo % 2)
_TAPS = ((0, 0), (0, 1), (1, 0), (1, 1))     # (dr, dc) input-window offsets


# ----------------------------------------------------------------------------
# Kernel: phase-decomposed ConvTranspose2d(4, stride=2, pad=1) + BN partials
# ----------------------------------------------------------------------------
def _deconv_phase_kernel(x_ref, w_ref, y_ref, stat_ref, *, th, W, cin, cout):
    """One (batch sample, row-tile) grid step.

    x_ref   : (1, H+2, W+2, Cin)  bf16  zero-padded input image (whole image
                                        resident per sample; +2-row halo sliced
                                        in-kernel).
    w_ref   : (4, 4, Cin, Cout)   bf16  [phase, tap] folded ConvTranspose taps.
    y_ref   : (1, th, W, 4*Cout)  bf16  phase-blocked conv output tile.
    stat_ref: (1, 1, 2, 4*Cout)   f32   per-tile [sum ; sum-of-squares].
    """
    r0 = pl.multiple_of(pl.program_id(1) * th, th)
    xt = x_ref[0, pl.ds(r0, th + 2), :, :]               # (th+2, W+2, Cin) bf16
    m = th * W

    # 9 distinct shifted windows, shared by the 4 output phases.
    win = {
        (dr, dc): xt[dr:dr + th, dc:dc + W, :].reshape(m, cin)
        for dr in range(3) for dc in range(3)
    }

    sums, sqs = [], []
    for p, (ph, pw) in enumerate(_PHASES):
        # out[2i+ph, 2j+pw, :] = sum_t  win[(ph+dr, pw+dc)] @ w[p, t]
        acc = None
        for t, (dr, dc) in enumerate(_TAPS):
            d = jnp.dot(win[(ph + dr, pw + dc)], w_ref[p, t],
                        preferred_element_type=jnp.float32)     # MXU, f32 acc
            acc = d if acc is None else acc + d
        # BatchNorm pass-1 partials on the live f32 block (before the bf16 cast).
        sums.append(jnp.sum(acc, axis=0, keepdims=True))         # (1, Cout)
        sqs.append(jnp.sum(acc * acc, axis=0, keepdims=True))
        # Direct lane-slice store of this phase (no (m, 4*Cout) concat).
        y_ref[0, :, :, p * cout:(p + 1) * cout] = (
            acc.reshape(th, W, cout).astype(y_ref.dtype))

    stat_ref[0, 0] = jnp.concatenate(
        [jnp.concatenate(sums, axis=1), jnp.concatenate(sqs, axis=1)], axis=0)


# ----------------------------------------------------------------------------
# Tiling helpers
# ----------------------------------------------------------------------------
def _vmem_limit_bytes():
    """~3/4 of physical VMEM, capped at 96 MiB (v5e/v6e -> 96 MiB, v7x -> 48 MiB)."""
    try:
        cap = pltpu.get_tpu_info().vmem_capacity_bytes
    except Exception:                                    # conservative fallback
        cap = 128 * 1024 * 1024
    return int(min(cap * 3 // 4, 96 * 1024 * 1024))


def _pick_row_tile(H, W, cin, cout, budget_bytes, target=32):
    """Largest row tile <= target dividing H whose per-step working set
    (double-buffered blocks + in-kernel live values) fits the VMEM budget."""
    def step_bytes(t):
        x_img = 2 * (H + 2) * (W + 2) * cin * 2          # bf16 padded image, 2 bufs
        w_slab = 2 * 16 * cin * cout * 2                 # bf16 folded weights, 2 bufs
        y_tile = 2 * t * W * 4 * cout * 2                # bf16 output tile, 2 bufs
        live = t * W * (9 * cin * 2 + 8 * cout * 4)      # 9 windows + f32 acc/temps
        return x_img + w_slab + y_tile + live

    divisors = [t for t in range(1, H + 1) if H % t == 0]
    fitting = [t for t in divisors if t <= target and step_bytes(t) <= budget_bytes]
    if not fitting:
        fitting = [divisors[0]]
    mult8 = [t for t in fitting if t % 8 == 0]           # keep in-kernel reshapes cheap
    return max(mult8) if mult8 else max(fitting)


# ----------------------------------------------------------------------------
# PyTorch-facing wrapper (NCHW in / NCHW out, f32)
# ----------------------------------------------------------------------------
@functools.partial(jax.jit, static_argnames=("eps", "neg_slope"))
def deconv4x4_forward(x_nchw, skip_nchw, w_pt, gamma, beta,
                      *, eps=1e-5, neg_slope=0.1):
    """x: (N, in_c, H, W); skip: (N, Cskip, 2H, 2W);
    w_pt: ConvTranspose2d weight (in_c, out_c, 4, 4); gamma/beta: (out_c,).
    Returns (N, out_c + Cskip, 2H, 2W) float32, matching the PyTorch module."""
    N, cin, H, W = x_nchw.shape
    cout = w_pt.shape[1]
    Ho, Wo = 2 * H, 2 * W

    vmem_limit = _vmem_limit_bytes()
    th = _pick_row_tile(H, W, cin, cout, budget_bytes=(vmem_limit * 7) // 10)
    gh = H // th

    # ---- layout prep (fuses in XLA under this jit): NCHW->NHWC, pad 1, bf16 ----
    # TODO(synk): in a full NHWC network these entry/exit transposes disappear.
    x_nhwc = jnp.transpose(x_nchw, (0, 2, 3, 1))
    x_pad = jnp.pad(x_nhwc, ((0, 0), (1, 1), (1, 1), (0, 0))).astype(jnp.bfloat16)

    # ---- fold ConvTranspose taps into per-(phase, tap) (Cin, Cout) slabs ----
    # out[2i+ph, 2j+pw] uses padded rows i+ph+dr, cols j+pw+dc with kernel taps
    # kh = 3-ph-2*dr, kw = 3-pw-2*dc (dr, dc in {0, 1}).
    w_khkw = jnp.transpose(w_pt, (2, 3, 0, 1))            # (kh, kw, Cin, Cout)
    w_packed = jnp.stack([
        jnp.stack([w_khkw[3 - ph - 2 * dr, 3 - pw - 2 * dc] for dr, dc in _TAPS],
                  axis=0)
        for ph, pw in _PHASES
    ], axis=0).astype(jnp.bfloat16)                       # (4, 4, Cin, Cout)

    # ---- Pallas pass: deconv (phase-blocked, bf16) + per-tile channel stats ----
    kern = functools.partial(_deconv_phase_kernel, th=th, W=W, cin=cin, cout=cout)
    y4, stats = pl.pallas_call(
        kern,
        out_shape=(jax.ShapeDtypeStruct((N, H, W, 4 * cout), jnp.bfloat16),
                   jax.ShapeDtypeStruct((N, gh, 2, 4 * cout), jnp.float32)),
        grid_spec=pltpu.PrefetchScalarGridSpec(
            num_scalar_prefetch=0,
            grid=(N, gh),
            in_specs=[
                pl.BlockSpec((1, H + 2, W + 2, cin), lambda n, h: (n, 0, 0, 0)),
                pl.BlockSpec((4, 4, cin, cout), lambda n, h: (0, 0, 0, 0)),
            ],
            out_specs=(
                pl.BlockSpec((1, th, W, 4 * cout), lambda n, h: (n, h, 0, 0)),
                pl.BlockSpec((1, 1, 2, 4 * cout), lambda n, h: (n, h, 0, 0)),
            )),
        compiler_params=pltpu.CompilerParams(
            dimension_semantics=("parallel", "parallel"),
            vmem_limit_bytes=vmem_limit),
    )(x_pad, w_packed)

    # ---- BatchNorm batch statistics (tiny f32 reduction between passes) ----
    cnt = jnp.float32(N * Ho * Wo)
    sums = stats[:, :, 0, :].sum(axis=(0, 1)).reshape(4, cout).sum(axis=0)
    sumsq = stats[:, :, 1, :].sum(axis=(0, 1)).reshape(4, cout).sum(axis=0)
    mean = sums / cnt
    var = jnp.maximum(sumsq / cnt - mean * mean, 0.0)     # biased variance
    scale = gamma.astype(jnp.float32) * jax.lax.rsqrt(var + eps)
    shift = beta.astype(jnp.float32) - mean * scale

    # ---- fused XLA epilogue: BN apply + LeakyReLU + phase interleave +
    #      NHWC->NCHW + concat(skip).  One read of the bf16 intermediate, one
    #      write of the f32 output -- the former standalone BN kernel and the
    #      separate transpose pass (an extra full HBM round trip) are removed.
    z = y4.astype(jnp.float32) * jnp.tile(scale, 4) + jnp.tile(shift, 4)
    z = jnp.where(z >= 0, z, neg_slope * z)
    y_nchw = (z.reshape(N, H, W, 2, 2, cout)
               .transpose(0, 5, 1, 3, 2, 4)
               .reshape(N, cout, Ho, Wo))
    # TODO(synk): a fully fused Pallas epilogue writing NCHW blocks directly
    #   into the concatenated output (input_output_aliases) would also drop the
    #   concat copy; it needs a robust in-kernel lane riffle / strided lane
    #   store, so the interleave+transpose is left to XLA fusion for now.
    return jnp.concatenate([y_nchw, skip_nchw.astype(jnp.float32)], axis=1)


# ----------------------------------------------------------------------------
# Pure-JAX reference (ConvTranspose2d as lhs-dilated conv + train-mode BN)
# ----------------------------------------------------------------------------
def _reference(x, skip, w_pt, gamma, beta, *, eps=1e-5, neg_slope=0.1,
               conv_dtype=jnp.float32, store_dtype=None):
    w_oihw = jnp.transpose(w_pt, (1, 0, 2, 3))[:, :, ::-1, ::-1]
    y = jax.lax.conv_general_dilated(
        x.astype(conv_dtype), w_oihw.astype(conv_dtype),
        window_strides=(1, 1), padding=[(2, 2), (2, 2)], lhs_dilation=(2, 2),
        dimension_numbers=('NCHW', 'OIHW', 'NCHW'),
        preferred_element_type=jnp.float32)
    mean = y.mean(axis=(0, 2, 3), keepdims=True)                 # stats in f32
    var = ((y - mean) ** 2).mean(axis=(0, 2, 3), keepdims=True)
    if store_dtype is not None:                                  # HBM intermediate
        y = y.astype(store_dtype).astype(jnp.float32)
    y = (y - mean) * jax.lax.rsqrt(var + eps)
    y = y * gamma.reshape(1, -1, 1, 1) + beta.reshape(1, -1, 1, 1)
    y = jnp.where(y >= 0, y, neg_slope * y)
    return jnp.concatenate([y, skip.astype(jnp.float32)], axis=1)


if __name__ == "__main__":
    N, in_c, out_c, H, W = 2, 8, 8, 16, 16
    skip_c = out_c

    key = jax.random.PRNGKey(0)
    kx, ks, kw, kg, kb = jax.random.split(key, 5)
    x = jax.random.normal(kx, (N, in_c, H, W), jnp.float32)
    skip = jax.random.normal(ks, (N, skip_c, 2 * H, 2 * W), jnp.float32)
    # ConvTranspose2d weight layout: (in_channels, out_channels, kH, kW)
    w_pt = 0.1 * jax.random.normal(kw, (in_c, out_c, 4, 4), jnp.float32)
    gamma = 1.0 + 0.1 * jax.random.normal(kg, (out_c,), jnp.float32)
    beta = 0.1 * jax.random.normal(kb, (out_c,), jnp.float32)

    out = jax.block_until_ready(deconv4x4_forward(x, skip, w_pt, gamma, beta))
    assert out.shape == (N, out_c + skip_c, 2 * H, 2 * W), out.shape

    # Matched-precision reference: bf16 conv inputs (MXU feed), bf16-stored conv
    # intermediate, BN statistics from the f32 accumulator -- same as the kernel.
    ref_match = _reference(x, skip, w_pt, gamma, beta,
                           conv_dtype=jnp.bfloat16, store_dtype=jnp.bfloat16)
    err_m = float(jnp.max(jnp.abs(out - ref_match)))
    assert jnp.allclose(out, ref_match, atol=2e-3, rtol=2e-3), err_m

    # Loose sanity vs. the full-f32 PyTorch-equivalent reference (bf16 MXU-input
    # and bf16-intermediate rounding are the only differences).
    ref_f32 = _reference(x, skip, w_pt, gamma, beta, conv_dtype=jnp.float32)
    err_f = float(jnp.max(jnp.abs(out - ref_f32)))
    assert jnp.allclose(out, ref_f32, atol=7e-2, rtol=7e-2), err_f

    print("KERNEL_OK")
</pallas_src>

<mosaic_0001>
module attributes {stable_mosaic.version = 11 : i64} {
  func.func @_deconv_phase_kernel(%arg0: i32, %arg1: i32, %arg2: memref<1x18x18x8xbf16, #tpu.memory_space<vmem>>, %arg3: memref<4x4x8x8xbf16, #tpu.memory_space<vmem>>, %arg4: memref<1x16x16x32xbf16, #tpu.memory_space<vmem>>, %arg5: memref<1x1x2x32xf32, #tpu.memory_space<vmem>>) attributes {dimension_semantics = [#tpu.dimension_semantics<parallel>, #tpu.dimension_semantics<parallel>], iteration_bounds = array<i64: 2, 1>, scalar_prefetch = 0 : i64, scratch_operands = 0 : i64, tpu.core_type = #tpu.core_type<tc>, window_params = [{transform_indices = @transform_0, window_bounds = array<i64: 1, 18, 18, 8>}, {pipeline_mode = #tpu.pipeline_mode<synchronous>, transform_indices = @transform_1, window_bounds = array<i64: 4, 4, 8, 8>}, {transform_indices = @transform_2, window_bounds = array<i64: 1, 16, 16, 32>}, {transform_indices = @transform_3, window_bounds = array<i64: 1, 1, 2, 32>}]} {
    %c16_i32 = arith.constant 16 : i32
    %0 = arith.muli %arg1, %c16_i32 : i32
    %1 = tpu.assume_multiple %0, 16 : i32
    %c0 = arith.constant 0 : index
    %2 = arith.index_cast %1 : i32 to index
    %c0_0 = arith.constant 0 : index
    %c0_1 = arith.constant 0 : index
    %3 = vector.load %arg2[%c0, %2, %c0_0, %c0_1] : memref<1x18x18x8xbf16, #tpu.memory_space<vmem>>, vector<1x18x18x8xbf16>
    %4 = vector.shape_cast %3 : vector<1x18x18x8xbf16> to vector<18x18x8xbf16>
    %5 = vector.extract_strided_slice %4 {offsets = [0, 0, 0], sizes = [16, 16, 8], strides = [1, 1, 1]} : vector<18x18x8xbf16> to vector<16x16x8xbf16>
    %6 = vector.shape_cast %5 : vector<16x16x8xbf16> to vector<256x8xbf16>
    %7 = vector.extract_strided_slice %4 {offsets = [0, 1, 0], sizes = [16, 16, 8], strides = [1, 1, 1]} : vector<18x18x8xbf16> to vector<16x16x8xbf16>
    %8 = vector.shape_cast %7 : vector<16x16x8xbf16> to vector<256x8xbf16>
    %9 = vector.extract_strided_slice %4 {offsets = [0, 2, 0], sizes = [16, 16, 8], strides = [1, 1, 1]} : vector<18x18x8xbf16> to vector<16x16x8xbf16>
    %10 = vector.shape_cast %9 : vector<16x16x8xbf16> to vector<256x8xbf16>
    %11 = vector.extract_strided_slice %4 {offsets = [1, 0, 0], sizes = [16, 16, 8], strides = [1, 1, 1]} : vector<18x18x8xbf16> to vector<16x16x8xbf16>
    %12 = vector.shape_cast %11 : vector<16x16x8xbf16> to vector<256x8xbf16>
    %13 = vector.extract_strided_slice %4 {offsets = [1, 1, 0], sizes = [16, 16, 8], strides = [1, 1, 1]} : vector<18x18x8xbf16> to vector<16x16x8xbf16>
    %14 = vector.shape_cast %13 : vector<16x16x8xbf16> to vector<256x8xbf16>
    %15 = vector.extract_strided_slice %4 {offsets = [1, 2, 0], sizes = [16, 16, 8], strides = [1, 1, 1]} : vector<18x18x8xbf16> to vector<16x16x8xbf16>
    %16 = vector.shape_cast %15 : vector<16x16x8xbf16> to vector<256x8xbf16>
    %17 = vector.extract_strided_slice %4 {offsets = [2, 0, 0], sizes = [16, 16, 8], strides = [1, 1, 1]} : vector<18x18x8xbf16> to vector<16x16x8xbf16>
    %18 = vector.shape_cast %17 : vector<16x16x8xbf16> to vector<256x8xbf16>
    %19 = vector.extract_strided_slice %4 {offsets = [2, 1, 0], sizes = [16, 16, 8], strides = [1, 1, 1]} : vector<18x18x8xbf16> to vector<16x16x8xbf16>
    %20 = vector.shape_cast %19 : vector<16x16x8xbf16> to vector<256x8xbf16>
    %21 = vector.extract_strided_slice %4 {offsets = [2, 2, 0], sizes = [16, 16, 8], strides = [1, 1, 1]} : vector<18x18x8xbf16> to vector<16x16x8xbf16>
    %22 = vector.shape_cast %21 : vector<16x16x8xbf16> to vector<256x8xbf16>
    %c0_2 = arith.constant 0 : index
    %c0_3 = arith.constant 0 : index
    %c0_4 = arith.constant 0 : index
    %c0_5 = arith.constant 0 : index
    %23 = vector.load %arg3[%c0_2, %c0_3, %c0_4, %c0_5] : memref<4x4x8x8xbf16, #tpu.memory_space<vmem>>, vector<1x1x8x8xbf16>
    %24 = vector.shape_cast %23 : vector<1x1x8x8xbf16> to vector<8x8xbf16>
    %cst = arith.constant dense<0.000000e+00> : vector<256x8xf32>
    %25 = tpu.matmul %6, %24, %cst {dimension_numbers = #tpu.dot_dimension_numbers<[1], [0], [0], [1], [0, 0, 1, 1], [], []>} : vector<256x8xbf16>, vector<8x8xbf16>, vector<256x8xf32> -> vector<256x8xf32>
    %c0_6 = arith.constant 0 : index
    %c1 = arith.constant 1 : index
    %c0_7 = arith.constant 0 : index
    %c0_8 = arith.constant 0 : index
    %26 = vector.load %arg3[%c0_6, %c1, %c0_7, %c0_8] : memref<4x4x8x8xbf16, #tpu.memory_space<vmem>>, vector<1x1x8x8xbf16>
    %27 = vector.shape_cast %26 : vector<1x1x8x8xbf16> to vector<8x8xbf16>
    %cst_9 = arith.constant dense<0.000000e+00> : vector<256x8xf32>
    %28 = tpu.matmul %8, %27, %cst_9 {dimension_numbers = #tpu.dot_dimension_numbers<[1], [0], [0], [1], [0, 0, 1, 1], [], []>} : vector<256x8xbf16>, vector<8x8xbf16>, vector<256x8xf32> -> vector<256x8xf32>
    %29 = arith.addf %25, %28 : vector<256x8xf32>
    %c0_10 = arith.constant 0 : index
    %c2 = arith.constant 2 : index
    %c0_11 = arith.constant 0 : index
    %c0_12 = arith.constant 0 : index
    %30 = vector.load %arg3[%c0_10, %c2, %c0_11, %c0_12] : memref<4x4x8x8xbf16, #tpu.memory_space<vmem>>, vector<1x1x8x8xbf16>
    %31 = vector.shape_cast %30 : vector<1x1x8x8xbf16> to vector<8x8xbf16>
    %cst_13 = arith.constant dense<0.000000e+00> : vector<256x8xf32>
    %32 = tpu.matmul %12, %31, %cst_13 {dimension_numbers = #tpu.dot_dimension_numbers<[1], [0], [0], [1], [0, 0, 1, 1], [], []>} : vector<256x8xbf16>, vector<8x8xbf16>, vector<256x8xf32> -> vector<256x8xf32>
    %33 = arith.addf %29, %32 : vector<256x8xf32>
    %c0_14 = arith.constant 0 : index
    %c3 = arith.constant 3 : index
    %c0_15 = arith.constant 0 : index
    %c0_16 = arith.constant 0 : index
    %34 = vector.load %arg3[%c0_14, %c3, %c0_15, %c0_16] : memref<4x4x8x8xbf16, #tpu.memory_space<vmem>>, vector<1x1x8x8xbf16>
    %35 = vector.shape_cast %34 : vector<1x1x8x8xbf16> to vector<8x8xbf16>
    %cst_17 = arith.constant dense<0.000000e+00> : vector<256x8xf32>
    %36 = tpu.matmul %14, %35, %cst_17 {dimension_numbers = #tpu.dot_dimension_numbers<[1], [0], [0], [1], [0, 0, 1, 1], [], []>} : vector<256x8xbf16>, vector<8x8xbf16>, vector<256x8xf32> -> vector<256x8xf32>
    %37 = arith.addf %33, %36 : vector<256x8xf32>
    %cst_18 = arith.constant dense<0.000000e+00> : vector<8xf32>
    %38 = vector.multi_reduction <add>, %37, %cst_18 [0] : vector<256x8xf32> to vector<8xf32>
    %39 = vector.shape_cast %38 : vector<8xf32> to vector<1x8xf32>
    %40 = arith.mulf %37, %37 : vector<256x8xf32>
    %cst_19 = arith.constant dense<0.000000e+00> : vector<8xf32>
    %41 = vector.multi_reduction <add>, %40, %cst_19 [0] : vector<256x8xf32> to vector<8xf32>
    %42 = vector.shape_cast %41 : vector<8xf32> to vector<1x8xf32>
    %43 = vector.shape_cast %37 : vector<256x8xf32> to vector<16x16x8xf32>
    %44 = arith.truncf %43 : vector<16x16x8xf32> to vector<16x16x8xbf16>
    %c0_20 = arith.constant 0 : index
    %c0_21 = arith.constant 0 : index
    %c0_22 = arith.constant 0 : index
    %c0_23 = arith.constant 0 : index
    %45 = vector.load %arg4[%c0_20, %c0_21, %c0_22, %c0_23] : memref<1x16x16x32xbf16, #tpu.memory_space<vmem>>, vector<1x16x16x8xbf16>
    %46 = vector.shape_cast %45 : vector<1x16x16x8xbf16> to vector<16x16x8xbf16>
    %47 = vector.shape_cast %44 : vector<16x16x8xbf16> to vector<1x16x16x8xbf16>
    tpu.vector_store %arg4[%c0_20, %c0_21, %c0_22, %c0_23], %47 {strides = array<i32>} : memref<1x16x16x32xbf16, #tpu.memory_space<vmem>>, vector<1x16x16x8xbf16>,
    %c1_24 = arith.constant 1 : index
    %c0_25 = arith.constant 0 : index
    %c0_26 = arith.constant 0 : index
    %c0_27 = arith.constant 0 : index
    %48 = vector.load %arg3[%c1_24, %c0_25, %c0_26, %c0_27] : memref<4x4x8x8xbf16, #tpu.memory_space<vmem>>, vector<1x1x8x8xbf16>
    %49 = vector.shape_cast %48 : vector<1x1x8x8xbf16> to vector<8x8xbf16>
    %cst_28 = arith.constant dense<0.000000e+00> : vector<256x8xf32>
    %50 = tpu.matmul %8, %49, %cst_28 {dimension_numbers = #tpu.dot_dimension_numbers<[1], [0], [0], [1], [0, 0, 1, 1], [], []>} : vector<256x8xbf16>, vector<8x8xbf16>, vector<256x8xf32> -> vector<256x8xf32>
    %c1_29 = arith.constant 1 : index
    %c1_30 = arith.constant 1 : index
    %c0_31 = arith.constant 0 : index
    %c0_32 = arith.constant 0 : index
    %51 = vector.load %arg3[%c1_29, %c1_30, %c0_31, %c0_32] : memref<4x4x8x8xbf16, #tpu.memory_space<vmem>>, vector<1x1x8x8xbf16>
    %52 = vector.shape_cast %51 : vector<1x1x8x8xbf16> to vector<8x8xbf16>
    %cst_33 = arith.constant dense<0.000000e+00> : vector<256x8xf32>
    %53 = tpu.matmul %10, %52, %cst_33 {dimension_numbers = #tpu.dot_dimension_numbers<[1], [0], [0], [1], [0, 0, 1, 1], [], []>} : vector<256x8xbf16>, vector<8x8xbf16>, vector<256x8xf32> -> vector<256x8xf32>
    %54 = arith.addf %50, %53 : vector<256x8xf32>
    %c1_34 = arith.constant 1 : index
    %c2_35 = arith.constant 2 : index
    %c0_36 = arith.constant 0 : index
    %c0_37 = arith.constant 0 : index
    %55 = vector.load %arg3[%c1_34, %c2_35, %c0_36, %c0_37] : memref<4x4x8x8xbf16, #tpu.memory_space<vmem>>, vector<1x1x8x8xbf16>
    %56 = vector.shape_cast %55 : vector<1x1x8x8xbf16> to vector<8x8xbf16>
    %cst_38 = arith.constant dense<0.000000e+00> : vector<256x8xf32>
    %57 = tpu.matmul %14, %56, %cst_38 {dimension_numbers = #tpu.dot_dimension_numbers<[1], [0], [0], [1], [0, 0, 1, 1], [], []>} : vector<256x8xbf16>, vector<8x8xbf16>, vector<256x8xf32> -> vector<256x8xf32>
    %58 = arith.addf %54, %57 : vector<256x8xf32>
    %c1_39 = arith.constant 1 : index
    %c3_40 = arith.constant 3 : index
    %c0_41 = arith.constant 0 : index
    %c0_42 = arith.constant 0 : index
    %59 = vector.load %arg3[%c1_39, %c3_40, %c0_41, %c0_42] : memref<4x4x8x8xbf16, #tpu.memory_space<vmem>>, vector<1x1x8x8xbf16>
    %60 = vector.shape_cast %59 : vector<1x1x8x8xbf16> to vector<8x8xbf16>
    %cst_43 = arith.constant dense<0.000000e+00> : vector<256x8xf32>
    %61 = tpu.matmul %16, %60, %cst_43 {dimension_numbers = #tpu.dot_dimension_numbers<[1], [0], [0], [1], [0, 0, 1, 1], [], []>} : vector<256x8xbf16>, vector<8x8xbf16>, vector<256x8xf32> -> vector<256x8xf32>
    %62 = arith.addf %58, %61 : vector<256x8xf32>
    %cst_44 = arith.constant dense<0.000000e+00> : vector<8xf32>
    %63 = vector.multi_reduction <add>, %62, %cst_44 [0] : vector<256x8xf32> to vector<8xf32>
    %64 = vector.shape_cast %63 : vector<8xf32> to vector<1x8xf32>
    %65 = arith.mulf %62, %62 : vector<256x8xf32>
    %cst_45 = arith.constant dense<0.000000e+00> : vector<8xf32>
    %66 = vector.multi_reduction <add>, %65, %cst_45 [0] : vector<256x8xf32> to vector<8xf32>
    %67 = vector.shape_cast %66 : vector<8xf32> to vector<1x8xf32>
    %68 = vector.shape_cast %62 : vector<256x8xf32> to vector<16x16x8xf32>
    %69 = arith.truncf %68 : vector<16x16x8xf32> to vector<16x16x8xbf16>
    %c0_46 = arith.constant 0 : index
    %c0_47 = arith.constant 0 : index
    %c0_48 = arith.constant 0 : index
    %c8 = arith.constant 8 : index
    %70 = vector.load %arg4[%c0_46, %c0_47, %c0_48, %c8] : memref<1x16x16x32xbf16, #tpu.memory_space<vmem>>, vector<1x16x16x8xbf16>
    %71 = vector.shape_cast %70 : vector<1x16x16x8xbf16> to vector<16x16x8xbf16>
    %72 = vector.shape_cast %69 : vector<16x16x8xbf16> to vector<1x16x16x8xbf16>
    tpu.vector_store %arg4[%c0_46, %c0_47, %c0_48, %c8], %72 {strides = array<i32>} : memref<1x16x16x32xbf16, #tpu.memory_space<vmem>>, vector<1x16x16x8xbf16>,
    %c2_49 = arith.constant 2 : index
    %c0_50 = arith.constant 0 : index
    %c0_51 = arith.constant 0 : index
    %c0_52 = arith.constant 0 : index
    %73 = vector.load %arg3[%c2_49, %c0_50, %c0_51, %c0_52] : memref<4x4x8x8xbf16, #tpu.memory_space<vmem>>, vector<1x1x8x8xbf16>
    %74 = vector.shape_cast %73 : vector<1x1x8x8xbf16> to vector<8x8xbf16>
    %cst_53 = arith.constant dense<0.000000e+00> : vector<256x8xf32>
    %75 = tpu.matmul %12, %74, %cst_53 {dimension_numbers = #tpu.dot_dimension_numbers<[1], [0], [0], [1], [0, 0, 1, 1], [], []>} : vector<256x8xbf16>, vector<8x8xbf16>, vector<256x8xf32> -> vector<256x8xf32>
    %c2_54 = arith.constant 2 : index
    %c1_55 = arith.constant 1 : index
    %c0_56 = arith.constant 0 : index
    %c0_57 = arith.constant 0 : index
    %76 = vector.load %arg3[%c2_54, %c1_55, %c0_56, %c0_57] : memref<4x4x8x8xbf16, #tpu.memory_space<vmem>>, vector<1x1x8x8xbf16>
    %77 = vector.shape_cast %76 : vector<1x1x8x8xbf16> to vector<8x8xbf16>
    %cst_58 = arith.constant dense<0.000000e+00> : vector<256x8xf32>
    %78 = tpu.matmul %14, %77, %cst_58 {dimension_numbers = #tpu.dot_dimension_numbers<[1], [0], [0], [1], [0, 0, 1, 1], [], []>} : vector<256x8xbf16>, vector<8x8xbf16>, vector<256x8xf32> -> vector<256x8xf32>
    %79 = arith.addf %75, %78 : vector<256x8xf32>
    %c2_59 = arith.constant 2 : index
    %c2_60 = arith.constant 2 : index
    %c0_61 = arith.constant 0 : index
    %c0_62 = arith.constant 0 : index
    %80 = vector.load %arg3[%c2_59, %c2_60, %c0_61, %c0_62] : memref<4x4x8x8xbf16, #tpu.memory_space<vmem>>, vector<1x1x8x8xbf16>
    %81 = vector.shape_cast %80 : vector<1x1x8x8xbf16> to vector<8x8xbf16>
    %cst_63 = arith.constant dense<0.000000e+00> : vector<256x8xf32>
    %82 = tpu.matmul %18, %81, %cst_63 {dimension_numbers = #tpu.dot_dimension_numbers<[1], [0], [0], [1], [0, 0, 1, 1], [], []>} : vector<256x8xbf16>, vector<8x8xbf16>, vector<256x8xf32> -> vector<256x8xf32>
    %83 = arith.addf %79, %82 : vector<256x8xf32>
    %c2_64 = arith.constant 2 : index
    %c3_65 = arith.constant 3 : index
    %c0_66 = arith.constant 0 : index
    %c0_67 = arith.constant 0 : index
    %84 = vector.load %arg3[%c2_64, %c3_65, %c0_66, %c0_67] : memref<4x4x8x8xbf16, #tpu.memory_space<vmem>>, vector<1x1x8x8xbf16>
    %85 = vector.shape_cast %84 : vector<1x1x8x8xbf16> to vector<8x8xbf16>
    %cst_68 = arith.constant dense<0.000000e+00> : vector<256x8xf32>
    %86 = tpu.matmul %20, %85, %cst_68 {dimension_numbers = #tpu.dot_dimension_numbers<[1], [0], [0], [1], [0, 0, 1, 1], [], []>} : vector<256x8xbf16>, vector<8x8xbf16>, vector<256x8xf32> -> vector<256x8xf32>
    %87 = arith.addf %83, %86 : vector<256x8xf32>
    %cst_69 = arith.constant dense<0.000000e+00> : vector<8xf32>
    %88 = vector.multi_reduction <add>, %87, %cst_69 [0] : vector<256x8xf32> to vector<8xf32>
    %89 = vector.shape_cast %88 : vector<8xf32> to vector<1x8xf32>
    %90 = arith.mulf %87, %87 : vector<256x8xf32>
    %cst_70 = arith.constant dense<0.000000e+00> : vector<8xf32>
    %91 = vector.multi_reduction <add>, %90, %cst_70 [0] : vector<256x8xf32> to vector<8xf32>
    %92 = vector.shape_cast %91 : vector<8xf32> to vector<1x8xf32>
    %93 = vector.shape_cast %87 : vector<256x8xf32> to vector<16x16x8xf32>
    %94 = arith.truncf %93 : vector<16x16x8xf32> to vector<16x16x8xbf16>
    %c0_71 = arith.constant 0 : index
    %c0_72 = arith.constant 0 : index
    %c0_73 = arith.constant 0 : index
    %c16 = arith.constant 16 : index
    %95 = vector.load %arg4[%c0_71, %c0_72, %c0_73, %c16] : memref<1x16x16x32xbf16, #tpu.memory_space<vmem>>, vector<1x16x16x8xbf16>
    %96 = vector.shape_cast %95 : vector<1x16x16x8xbf16> to vector<16x16x8xbf16>
    %97 = vector.shape_cast %94 : vector<16x16x8xbf16> to vector<1x16x16x8xbf16>
    tpu.vector_store %arg4[%c0_71, %c0_72, %c0_73, %c16], %97 {strides = array<i32>} : memref<1x16x16x32xbf16, #tpu.memory_space<vmem>>, vector<1x16x16x8xbf16>,
    %c3_74 = arith.constant 3 : index
    %c0_75 = arith.constant 0 : index
    %c0_76 = arith.constant 0 : index
    %c0_77 = arith.constant 0 : index
    %98 = vector.load %arg3[%c3_74, %c0_75, %c0_76, %c0_77] : memref<4x4x8x8xbf16, #tpu.memory_space<vmem>>, vector<1x1x8x8xbf16>
    %99 = vector.shape_cast %98 : vector<1x1x8x8xbf16> to vector<8x8xbf16>
    %cst_78 = arith.constant dense<0.000000e+00> : vector<256x8xf32>
    %100 = tpu.matmul %14, %99, %cst_78 {dimension_numbers = #tpu.dot_dimension_numbers<[1], [0], [0], [1], [0, 0, 1, 1], [], []>} : vector<256x8xbf16>, vector<8x8xbf16>, vector<256x8xf32> -> vector<256x8xf32>
    %c3_79 = arith.constant 3 : index
    %c1_80 = arith.constant 1 : index
    %c0_81 = arith.constant 0 : index
    %c0_82 = arith.constant 0 : index
    %101 = vector.load %arg3[%c3_79, %c1_80, %c0_81, %c0_82] : memref<4x4x8x8xbf16, #tpu.memory_space<vmem>>, vector<1x1x8x8xbf16>
    %102 = vector.shape_cast %101 : vector<1x1x8x8xbf16> to vector<8x8xbf16>
    %cst_83 = arith.constant dense<0.000000e+00> : vector<256x8xf32>
    %103 = tpu.matmul %16, %102, %cst_83 {dimension_numbers = #tpu.dot_dimension_numbers<[1], [0], [0], [1], [0, 0, 1, 1], [], []>} : vector<256x8xbf16>, vector<8x8xbf16>, vector<256x8xf32> -> vector<256x8xf32>
    %104 = arith.addf %100, %103 : vector<256x8xf32>
    %c3_84 = arith.constant 3 : index
    %c2_85 = arith.constant 2 : index
    %c0_86 = arith.constant 0 : index
    %c0_87 = arith.constant 0 : index
    %105 = vector.load %arg3[%c3_84, %c2_85, %c0_86, %c0_87] : memref<4x4x8x8xbf16, #tpu.memory_space<vmem>>, vector<1x1x8x8xbf16>
    %106 = vector.shape_cast %105 : vector<1x1x8x8xbf16> to vector<8x8xbf16>
    %cst_88 = arith.constant dense<0.000000e+00> : vector<256x8xf32>
    %107 = tpu.matmul %20, %106, %cst_88 {dimension_numbers = #tpu.dot_dimension_numbers<[1], [0], [0], [1], [0, 0, 1, 1], [], []>} : vector<256x8xbf16>, vector<8x8xbf16>, vector<256x8xf32> -> vector<256x8xf32>
    %108 = arith.addf %104, %107 : vector<256x8xf32>
    %c3_89 = arith.constant 3 : index
    %c3_90 = arith.constant 3 : index
    %c0_91 = arith.constant 0 : index
    %c0_92 = arith.constant 0 : index
    %109 = vector.load %arg3[%c3_89, %c3_90, %c0_91, %c0_92] : memref<4x4x8x8xbf16, #tpu.memory_space<vmem>>, vector<1x1x8x8xbf16>
    %110 = vector.shape_cast %109 : vector<1x1x8x8xbf16> to vector<8x8xbf16>
    %cst_93 = arith.constant dense<0.000000e+00> : vector<256x8xf32>
    %111 = tpu.matmul %22, %110, %cst_93 {dimension_numbers = #tpu.dot_dimension_numbers<[1], [0], [0], [1], [0, 0, 1, 1], [], []>} : vector<256x8xbf16>, vector<8x8xbf16>, vector<256x8xf32> -> vector<256x8xf32>
    %112 = arith.addf %108, %111 : vector<256x8xf32>
    %cst_94 = arith.constant dense<0.000000e+00> : vector<8xf32>
    %113 = vector.multi_reduction <add>, %112, %cst_94 [0] : vector<256x8xf32> to vector<8xf32>
    %114 = vector.shape_cast %113 : vector<8xf32> to vector<1x8xf32>
    %115 = arith.mulf %112, %112 : vector<256x8xf32>
    %cst_95 = arith.constant dense<0.000000e+00> : vector<8xf32>
    %116 = vector.multi_reduction <add>, %115, %cst_95 [0] : vector<256x8xf32> to vector<8xf32>
    %117 = vector.shape_cast %116 : vector<8xf32> to vector<1x8xf32>
    %118 = vector.shape_cast %112 : vector<256x8xf32> to vector<16x16x8xf32>
    %119 = arith.truncf %118 : vector<16x16x8xf32> to vector<16x16x8xbf16>
    %c0_96 = arith.constant 0 : index
    %c0_97 = arith.constant 0 : index
    %c0_98 = arith.constant 0 : index
    %c24 = arith.constant 24 : index
    %120 = vector.load %arg4[%c0_96, %c0_97, %c0_98, %c24] : memref<1x16x16x32xbf16, #tpu.memory_space<vmem>>, vector<1x16x16x8xbf16>
    %121 = vector.shape_cast %120 : vector<1x16x16x8xbf16> to vector<16x16x8xbf16>
    %122 = vector.shape_cast %119 : vector<16x16x8xbf16> to vector<1x16x16x8xbf16>
    tpu.vector_store %arg4[%c0_96, %c0_97, %c0_98, %c24], %122 {strides = array<i32>} : memref<1x16x16x32xbf16, #tpu.memory_space<vmem>>, vector<1x16x16x8xbf16>,
    %123 = tpu.concatenate %39, %64, %89, %114 in 1 : vector<1x8xf32>, vector<1x8xf32>, vector<1x8xf32>, vector<1x8xf32> -> vector<1x32xf32>
    %124 = tpu.concatenate %42, %67, %92, %117 in 1 : vector<1x8xf32>, vector<1x8xf32>, vector<1x8xf32>, vector<1x8xf32> -> vector<1x32xf32>
    %125 = tpu.concatenate %123, %124 in 0 : vector<1x32xf32>, vector<1x32xf32> -> vector<2x32xf32>
    %c0_99 = arith.constant 0 : index
    %c0_100 = arith.constant 0 : index
    %c0_101 = arith.constant 0 : index
    %c0_102 = arith.constant 0 : index
    %126 = vector.load %arg5[%c0_99, %c0_100, %c0_101, %c0_102] : memref<1x1x2x32xf32, #tpu.memory_space<vmem>>, vector<1x1x2x32xf32>
    %127 = vector.shape_cast %126 : vector<1x1x2x32xf32> to vector<2x32xf32>
    %128 = vector.shape_cast %125 : vector<2x32xf32> to vector<1x1x2x32xf32>
    tpu.vector_store %arg5[%c0_99, %c0_100, %c0_101, %c0_102], %128 {strides = array<i32>} : memref<1x1x2x32xf32, #tpu.memory_space<vmem>>, vector<1x1x2x32xf32>,
    return
  }
  func.func @transform_0(%arg0: i32, %arg1: i32) -> (i32, i32, i32, i32) {
    %c0_i32 = arith.constant 0 : i32
    %c0_i32_0 = arith.constant 0 : i32
    %c0_i32_1 = arith.constant 0 : i32
    %c0_i32_2 = arith.constant 0 : i32
    return %arg0, %c0_i32, %c0_i32_0, %c0_i32_1 : i32, i32, i32, i32
  }
  func.func @transform_1(%arg0: i32, %arg1: i32) -> (i32, i32, i32, i32) {
    %c0_i32 = arith.constant 0 : i32
    %c0_i32_0 = arith.constant 0 : i32
    %c0_i32_1 = arith.constant 0 : i32
    %c0_i32_2 = arith.constant 0 : i32
    %c0_i32_3 = arith.constant 0 : i32
    return %c0_i32, %c0_i32_0, %c0_i32_1, %c0_i32_2 : i32, i32, i32, i32
  }
  func.func @transform_2(%arg0: i32, %arg1: i32) -> (i32, i32, i32, i32) {
    %c0_i32 = arith.constant 0 : i32
    %c0_i32_0 = arith.constant 0 : i32
    %c0_i32_1 = arith.constant 0 : i32
    return %arg0, %arg1, %c0_i32, %c0_i32_0 : i32, i32, i32, i32
  }
  func.func @transform_3(%arg0: i32, %arg1: i32) -> (i32, i32, i32, i32) {
    %c0_i32 = arith.constant 0 : i32
    %c0_i32_0 = arith.constant 0 : i32
    %c0_i32_1 = arith.constant 0 : i32
    return %arg0, %arg1, %c0_i32, %c0_i32_0 : i32, i32, i32, i32
  }
}

</mosaic_0001>

<llo_original>
// kernel: tile.18
$region0: #{tile.18}
  #allocation0 [shape = 's32[1]{0}', space=sflag, size = 0x4, scoped, tag = 'scoped memory for tile.18']
  %s0 = inlined_call_operand.vmem [shape: f32[8], index: 0, kind: input, shape index: {}]
  %s1 = inlined_call_operand.vmem [shape: f32[4,8], index: 1, kind: output, shape index: {}]
  // Predicated region
  $region2: #{tile.18} parent=0 // pred_check
    _
  $region3: #{tile.18} parent=0 // pred_check_branch
    %3 = sbr.rel (0) target = $region5
  $region4: #{tile.18} parent=0 // pred_region
    _
  $region5: #{tile.18} parent=0 // pred_fallthru
    _
  %v4 = vld [vmem:[%s0] ss:$0 sm:$0xff]
  %5 = vst [vmem:[%s1] sm:$0xf] %v4

// kernel: deconv4x4_forward.1
$region0: #{deconv4x4_forward.1}
  #allocation0 [shape = 'u32[]', space=smem, size = 0x4, offset = 0x4, fixed_abs, tag = 'smem constant byte address 0x4 - core index']
  #allocation1 [shape = 'u32[144,128]{1,0:T(1,128)}', space=vmem, size = 0x12000, scoped, tag = 'internal scratch']
  %s0 = inlined_call_operand.hbm [shape: bf16[2,18,18,8], index: 0, kind: input, shape index: {}]
  %s1 = inlined_call_operand.hbm [shape: bf16[4,4,8,8], index: 1, kind: input, shape index: {}]
  %s2 = inlined_call_operand.hbm [shape: bf16[2,16,16,32], index: 2, kind: output, shape index: {0}]
  %s3 = inlined_call_operand.hbm [shape: f32[2,1,2,32], index: 3, kind: output, shape index: {1}]
  %4 = xla_tuple %s2, %s3
  %s5 = sld [smem:[#allocation0]]
  $region57: #{deconv4x4_forward.1} parent=0
    _
  %s7 = ssub.s32 1, %s5
  %s8 = scalar_select 0, %s7, %s5
  $region1: #{deconv4x4_forward.1} parent=0
    #allocation2 [shape = 'u8[221184]{0}', space=vmem, size = 0x36000, scoped, tag = 'input window, operand 0']
    #allocation3 [shape = 's32[2]{0}', space=sflag, size = 0x8, scoped, tag = 'scoped memory for deconv4x4_forward.1']
    #allocation4 [shape = 's32[2]{0}', space=sflag, size = 0x8, scoped, tag = 'scoped memory for deconv4x4_forward.1']
    #allocation5 [shape = 'u8[32768]{0}', space=vmem, size = 0x8000, scoped, tag = 'input window, operand 1, single buffered']
    #allocation6 [shape = 's32[1]{0}', space=sflag, size = 0x4, scoped, tag = 'scoped memory for deconv4x4_forward.1']
    #allocation7 [shape = 'u8[131072]{0}', space=vmem, size = 0x20000, scoped, tag = 'output window, operand 0']
    #allocation8 [shape = 'u8[2048]{0}', space=vmem, size = 0x800, scoped, tag = 'output window, operand 1']
    #allocation9 [shape = 's32[2]{0}', space=sflag, size = 0x8, scoped, tag = 'scoped memory for deconv4x4_forward.1']
    %9 = vsyncpa [#allocation3], 0
    %s10 = scalar_lea.sflag [#allocation3], 1
    %11 = vsyncpa %s10, 0
    %12 = vsyncpa [#allocation6], 0
    %13 = vsyncpa [#allocation4], 0
    %s14 = scalar_lea.sflag [#allocation4], 1
    %15 = vsyncpa %s14, 0
    %16 = vsyncpa [#allocation9], 0
    %s17 = scalar_lea.sflag [#allocation9], 1
    %18 = vsyncpa %s17, 0
    loop: start=0, step=1, limit=4
    $region2: #{deconv4x4_forward.1} parent=1 // loop_pre_header
      _
    $region3: #{deconv4x4_forward.1} parent=1 // loop_header
      %s20 = sphi 0, %s24
      %p21 = scmp.ge.s32.totalorder %s20, 4
      %s27 = sphi 0, %s39
      %s28 = sphi 0, %s35
      %s29 = sphi 0, %s27
      %s30 = sphi 0, %s28
      %s31 = sphi 0, %s29
      %s32 = sphi 0, %s30
      %s42 = sphi 0, %s44
      %s45 = sphi 0, %s42
      %s46 = sphi 0, %s45
      %s62 = sphi 0, %s46
      %s66 = sphi 0, %s66
      %s68 = sphi 0, %s66
      %s69 = sphi 0, %s68
      %s83 = sphi 0, %s69
      %s91 = sphi 0, %s93
      %s94 = sphi 0, %s91
      %s95 = sphi 0, %s94
      %s111 = sphi 0, %s95
      %s119 = sphi 0, %s121
      %s122 = sphi 0, %s119
      %s123 = sphi 0, %s122
      %s139 = sphi 0, %s123
    $region4: #{deconv4x4_forward.1} parent=1 // loop_header_branch
      %23 = sbr.rel (%p21) target = $region8
    $region5: #{deconv4x4_forward.1} parent=1 // loop_body
      %s25 = ssub.s32 %s20, 1
      %s26 = ssub.s32 %s20, 2
      %s33 = sadd.s32 1, %s28
      %p34 = scmp.ge.s32.totalorder %s33, 1
      %s35 = scalar_select %p34, 0, %s33
      %s36 = sadd.s32 1, %s27
      %s37 = scalar_select %p34, %s36, %s27
      %p38 = scmp.ge.s32.totalorder %s37, 2
      %s39 = scalar_select %p38, 0, %s37
      %s40 = ssub.s32 %s27, %s39
      %p41 = scmp.eq.s32.totalorder %s40, 0
      %s43 = sadd.s32 %s42, 1
      %s44 = scalar_select %p41, %s42, %s43
      %p47 = pneg %p41
      %p48 = scmp.eq.s32.totalorder %s20, 1
      %p49 = por %p47, %p48
      %p50 = scmp.ne.s32.totalorder %s42, %s45
      %p51 = scmp.eq.s32.totalorder %s20, 0
      %p52 = por %p50, %p51
      %p53 = scmp.ne.s32.totalorder %s42, %s45
      %p54 = scmp.eq.s32.totalorder %s25, 1
      %p55 = por %p53, %p54
      %p56 = scmp.ne.s32.totalorder %s45, %s46
      %p57 = scmp.eq.s32.totalorder %s25, 0
      %p58 = por %p56, %p57
      %p59 = scmp.ne.s32.totalorder %s45, %s46
      %p60 = scmp.eq.s32.totalorder %s26, 1
      %p61 = por %p59, %p60
      %p63 = scmp.ne.s32.totalorder %s46, %s62
      %p64 = scmp.eq.s32.totalorder %s26, 0
      %p65 = por %p63, %p64
      %s67 = sadd.s32 %s66, 1
      %p70 = scmp.eq.s32.totalorder %s20, 1
      %p71 = scmp.ne.s32.totalorder %s66, %s68
      %p72 = scmp.eq.s32.totalorder %s20, 0
      %p73 = por %p71, %p72
      %p74 = scmp.ne.s32.totalorder %s66, %s68
      %p75 = scmp.eq.s32.totalorder %s25, 1
      %p76 = por %p74, %p75
      %p77 = scmp.ne.s32.totalorder %s68, %s69
      %p78 = scmp.eq.s32.totalorder %s25, 0
      %p79 = por %p77, %p78
      %p80 = scmp.ne.s32.totalorder %s68, %s69
      %p81 = scmp.eq.s32.totalorder %s26, 1
      %p82 = por %p80, %p81
      %p84 = scmp.ne.s32.totalorder %s69, %s83
      %p85 = scmp.eq.s32.totalorder %s26, 0
      %p86 = por %p84, %p85
      %s87 = ssub.s32 %s27, %s39
      %s88 = ssub.s32 %s28, %s35
      %s89 = sor.u32 %s87, %s88
      %p90 = scmp.eq.s32.totalorder %s89, 0
      %s92 = sadd.s32 %s91, 1
      %s93 = scalar_select %p90, %s91, %s92
      %p96 = pneg %p90
      %p97 = scmp.eq.s32.totalorder %s20, 1
      %p98 = por %p96, %p97
      %p99 = scmp.ne.s32.totalorder %s91, %s94
      %p100 = scmp.eq.s32.totalorder %s20, 0
      %p101 = por %p99, %p100
      %p102 = scmp.ne.s32.totalorder %s91, %s94
      %p103 = scmp.eq.s32.totalorder %s25, 1
      %p104 = por %p102, %p103
      %p105 = scmp.ne.s32.totalorder %s94, %s95
      %p106 = scmp.eq.s32.totalorder %s25, 0
      %p107 = por %p105, %p106
      %p108 = scmp.ne.s32.totalorder %s94, %s95
      %p109 = scmp.eq.s32.totalorder %s26, 1
      %p110 = por %p108, %p109
      %p112 = scmp.ne.s32.totalorder %s95, %s111
      %p113 = scmp.eq.s32.totalorder %s26, 0
      %p114 = por %p112, %p113
      %s115 = ssub.s32 %s27, %s39
      %s116 = ssub.s32 %s28, %s35
      %s117 = sor.u32 %s115, %s116
      %p118 = scmp.eq.s32.totalorder %s117, 0
      %s120 = sadd.s32 %s119, 1
      %s121 = scalar_select %p118, %s119, %s120
      %p124 = pneg %p118
      %p125 = scmp.eq.s32.totalorder %s20, 1
      %p126 = por %p124, %p125
      %p127 = scmp.ne.s32.totalorder %s119, %s122
      %p128 = scmp.eq.s32.totalorder %s20, 0
      %p129 = por %p127, %p128
      %p130 = scmp.ne.s32.totalorder %s119, %s122
      %p131 = scmp.eq.s32.totalorder %s25, 1
      %p132 = por %p130, %p131
      %p133 = scmp.ne.s32.totalorder %s122, %s123
      %p134 = scmp.eq.s32.totalorder %s25, 0
      %p135 = por %p133, %p134
      %p136 = scmp.ne.s32.totalorder %s122, %s123
      %p137 = scmp.eq.s32.totalorder %s26, 1
      %p138 = por %p136, %p137
      %p140 = scmp.ne.s32.totalorder %s123, %s139
      %p141 = scmp.eq.s32.totalorder %s26, 0
      %p142 = por %p140, %p141
      %p143 = scmp.le.s32.totalorder 1, %s20
      %p144 = scmp.lt.s32.totalorder %s20, 3
      %p145 = pnand %p143, %p144
      %p146 = pneg %p145
      // Predicated region
      $region9: #{deconv4x4_forward.1} parent=5 // pred_check
        _
      $region10: #{deconv4x4_forward.1} parent=5 // pred_check_branch
        %148 = sbr.rel (%p145) target = $region12
      $region11: #{deconv4x4_forward.1} parent=5 // pred_region
        %s149 = ssub.s32 %s20, 1
        // Predicated region
        $region13: #{deconv4x4_forward.1} parent=11 // pred_check
          %p150 = pneg %p79
        $region14: #{deconv4x4_forward.1} parent=11 // pred_check_branch
          %152 = sbr.rel (%p150) target = $region16
        $region15: #{deconv4x4_forward.1} parent=11 // pred_region
          %s154 = ssub.s32 1024, 1024
          %155 = vsyncadd [#allocation6], %s154
          %s156 = sshll.u32 [#allocation5], 4
          %s157 = int_to_ptr.vmem [resolvable:$true] %s156
          %162 = dma.hbm_to_vmem [thread:$0]  %s1, 1024, %s157, [#allocation6], 64, 64, 4
        $region16: #{deconv4x4_forward.1} parent=11 // pred_fallthru
          _
      $region12: #{deconv4x4_forward.1} parent=5 // pred_fallthru
        _
      %p163 = scmp.lt.s32.totalorder %s20, 2
      // Predicated region
      $region17: #{deconv4x4_forward.1} parent=5 // pred_check
        %p164 = pneg %p163
      $region18: #{deconv4x4_forward.1} parent=5 // pred_check_branch
        %166 = sbr.rel (%p164) target = $region20
      $region19: #{deconv4x4_forward.1} parent=5 // pred_region
        // Predicated region
        $region21: #{deconv4x4_forward.1} parent=19 // pred_check
          %p167 = pneg %p52
        $region22: #{deconv4x4_forward.1} parent=19 // pred_check_branch
          %169 = sbr.rel (%p167) target = $region24
        $region23: #{deconv4x4_forward.1} parent=19 // pred_region
          %s170 = sand.u32 %s42, 1
          %s171 = scalar_lea.sflag [#allocation3], %s170
          %s172 = sand.u32 %s42, 1
          %s173 = smul.addr %s172, 216
          %s174 = scalar_lea.vmem [#allocation2], %s173
          %s176 = ssub.s32 3456, 3456
          %177 = vsyncadd %s171, %s176
          %s178 = smul.addr %s27, 54
          %s179 = smul.addr %s178, 64
          %s180 = scalar_lea.hbm %s0, %s179
          %s181 = sshll.u32 %s174, 4
          %s182 = int_to_ptr.vmem [resolvable:$true] %s181
          %187 = dma.hbm_to_vmem [thread:$0]  %s180, 3456, %s182, %s171, 64, 64, 4
        $region24: #{deconv4x4_forward.1} parent=19 // pred_fallthru
          _
      $region20: #{deconv4x4_forward.1} parent=5 // pred_fallthru
        _
      %p188 = scmp.le.s32.totalorder 1, %s20
      %p189 = scmp.lt.s32.totalorder %s20, 3
      %p190 = pnand %p188, %p189
      %p191 = pneg %p190
      // Predicated region
      $region25: #{deconv4x4_forward.1} parent=5 // pred_check
        _
      $region26: #{deconv4x4_forward.1} parent=5 // pred_check_branch
        %193 = sbr.rel (%p190) target = $region28
      $region27: #{deconv4x4_forward.1} parent=5 // pred_region
        %s194 = ssub.s32 %s20, 1
        %s195 = sand.u32 %s45, 1
        %s196 = scalar_lea.sflag [#allocation3], %s195
        %s197 = sand.u32 %s45, 1
        %s198 = smul.addr %s197, 216
        %s199 = scalar_lea.vmem [#allocation2], %s198
        // Predicated region
        $region29: #{deconv4x4_forward.1} parent=27 // pred_check
          %p200 = pneg %p58
        $region30: #{deconv4x4_forward.1} parent=27 // pred_check_branch
          %202 = sbr.rel (%p200) target = $region32
        $region31: #{deconv4x4_forward.1} parent=27 // pred_region
          %203 = dma.done %s196, 3456
        $region32: #{deconv4x4_forward.1} parent=27 // pred_fallthru
          _
        // Predicated region
        $region33: #{deconv4x4_forward.1} parent=27 // pred_check
          %p204 = pneg %p79
        $region34: #{deconv4x4_forward.1} parent=27 // pred_check_branch
          %206 = sbr.rel (%p204) target = $region36
        $region35: #{deconv4x4_forward.1} parent=27 // pred_region
          %207 = dma.done [#allocation6], 1024
        $region36: #{deconv4x4_forward.1} parent=27 // pred_fallthru
          _
        %s208 = sand.u32 %s45, 1
        %s209 = scalar_lea.sflag [#allocation3], %s208
        %s210 = sand.u32 %s45, 1
        %s211 = smul.addr %s210, 216
        %s212 = scalar_lea.vmem [#allocation2], %s211
        %p213 = pneg %p58
        %p214 = pneg %p55
        %p215 = pneg %p79
        %p216 = pneg %p76
        %p217 = pneg %p107
        %p218 = pneg %p104
        %s219 = sand.u32 %s94, 1
        %s220 = scalar_lea.sflag [#allocation4], %s219
        %s221 = sand.u32 %s94, 1
        %s222 = smul.addr %s221, 128
        %s223 = scalar_lea.vmem [#allocation7], %s222
        %p224 = pneg %p135
        %p225 = pneg %p132
        %s226 = sand.u32 %s122, 1
        %s227 = scalar_lea.sflag [#allocation9], %s226
        %s228 = sand.u32 %s122, 1
        %s229 = smul.addr %s228, 2
        %s230 = scalar_lea.vmem [#allocation8], %s229
        %s231 = smul.u32 16, %s30
        %s233 = smul.u32 %s30, 16
        %s234 = smul.u32 %s233, 3
        %s235 = smul.addr %s234, 4
        %s236 = scalar_lea.vmem %s199, %s235 [#allocation2]
        %v237 = vld [vmem:[%s236] sm:$0xf]
        %v238 = vld [vmem:[%s236 + $0x4] sm:$0xf]
        %v239 = vld [vmem:[%s236 + $0x8] sm:$0x1]
        %v240 = vld [vmem:[%s236 + $0xc] sm:$0xf]
        %v241 = vld [vmem:[%s236 + $0x10] sm:$0xf]
        %v242 = vld [vmem:[%s236 + $0x14] sm:$0x1]
        %v243 = vld [vmem:[%s236 + $0x18] sm:$0xf]
        %v244 = vld [vmem:[%s236 + $0x1c] sm:$0xf]
        %v245 = vld [vmem:[%s236 + $0x20] sm:$0x1]
        %v246 = vld [vmem:[%s236 + $0x24] sm:$0xf]
        %v247 = vld [vmem:[%s236 + $0x28] sm:$0xf]
        %v248 = vld [vmem:[%s236 + $0x2c] sm:$0x1]
        %v249 = vld [vmem:[%s236 + $0x30] sm:$0xf]
        %v250 = vld [vmem:[%s236 + $0x34] sm:$0xf]
        %v251 = vld [vmem:[%s236 + $0x38] sm:$0x1]
        %v252 = vld [vmem:[%s236 + $0x3c] sm:$0xf]
        %v253 = vld [vmem:[%s236 + $0x40] sm:$0xf]
        %v254 = vld [vmem:[%s236 + $0x44] sm:$0x1]
        %v255 = vld [vmem:[%s236 + $0x48] sm:$0xf]
        %v256 = vld [vmem:[%s236 + $0x4c] sm:$0xf]
        %v257 = vld [vmem:[%s236 + $0x50] sm:$0x1]
        %v258 = vld [vmem:[%s236 + $0x54] sm:$0xf]
        %v259 = vld [vmem:[%s236 + $0x58] sm:$0xf]
        %v260 = vld [vmem:[%s236 + $0x5c] sm:$0x1]
        %v261 = vld [vmem:[%s236 + $0x60] sm:$0xf]
        %v262 = vld [vmem:[%s236 + $0x64] sm:$0xf]
        %v263 = vld [vmem:[%s236 + $0x68] sm:$0x1]
        %v264 = vld [vmem:[%s236 + $0x6c] sm:$0xf]
        %v265 = vld [vmem:[%s236 + $0x70] sm:$0xf]
        %v266 = vld [vmem:[%s236 + $0x74] sm:$0x1]
        %v267 = vld [vmem:[%s236 + $0x78] sm:$0xf]
        %v268 = vld [vmem:[%s236 + $0x7c] sm:$0xf]
        %v269 = vld [vmem:[%s236 + $0x80] sm:$0x1]
        %v270 = vld [vmem:[%s236 + $0x84] sm:$0xf]
        %v271 = vld [vmem:[%s236 + $0x88] sm:$0xf]
        %v272 = vld [vmem:[%s236 + $0x8c] sm:$0x1]
        %v273 = vld [vmem:[%s236 + $0x90] sm:$0xf]
        %v274 = vld [vmem:[%s236 + $0x94] sm:$0xf]
        %v275 = vld [vmem:[%s236 + $0x98] sm:$0x1]
        %v276 = vld [vmem:[%s236 + $0x9c] sm:$0xf]
        %v277 = vld [vmem:[%s236 + $0xa0] sm:$0xf]
        %v278 = vld [vmem:[%s236 + $0xa4] sm:$0x1]
        %v279 = vld [vmem:[%s236 + $0xa8] sm:$0xf]
        %v280 = vld [vmem:[%s236 + $0xac] sm:$0xf]
        %v281 = vld [vmem:[%s236 + $0xb0] sm:$0x1]
        %v282 = vld [vmem:[%s236 + $0xb4] sm:$0xf]
        %v283 = vld [vmem:[%s236 + $0xb8] sm:$0xf]
        %v284 = vld [vmem:[%s236 + $0xbc] sm:$0x1]
        %v285 = vld [vmem:[%s236 + $0xc0] sm:$0xf]
        %v286 = vld [vmem:[%s236 + $0xc4] sm:$0xf]
        %v287 = vld [vmem:[%s236 + $0xc8] sm:$0x1]
        %v288 = vld [vmem:[%s236 + $0xcc] sm:$0xf]
        %v289 = vld [vmem:[%s236 + $0xd0] sm:$0xf]
        %v290 = vld [vmem:[%s236 + $0xd4] sm:$0x1]
        %vm291 = vsmask.f32 3328
        %vm292 = vsmask.f32 7440
        %vm293 = vmor %vm291, %vm292
        %v295 = vshrl.u32 %v237, 16
        %v297 = vrot.slane %v295, 4
        %v298 = vshll.u32 %v237, 16
        %v300 = vrot.slane %v298, 5
        %v301 = vor.u32 %v297, %v300
        %v302 = vrot.slane %v301, 4
        %v304 = vshll.u32 %v238, 16
        %v306 = vrot.slane %v304, 5
        %v307 = vsel %vm293, %v302, %v306
        %v308 = vshrl.u32 %v238, 16
        %v310 = vrot.slane %v308, 4
        %v311 = vor.u32 %v310, %v306
        %v312 = vrot.slane %v311, 4
        %v314 = vshll.u32 %v239, 16
        %v316 = vrot.slane %v314, 5
        %v317 = vsel %vm293, %v312, %v316
        %v319 = vshrl.u32 %v240, 16
        %v321 = vrot.slane %v319, 4
        %v322 = vshll.u32 %v240, 16
        %v324 = vrot.slane %v322, 5
        %v325 = vor.u32 %v321, %v324
        %v326 = vrot.slane %v325, 4
        %v328 = vshll.u32 %v241, 16
        %v330 = vrot.slane %v328, 5
        %v331 = vsel %vm293, %v326, %v330
        %v332 = vshrl.u32 %v241, 16
        %v334 = vrot.slane %v332, 4
        %v335 = vor.u32 %v334, %v330
        %v336 = vrot.slane %v335, 4
        %v338 = vshll.u32 %v242, 16
        %v340 = vrot.slane %v338, 5
        %v341 = vsel %vm293, %v336, %v340
        %v343 = vshrl.u32 %v243, 16
        %v345 = vrot.slane %v343, 4
        %v346 = vshll.u32 %v243, 16
        %v348 = vrot.slane %v346, 5
        %v349 = vor.u32 %v345, %v348
        %v350 = vrot.slane %v349, 4
        %v352 = vshll.u32 %v244, 16
        %v354 = vrot.slane %v352, 5
        %v355 = vsel %vm293, %v350, %v354
        %v356 = vshrl.u32 %v244, 16
        %v358 = vrot.slane %v356, 4
        %v359 = vor.u32 %v358, %v354
        %v360 = vrot.slane %v359, 4
        %v362 = vshll.u32 %v245, 16
        %v364 = vrot.slane %v362, 5
        %v365 = vsel %vm293, %v360, %v364
        %v367 = vshrl.u32 %v246, 16
        %v369 = vrot.slane %v367, 4
        %v370 = vshll.u32 %v246, 16
        %v372 = vrot.slane %v370, 5
        %v373 = vor.u32 %v369, %v372
        %v374 = vrot.slane %v373, 4
        %v376 = vshll.u32 %v247, 16
        %v378 = vrot.slane %v376, 5
        %v379 = vsel %vm293, %v374, %v378
        %v380 = vshrl.u32 %v247, 16
        %v382 = vrot.slane %v380, 4
        %v383 = vor.u32 %v382, %v378
        %v384 = vrot.slane %v383, 4
        %v386 = vshll.u32 %v248, 16
        %v388 = vrot.slane %v386, 5
        %v389 = vsel %vm293, %v384, %v388
        %v391 = vshrl.u32 %v249, 16
        %v393 = vrot.slane %v391, 4
        %v394 = vshll.u32 %v249, 16
        %v396 = vrot.slane %v394, 5
        %v397 = vor.u32 %v393, %v396
        %v398 = vrot.slane %v397, 4
        %v400 = vshll.u32 %v250, 16
        %v402 = vrot.slane %v400, 5
        %v403 = vsel %vm293, %v398, %v402
        %v404 = vshrl.u32 %v250, 16
        %v406 = vrot.slane %v404, 4
        %v407 = vor.u32 %v406, %v402
        %v408 = vrot.slane %v407, 4
        %v410 = vshll.u32 %v251, 16
        %v412 = vrot.slane %v410, 5
        %v413 = vsel %vm293, %v408, %v412
        %v415 = vshrl.u32 %v252, 16
        %v417 = vrot.slane %v415, 4
        %v418 = vshll.u32 %v252, 16
        %v420 = vrot.slane %v418, 5
        %v421 = vor.u32 %v417, %v420
        %v422 = vrot.slane %v421, 4
        %v424 = vshll.u32 %v253, 16
        %v426 = vrot.slane %v424, 5
        %v427 = vsel %vm293, %v422, %v426
        %v428 = vshrl.u32 %v253, 16
        %v430 = vrot.slane %v428, 4
        %v431 = vor.u32 %v430, %v426
        %v432 = vrot.slane %v431, 4
        %v434 = vshll.u32 %v254, 16
        %v436 = vrot.slane %v434, 5
        %v437 = vsel %vm293, %v432, %v436
        %v439 = vshrl.u32 %v255, 16
        %v441 = vrot.slane %v439, 4
        %v442 = vshll.u32 %v255, 16
        %v444 = vrot.slane %v442, 5
        %v445 = vor.u32 %v441, %v444
        %v446 = vrot.slane %v445, 4
        %v448 = vshll.u32 %v256, 16
        %v450 = vrot.slane %v448, 5
        %v451 = vsel %vm293, %v446, %v450
        %v452 = vshrl.u32 %v256, 16
        %v454 = vrot.slane %v452, 4
        %v455 = vor.u32 %v454, %v450
        %v456 = vrot.slane %v455, 4
        %v458 = vshll.u32 %v257, 16
        %v460 = vrot.slane %v458, 5
        %v461 = vsel %vm293, %v456, %v460
        %v463 = vshrl.u32 %v258, 16
        %v465 = vrot.slane %v463, 4
        %v466 = vshll.u32 %v258, 16
        %v468 = vrot.slane %v466, 5
        %v469 = vor.u32 %v465, %v468
        %v470 = vrot.slane %v469, 4
        %v472 = vshll.u32 %v259, 16
        %v474 = vrot.slane %v472, 5
        %v475 = vsel %vm293, %v470, %v474
        %v476 = vshrl.u32 %v259, 16
        %v478 = vrot.slane %v476, 4
        %v479 = vor.u32 %v478, %v474
        %v480 = vrot.slane %v479, 4
        %v482 = vshll.u32 %v260, 16
        %v484 = vrot.slane %v482, 5
        %v485 = vsel %vm293, %v480, %v484
        %v487 = vshrl.u32 %v261, 16
        %v489 = vrot.slane %v487, 4
        %v490 = vshll.u32 %v261, 16
        %v492 = vrot.slane %v490, 5
        %v493 = vor.u32 %v489, %v492
        %v494 = vrot.slane %v493, 4
        %v496 = vshll.u32 %v262, 16
        %v498 = vrot.slane %v496, 5
        %v499 = vsel %vm293, %v494, %v498
        %v500 = vshrl.u32 %v262, 16
        %v502 = vrot.slane %v500, 4
        %v503 = vor.u32 %v502, %v498
        %v504 = vrot.slane %v503, 4
        %v506 = vshll.u32 %v263, 16
        %v508 = vrot.slane %v506, 5
        %v509 = vsel %vm293, %v504, %v508
        %v511 = vshrl.u32 %v264, 16
        %v513 = vrot.slane %v511, 4
        %v514 = vshll.u32 %v264, 16
        %v516 = vrot.slane %v514, 5
        %v517 = vor.u32 %v513, %v516
        %v518 = vrot.slane %v517, 4
        %v520 = vshll.u32 %v265, 16
        %v522 = vrot.slane %v520, 5
        %v523 = vsel %vm293, %v518, %v522
        %v524 = vshrl.u32 %v265, 16
        %v526 = vrot.slane %v524, 4
        %v527 = vor.u32 %v526, %v522
        %v528 = vrot.slane %v527, 4
        %v530 = vshll.u32 %v266, 16
        %v532 = vrot.slane %v530, 5
        %v533 = vsel %vm293, %v528, %v532
        %v535 = vshrl.u32 %v267, 16
        %v537 = vrot.slane %v535, 4
        %v538 = vshll.u32 %v267, 16
        %v540 = vrot.slane %v538, 5
        %v541 = vor.u32 %v537, %v540
        %v542 = vrot.slane %v541, 4
        %v544 = vshll.u32 %v268, 16
        %v546 = vrot.slane %v544, 5
        %v547 = vsel %vm293, %v542, %v546
        %v548 = vshrl.u32 %v268, 16
        %v550 = vrot.slane %v548, 4
        %v551 = vor.u32 %v550, %v546
        %v552 = vrot.slane %v551, 4
        %v554 = vshll.u32 %v269, 16
        %v556 = vrot.slane %v554, 5
        %v557 = vsel %vm293, %v552, %v556
        %v559 = vshrl.u32 %v270, 16
        %v561 = vrot.slane %v559, 4
        %v562 = vshll.u32 %v270, 16
        %v564 = vrot.slane %v562, 5
        %v565 = vor.u32 %v561, %v564
        %v566 = vrot.slane %v565, 4
        %v568 = vshll.u32 %v271, 16
        %v570 = vrot.slane %v568, 5
        %v571 = vsel %vm293, %v566, %v570
        %v572 = vshrl.u32 %v271, 16
        %v574 = vrot.slane %v572, 4
        %v575 = vor.u32 %v574, %v570
        %v576 = vrot.slane %v575, 4
        %v578 = vshll.u32 %v272, 16
        %v580 = vrot.slane %v578, 5
        %v581 = vsel %vm293, %v576, %v580
        %v583 = vshrl.u32 %v273, 16
        %v585 = vrot.slane %v583, 4
        %v586 = vshll.u32 %v273, 16
        %v588 = vrot.slane %v586, 5
        %v589 = vor.u32 %v585, %v588
        %v590 = vrot.slane %v589, 4
        %v592 = vshll.u32 %v274, 16
        %v594 = vrot.slane %v592, 5
        %v595 = vsel %vm293, %v590, %v594
        %v596 = vshrl.u32 %v274, 16
        %v598 = vrot.slane %v596, 4
        %v599 = vor.u32 %v598, %v594
        %v600 = vrot.slane %v599, 4
        %v602 = vshll.u32 %v275, 16
        %v604 = vrot.slane %v602, 5
        %v605 = vsel %vm293, %v600, %v604
        %v607 = vshrl.u32 %v276, 16
        %v609 = vrot.slane %v607, 4
        %v610 = vshll.u32 %v276, 16
        %v612 = vrot.slane %v610, 5
        %v613 = vor.u32 %v609, %v612
        %v614 = vrot.slane %v613, 4
        %v616 = vshll.u32 %v277, 16
        %v618 = vrot.slane %v616, 5
        %v619 = vsel %vm293, %v614, %v618
        %v620 = vshrl.u32 %v277, 16
        %v622 = vrot.slane %v620, 4
        %v623 = vor.u32 %v622, %v618
        %v624 = vrot.slane %v623, 4
        %v626 = vshll.u32 %v278, 16
        %v628 = vrot.slane %v626, 5
        %v629 = vsel %vm293, %v624, %v628
        %v631 = vshrl.u32 %v279, 16
        %v633 = vrot.slane %v631, 4
        %v634 = vshll.u32 %v279, 16
        %v636 = vrot.slane %v634, 5
        %v637 = vor.u32 %v633, %v636
        %v638 = vrot.slane %v637, 4
        %v640 = vshll.u32 %v280, 16
        %v642 = vrot.slane %v640, 5
        %v643 = vsel %vm293, %v638, %v642
        %v644 = vshrl.u32 %v280, 16
        %v646 = vrot.slane %v644, 4
        %v647 = vor.u32 %v646, %v642
        %v648 = vrot.slane %v647, 4
        %v650 = vshll.u32 %v281, 16
        %v652 = vrot.slane %v650, 5
        %v653 = vsel %vm293, %v648, %v652
        %v655 = vshrl.u32 %v282, 16
        %v657 = vrot.slane %v655, 4
        %v658 = vshll.u32 %v282, 16
        %v660 = vrot.slane %v658, 5
        %v661 = vor.u32 %v657, %v660
        %v662 = vrot.slane %v661, 4
        %v664 = vshll.u32 %v283, 16
        %v666 = vrot.slane %v664, 5
        %v667 = vsel %vm293, %v662, %v666
        %v668 = vshrl.u32 %v283, 16
        %v670 = vrot.slane %v668, 4
        %v671 = vor.u32 %v670, %v666
        %v672 = vrot.slane %v671, 4
        %v674 = vshll.u32 %v284, 16
        %v676 = vrot.slane %v674, 5
        %v677 = vsel %vm293, %v672, %v676
        %vm726 = vcmask 1042432
        %vm727 = vcmask 1046532
        %vm728 = vmor %vm726, %vm727
        %v729 = vrot.slane %v237, 5
        %v730 = vrot.slane %v729, 4
        %v731 = vrot.slane %v238, 5
        %v732 = vsel %vm728, %v730, %v731
        %v733 = vrot.slane %v731, 4
        %v734 = vrot.slane %v239, 5
        %v735 = vsel %vm728, %v733, %v734
        %v736 = vrot.slane %v240, 5
        %v737 = vrot.slane %v736, 4
        %v738 = vrot.slane %v241, 5
        %v739 = vsel %vm728, %v737, %v738
        %v740 = vrot.slane %v738, 4
        %v741 = vrot.slane %v242, 5
        %v742 = vsel %vm728, %v740, %v741
        %v743 = vrot.slane %v243, 5
        %v744 = vrot.slane %v743, 4
        %v745 = vrot.slane %v244, 5
        %v746 = vsel %vm728, %v744, %v745
        %v747 = vrot.slane %v745, 4
        %v748 = vrot.slane %v245, 5
        %v749 = vsel %vm728, %v747, %v748
        %v750 = vrot.slane %v246, 5
        %v751 = vrot.slane %v750, 4
        %v752 = vrot.slane %v247, 5
        %v753 = vsel %vm728, %v751, %v752
        %v754 = vrot.slane %v752, 4
        %v755 = vrot.slane %v248, 5
        %v756 = vsel %vm728, %v754, %v755
        %v757 = vrot.slane %v249, 5
        %v758 = vrot.slane %v757, 4
        %v759 = vrot.slane %v250, 5
        %v760 = vsel %vm728, %v758, %v759
        %v761 = vrot.slane %v759, 4
        %v762 = vrot.slane %v251, 5
        %v763 = vsel %vm728, %v761, %v762
        %v764 = vrot.slane %v252, 5
        %v765 = vrot.slane %v764, 4
        %v766 = vrot.slane %v253, 5
        %v767 = vsel %vm728, %v765, %v766
        %v768 = vrot.slane %v766, 4
        %v769 = vrot.slane %v254, 5
        %v770 = vsel %vm728, %v768, %v769
        %v771 = vrot.slane %v255, 5
        %v772 = vrot.slane %v771, 4
        %v773 = vrot.slane %v256, 5
        %v774 = vsel %vm728, %v772, %v773
        %v775 = vrot.slane %v773, 4
        %v776 = vrot.slane %v257, 5
        %v777 = vsel %vm728, %v775, %v776
        %v778 = vrot.slane %v258, 5
        %v779 = vrot.slane %v778, 4
        %v780 = vrot.slane %v259, 5
        %v781 = vsel %vm728, %v779, %v780
        %v782 = vrot.slane %v780, 4
        %v783 = vrot.slane %v260, 5
        %v784 = vsel %vm728, %v782, %v783
        %v785 = vrot.slane %v261, 5
        %v786 = vrot.slane %v785, 4
        %v787 = vrot.slane %v262, 5
        %v788 = vsel %vm728, %v786, %v787
        %v789 = vrot.slane %v787, 4
        %v790 = vrot.slane %v263, 5
        %v791 = vsel %vm728, %v789, %v790
        %v792 = vrot.slane %v264, 5
        %v793 = vrot.slane %v792, 4
        %v794 = vrot.slane %v265, 5
        %v795 = vsel %vm728, %v793, %v794
        %v796 = vrot.slane %v794, 4
        %v797 = vrot.slane %v266, 5
        %v798 = vsel %vm728, %v796, %v797
        %v799 = vrot.slane %v267, 5
        %v800 = vrot.slane %v799, 4
        %v801 = vrot.slane %v268, 5
        %v802 = vsel %vm728, %v800, %v801
        %v803 = vrot.slane %v801, 4
        %v804 = vrot.slane %v269, 5
        %v805 = vsel %vm728, %v803, %v804
        %v806 = vrot.slane %v270, 5
        %v807 = vrot.slane %v806, 4
        %v808 = vrot.slane %v271, 5
        %v809 = vsel %vm728, %v807, %v808
        %v810 = vrot.slane %v808, 4
        %v811 = vrot.slane %v272, 5
        %v812 = vsel %vm728, %v810, %v811
        %v813 = vrot.slane %v273, 5
        %v814 = vrot.slane %v813, 4
        %v815 = vrot.slane %v274, 5
        %v816 = vsel %vm728, %v814, %v815
        %v817 = vrot.slane %v815, 4
        %v818 = vrot.slane %v275, 5
        %v819 = vsel %vm728, %v817, %v818
        %v820 = vrot.slane %v276, 5
        %v821 = vrot.slane %v820, 4
        %v822 = vrot.slane %v277, 5
        %v823 = vsel %vm728, %v821, %v822
        %v824 = vrot.slane %v822, 4
        %v825 = vrot.slane %v278, 5
        %v826 = vsel %vm728, %v824, %v825
        %v827 = vrot.slane %v279, 5
        %v828 = vrot.slane %v827, 4
        %v829 = vrot.slane %v280, 5
        %v830 = vsel %vm728, %v828, %v829
        %v831 = vrot.slane %v829, 4
        %v832 = vrot.slane %v281, 5
        %v833 = vsel %vm728, %v831, %v832
        %v834 = vrot.slane %v282, 5
        %v835 = vrot.slane %v834, 4
        %v836 = vrot.slane %v283, 5
        %v837 = vsel %vm728, %v835, %v836
        %v838 = vrot.slane %v836, 4
        %v839 = vrot.slane %v284, 5
        %v840 = vsel %vm728, %v838, %v839
        %v842 = vshrl.u32 %v285, 16
        %v844 = vrot.slane %v842, 4
        %v845 = vshll.u32 %v285, 16
        %v847 = vrot.slane %v845, 5
        %v848 = vor.u32 %v844, %v847
        %v849 = vrot.slane %v848, 4
        %v851 = vshll.u32 %v286, 16
        %v853 = vrot.slane %v851, 5
        %v854 = vsel %vm293, %v849, %v853
        %v855 = vshrl.u32 %v286, 16
        %v857 = vrot.slane %v855, 4
        %v858 = vor.u32 %v857, %v853
        %v859 = vrot.slane %v858, 4
        %v861 = vshll.u32 %v287, 16
        %v863 = vrot.slane %v861, 5
        %v864 = vsel %vm293, %v859, %v863
        %v868 = vrot.slane %v285, 5
        %v869 = vrot.slane %v868, 4
        %v870 = vrot.slane %v286, 5
        %v871 = vsel %vm728, %v869, %v870
        %v872 = vrot.slane %v870, 4
        %v873 = vrot.slane %v287, 5
        %v874 = vsel %vm728, %v872, %v873
        %v876 = vshrl.u32 %v288, 16
        %v878 = vrot.slane %v876, 4
        %v879 = vshll.u32 %v288, 16
        %v881 = vrot.slane %v879, 5
        %v882 = vor.u32 %v878, %v881
        %v883 = vrot.slane %v882, 4
        %v885 = vshll.u32 %v289, 16
        %v887 = vrot.slane %v885, 5
        %v888 = vsel %vm293, %v883, %v887
        %v889 = vshrl.u32 %v289, 16
        %v891 = vrot.slane %v889, 4
        %v892 = vor.u32 %v891, %v887
        %v893 = vrot.slane %v892, 4
        %v895 = vshll.u32 %v290, 16
        %v897 = vrot.slane %v895, 5
        %v898 = vsel %vm293, %v893, %v897
        %v902 = vrot.slane %v288, 5
        %v903 = vrot.slane %v902, 4
        %v904 = vrot.slane %v289, 5
        %v905 = vsel %vm728, %v903, %v904
        %v906 = vrot.slane %v904, 4
        %v907 = vrot.slane %v290, 5
        %v908 = vsel %vm728, %v906, %v907
        %v909 = vld [vmem:[#allocation5] sm:$0xf]
        %s910 = scalar_lea.vmem [#allocation5], 4
        %v911 = vld [vmem:[%s910] sm:$0xf]
        %v912 = vunpack.c.l.b16 %v307
        %v913 = vunpack.c.l.b16 %v317
        %v914 = vunpack.c.l.b16 %v331
        %v915 = vunpack.c.l.b16 %v341
        %v916 = vunpack.c.l.b16 %v355
        %v917 = vunpack.c.l.b16 %v365
        %v918 = vunpack.c.l.b16 %v379
        %v919 = vunpack.c.l.b16 %v389
        %v920 = vunpack.c.l.b16 %v403
        %v921 = vunpack.c.l.b16 %v413
        %v922 = vunpack.c.l.b16 %v427
        %v923 = vunpack.c.l.b16 %v437
        %v924 = vunpack.c.l.b16 %v451
        %v925 = vunpack.c.l.b16 %v461
        %v926 = vunpack.c.l.b16 %v475
        %v927 = vunpack.c.l.b16 %v485
        %v928 = vunpack.c.l.b16 %v499
        %v929 = vunpack.c.l.b16 %v509
        %v930 = vunpack.c.l.b16 %v523
        %v931 = vunpack.c.l.b16 %v533
        %v932 = vunpack.c.l.b16 %v547
        %v933 = vunpack.c.l.b16 %v557
        %v934 = vunpack.c.l.b16 %v571
        %v935 = vunpack.c.l.b16 %v581
        %v936 = vunpack.c.l.b16 %v595
        %v937 = vunpack.c.l.b16 %v605
        %v938 = vunpack.c.l.b16 %v619
        %v939 = vunpack.c.l.b16 %v629
        %v940 = vunpack.c.l.b16 %v643
        %v941 = vunpack.c.l.b16 %v653
        %v942 = vunpack.c.l.b16 %v667
        %v943 = vunpack.c.l.b16 %v677
        %v944 = vpack.c.b16 %v913, %v912
        %v945 = vpack.c.b16 %v915, %v914
        %v946 = vpack.c.b16 %v917, %v916
        %v947 = vpack.c.b16 %v919, %v918
        %v948 = vpack.c.b16 %v921, %v920
        %v949 = vpack.c.b16 %v923, %v922
        %v950 = vpack.c.b16 %v925, %v924
        %v951 = vpack.c.b16 %v927, %v926
        %v952 = vpack.c.b16 %v929, %v928
        %v953 = vpack.c.b16 %v931, %v930
        %v954 = vpack.c.b16 %v933, %v932
        %v955 = vpack.c.b16 %v935, %v934
        %v956 = vpack.c.b16 %v937, %v936
        %v957 = vpack.c.b16 %v939, %v938
        %v958 = vpack.c.b16 %v941, %v940
        %v959 = vpack.c.b16 %v943, %v942
        %vm960 = vcmask 64512
        %v962 = vsel %vm960, %v944, 0
        %v965 = vsel %vm960, %v945, 0
        %v968 = vsel %vm960, %v946, 0
        %v971 = vsel %vm960, %v947, 0
        %v974 = vsel %vm960, %v948, 0
        %v977 = vsel %vm960, %v949, 0
        %v980 = vsel %vm960, %v950, 0
        %v983 = vsel %vm960, %v951, 0
        %v986 = vsel %vm960, %v952, 0
        %v989 = vsel %vm960, %v953, 0
        %v992 = vsel %vm960, %v954, 0
        %v995 = vsel %vm960, %v955, 0
        %v998 = vsel %vm960, %v956, 0
        %v1001 = vsel %vm960, %v957, 0
        %v1004 = vsel %vm960, %v958, 0
        %v1007 = vsel %vm960, %v959, 0
        %vm1009 = vcmask 1043456
        %v1011 = vsel %vm1009, %v911, 0
        %1013 = vmatprep.subr.bf16.mxu0 0
        %1014 = vmatpush1.bf16.msra.mxu0 %v1011
        %1015 = vmatprep.subr.bf16.mxu0 0
        %1016 = vmatpush1.bf16.msra.mxu0 0
        %1017 = vmatprep.subr.bf16.mxu0 0
        %1018 = vmatpush1.bf16.msra.mxu0 0
        %1019 = vmatprep.subr.bf16.mxu0 0
        %1020 = vmatpush1.bf16.msra.mxu0 0
        %1021 = vmatprep.subr.bf16.mxu0 0
        %1022 = vmatpush1.bf16.msra.mxu0 0
        %1023 = vmatprep.subr.bf16.mxu0 0
        %1024 = vmatpush1.bf16.msra.mxu0 0
        %1025 = vmatprep.subr.bf16.mxu0 0
        %1026 = vmatpush1.bf16.msra.mxu0 0
        %1027 = vmatprep.subr.bf16.mxu0 0
        %1028 = vmatpush1.bf16.msra.mxu0 0
        %1029 = vmatprep.subr.bf16.mxu0 0
        %1030 = vmatpush1.bf16.msra.mxu0 0
        %1031 = vmatprep.subr.bf16.mxu0 0
        %1032 = vmatpush1.bf16.msra.mxu0 0
        %1033 = vmatprep.subr.bf16.mxu0 0
        %1034 = vmatpush1.bf16.msra.mxu0 0
        %1035 = vmatprep.subr.bf16.mxu0 0
        %1036 = vmatpush1.bf16.msra.mxu0 0
        %1037 = vmatprep.subr.bf16.mxu0 0
        %1038 = vmatpush1.bf16.msra.mxu0 0
        %1039 = vmatprep.subr.bf16.mxu0 0
        %1040 = vmatpush1.bf16.msra.mxu0 0
        %1041 = vmatprep.subr.bf16.mxu0 0
        %1042 = vmatpush1.bf16.msra.mxu0 0
        %1043 = vmatprep.subr.bf16.mxu0 0
        %1044 = vmatpush1.bf16.msra.mxu0 0
        %1045 = vmatprep.mubr.bf16.mxu0 0
        %1046 = vmatmul.mubr.bf16.gmra.mrb[0].mxu0 %v962
        %v1047 = vpop.f32.mrb[0].mxu0
        %v1048 = vadd.f32 0.0, %v1047
        %v1049 = vpop.f32.mrb[0].mxu0
        %v1050 = vpop.f32.mrb[0].mxu0
        %v1051 = vadd.f32 0.0, %v1050
        %v1052 = vpop.f32.mrb[0].mxu0
        %1053 = vmatprep.mubr.bf16.mxu0 0
        %1054 = vmatmul.mubr.bf16.gmra.mrb[0].mxu0 %v965
        %v1055 = vpop.f32.mrb[0].mxu0
        %v1056 = vadd.f32 0.0, %v1055
        %v1057 = vpop.f32.mrb[0].mxu0
        %v1058 = vpop.f32.mrb[0].mxu0
        %v1059 = vadd.f32 0.0, %v1058
        %v1060 = vpop.f32.mrb[0].mxu0
        %1061 = vmatprep.mubr.bf16.mxu0 0
        %1062 = vmatmul.mubr.bf16.gmra.mrb[0].mxu0 %v968
        %v1063 = vpop.f32.mrb[0].mxu0
        %v1064 = vadd.f32 0.0, %v1063
        %v1065 = vpop.f32.mrb[0].mxu0
        %v1066 = vpop.f32.mrb[0].mxu0
        %v1067 = vadd.f32 0.0, %v1066
        %v1068 = vpop.f32.mrb[0].mxu0
        %1069 = vmatprep.mubr.bf16.mxu0 0
        %1070 = vmatmul.mubr.bf16.gmra.mrb[0].mxu0 %v971
        %v1071 = vpop.f32.mrb[0].mxu0
        %v1072 = vadd.f32 0.0, %v1071
        %v1073 = vpop.f32.mrb[0].mxu0
        %v1074 = vpop.f32.mrb[0].mxu0
        %v1075 = vadd.f32 0.0, %v1074
        %v1076 = vpop.f32.mrb[0].mxu0
        %1077 = vmatprep.mubr.bf16.mxu0 0
        %1078 = vmatmul.mubr.bf16.gmra.mrb[0].mxu0 %v974
        %v1079 = vpop.f32.mrb[0].mxu0
        %v1080 = vadd.f32 0.0, %v1079
        %v1081 = vpop.f32.mrb[0].mxu0
        %v1082 = vpop.f32.mrb[0].mxu0
        %v1083 = vadd.f32 0.0, %v1082
        %v1084 = vpop.f32.mrb[0].mxu0
        %1085 = vmatprep.mubr.bf16.mxu0 0
        %1086 = vmatmul.mubr.bf16.gmra.mrb[0].mxu0 %v977
        %v1087 = vpop.f32.mrb[0].mxu0
        %v1088 = vadd.f32 0.0, %v1087
        %v1089 = vpop.f32.mrb[0].mxu0
        %v1090 = vpop.f32.mrb[0].mxu0
        %v1091 = vadd.f32 0.0, %v1090
        %v1092 = vpop.f32.mrb[0].mxu0
        %1093 = vmatprep.mubr.bf16.mxu0 0
        %1094 = vmatmul.mubr.bf16.gmra.mrb[0].mxu0 %v980
        %v1095 = vpop.f32.mrb[0].mxu0
        %v1096 = vadd.f32 0.0, %v1095
        %v1097 = vpop.f32.mrb[0].mxu0
        %v1098 = vpop.f32.mrb[0].mxu0
        %v1099 = vadd.f32 0.0, %v1098
        %v1100 = vpop.f32.mrb[0].mxu0
        %1101 = vmatprep.mubr.bf16.mxu0 0
        %1102 = vmatmul.mubr.bf16.gmra.mrb[0].mxu0 %v983
        %v1103 = vpop.f32.mrb[0].mxu0
        %v1104 = vadd.f32 0.0, %v1103
        %v1105 = vpop.f32.mrb[0].mxu0
        %v1106 = vpop.f32.mrb[0].mxu0
        %v1107 = vadd.f32 0.0, %v1106
        %v1108 = vpop.f32.mrb[0].mxu0
        %1109 = vmatprep.mubr.bf16.mxu0 0
        %1110 = vmatmul.mubr.bf16.gmra.mrb[0].mxu0 %v986
        %v1111 = vpop.f32.mrb[0].mxu0
        %v1112 = vadd.f32 0.0, %v1111
        %v1113 = vpop.f32.mrb[0].mxu0
        %v1114 = vpop.f32.mrb[0].mxu0
        %v1115 = vadd.f32 0.0, %v1114
        %v1116 = vpop.f32.mrb[0].mxu0
        %1117 = vmatprep.mubr.bf16.mxu0 0
        %1118 = vmatmul.mubr.bf16.gmra.mrb[0].mxu0 %v989
        %v1119 = vpop.f32.mrb[0].mxu0
        %v1120 = vadd.f32 0.0, %v1119
        %v1121 = vpop.f32.mrb[0].mxu0
        %v1122 = vpop.f32.mrb[0].mxu0
        %v1123 = vadd.f32 0.0, %v1122
        %v1124 = vpop.f32.mrb[0].mxu0
        %1125 = vmatprep.mubr.bf16.mxu0 0
        %1126 = vmatmul.mubr.bf16.gmra.mrb[0].mxu0 %v992
        %v1127 = vpop.f32.mrb[0].mxu0
        %v1128 = vadd.f32 0.0, %v1127
        %v1129 = vpop.f32.mrb[0].mxu0
        %v1130 = vpop.f32.mrb[0].mxu0
        %v1131 = vadd.f32 0.0, %v1130
        %v1132 = vpop.f32.mrb[0].mxu0
        %1133 = vmatprep.mubr.bf16.mxu0 0
        %1134 = vmatmul.mubr.bf16.gmra.mrb[0].mxu0 %v995
        %v1135 = vpop.f32.mrb[0].mxu0
        %v1136 = vadd.f32 0.0, %v1135
        %v1137 = vpop.f32.mrb[0].mxu0
        %v1138 = vpop.f32.mrb[0].mxu0
        %v1139 = vadd.f32 0.0, %v1138
        %v1140 = vpop.f32.mrb[0].mxu0
        %1141 = vmatprep.mubr.bf16.mxu0 0
        %1142 = vmatmul.mubr.bf16.gmra.mrb[0].mxu0 %v998
        %v1143 = vpop.f32.mrb[0].mxu0
        %v1144 = vadd.f32 0.0, %v1143
        %v1145 = vpop.f32.mrb[0].mxu0
        %v1146 = vpop.f32.mrb[0].mxu0
        %v1147 = vadd.f32 0.0, %v1146
        %v1148 = vpop.f32.mrb[0].mxu0
        %1149 = vmatprep.mubr.bf16.mxu0 0
        %1150 = vmatmul.mubr.bf16.gmra.mrb[0].mxu0 %v1001
        %v1151 = vpop.f32.mrb[0].mxu0
        %v1152 = vadd.f32 0.0, %v1151
        %v1153 = vpop.f32.mrb[0].mxu0
        %v1154 = vpop.f32.mrb[0].mxu0
        %v1155 = vadd.f32 0.0, %v1154
        %v1156 = vpop.f32.mrb[0].mxu0
        %1157 = vmatprep.mubr.bf16.mxu0 0
        %1158 = vmatmul.mubr.bf16.gmra.mrb[0].mxu0 %v1004
        %v1159 = vpop.f32.mrb[0].mxu0
        %v1160 = vadd.f32 0.0, %v1159
        %v1161 = vpop.f32.mrb[0].mxu0
        %v1162 = vpop.f32.mrb[0].mxu0
        %v1163 = vadd.f32 0.0, %v1162
        %v1164 = vpop.f32.mrb[0].mxu0
        %1165 = vmatprep.mubr.bf16.mxu0 0
        %1166 = vmatmul.mubr.bf16.gmra.mrb[0].mxu0 %v1007
        %v1167 = vpop.f32.mrb[0].mxu0
        %v1168 = vadd.f32 0.0, %v1167
        %v1169 = vpop.f32.mrb[0].mxu0
        %v1170 = vpop.f32.mrb[0].mxu0
        %v1171 = vadd.f32 0.0, %v1170
        %v1172 = vpop.f32.mrb[0].mxu0
        %1173 = vdwg.mxu0
        %v1174 = vunpack.c.l.b16 %v237
        %v1175 = vunpack.c.l.b16 %v238
        %v1176 = vunpack.c.l.b16 %v240
        %v1177 = vunpack.c.l.b16 %v241
        %v1178 = vunpack.c.l.b16 %v243
        %v1179 = vunpack.c.l.b16 %v244
        %v1180 = vunpack.c.l.b16 %v246
        %v1181 = vunpack.c.l.b16 %v247
        %v1182 = vunpack.c.l.b16 %v249
        %v1183 = vunpack.c.l.b16 %v250
        %v1184 = vunpack.c.l.b16 %v252
        %v1185 = vunpack.c.l.b16 %v253
        %v1186 = vunpack.c.l.b16 %v255
        %v1187 = vunpack.c.l.b16 %v256
        %v1188 = vunpack.c.l.b16 %v258
        %v1189 = vunpack.c.l.b16 %v259
        %v1190 = vunpack.c.l.b16 %v261
        %v1191 = vunpack.c.l.b16 %v262
        %v1192 = vunpack.c.l.b16 %v264
        %v1193 = vunpack.c.l.b16 %v265
        %v1194 = vunpack.c.l.b16 %v267
        %v1195 = vunpack.c.l.b16 %v268
        %v1196 = vunpack.c.l.b16 %v270
        %v1197 = vunpack.c.l.b16 %v271
        %v1198 = vunpack.c.l.b16 %v273
        %v1199 = vunpack.c.l.b16 %v274
        %v1200 = vunpack.c.l.b16 %v276
        %v1201 = vunpack.c.l.b16 %v277
        %v1202 = vunpack.c.l.b16 %v279
        %v1203 = vunpack.c.l.b16 %v280
        %v1204 = vunpack.c.l.b16 %v282
        %v1205 = vunpack.c.l.b16 %v283
        %v1206 = vpack.c.b16 %v1175, %v1174
        %v1207 = vpack.c.b16 %v1177, %v1176
        %v1208 = vpack.c.b16 %v1179, %v1178
        %v1209 = vpack.c.b16 %v1181, %v1180
        %v1210 = vpack.c.b16 %v1183, %v1182
        %v1211 = vpack.c.b16 %v1185, %v1184
        %v1212 = vpack.c.b16 %v1187, %v1186
        %v1213 = vpack.c.b16 %v1189, %v1188
        %v1214 = vpack.c.b16 %v1191, %v1190
        %v1215 = vpack.c.b16 %v1193, %v1192
        %v1216 = vpack.c.b16 %v1195, %v1194
        %v1217 = vpack.c.b16 %v1197, %v1196
        %v1218 = vpack.c.b16 %v1199, %v1198
        %v1219 = vpack.c.b16 %v1201, %v1200
        %v1220 = vpack.c.b16 %v1203, %v1202
        %v1221 = vpack.c.b16 %v1205, %v1204
        %v1223 = vsel %vm960, %v1206, 0
        %v1226 = vsel %vm960, %v1207, 0
        %v1229 = vsel %vm960, %v1208, 0
        %v1232 = vsel %vm960, %v1209, 0
        %v1235 = vsel %vm960, %v1210, 0
        %v1238 = vsel %vm960, %v1211, 0
        %v1241 = vsel %vm960, %v1212, 0
        %v1244 = vsel %vm960, %v1213, 0
        %v1247 = vsel %vm960, %v1214, 0
        %v1250 = vsel %vm960, %v1215, 0
        %v1253 = vsel %vm960, %v1216, 0
        %v1256 = vsel %vm960, %v1217, 0
        %v1259 = vsel %vm960, %v1218, 0
        %v1262 = vsel %vm960, %v1219, 0
        %v1265 = vsel %vm960, %v1220, 0
        %v1268 = vsel %vm960, %v1221, 0
        %v1271 = vsel %vm1009, %v909, 0
        %1273 = vmatprep.subr.bf16.mxu0 0
        %1274 = vmatpush1.bf16.msra.mxu0 %v1271
        %1275 = vmatprep.subr.bf16.mxu0 0
        %1276 = vmatpush1.bf16.msra.mxu0 0
        %1277 = vmatprep.subr.bf16.mxu0 0
        %1278 = vmatpush1.bf16.msra.mxu0 0
        %1279 = vmatprep.subr.bf16.mxu0 0
        %1280 = vmatpush1.bf16.msra.mxu0 0
        %1281 = vmatprep.subr.bf16.mxu0 0
        %1282 = vmatpush1.bf16.msra.mxu0 0
        %1283 = vmatprep.subr.bf16.mxu0 0
        %1284 = vmatpush1.bf16.msra.mxu0 0
        %1285 = vmatprep.subr.bf16.mxu0 0
        %1286 = vmatpush1.bf16.msra.mxu0 0
        %1287 = vmatprep.subr.bf16.mxu0 0
        %1288 = vmatpush1.bf16.msra.mxu0 0
        %1289 = vmatprep.subr.bf16.mxu0 0
        %1290 = vmatpush1.bf16.msra.mxu0 0
        %1291 = vmatprep.subr.bf16.mxu0 0
        %1292 = vmatpush1.bf16.msra.mxu0 0
        %1293 = vmatprep.subr.bf16.mxu0 0
        %1294 = vmatpush1.bf16.msra.mxu0 0
        %1295 = vmatprep.subr.bf16.mxu0 0
        %1296 = vmatpush1.bf16.msra.mxu0 0
        %1297 = vmatprep.subr.bf16.mxu0 0
        %1298 = vmatpush1.bf16.msra.mxu0 0
        %1299 = vmatprep.subr.bf16.mxu0 0
        %1300 = vmatpush1.bf16.msra.mxu0 0
        %1301 = vmatprep.subr.bf16.mxu0 0
        %1302 = vmatpush1.bf16.msra.mxu0 0
        %1303 = vmatprep.subr.bf16.mxu0 0
        %1304 = vmatpush1.bf16.msra.mxu0 0
        %1305 = vmatprep.mubr.bf16.mxu0 0
        %1306 = vmatmul.mubr.bf16.gmra.mrb[0].mxu0 %v1223
        %v1307 = vpop.f32.mrb[0].mxu0
        %v1308 = vadd.f32 %v1048, %v1307
        %v1309 = vpop.f32.mrb[0].mxu0
        %v1310 = vpop.f32.mrb[0].mxu0
        %v1311 = vadd.f32 %v1051, %v1310
        %v1312 = vpop.f32.mrb[0].mxu0
        %1313 = vmatprep.mubr.bf16.mxu0 0
        %1314 = vmatmul.mubr.bf16.gmra.mrb[0].mxu0 %v1226
        %v1315 = vpop.f32.mrb[0].mxu0
        %v1316 = vadd.f32 %v1056, %v1315
        %v1317 = vpop.f32.mrb[0].mxu0
        %v1318 = vpop.f32.mrb[0].mxu0
        %v1319 = vadd.f32 %v1059, %v1318
        %v1320 = vpop.f32.mrb[0].mxu0
        %1321 = vmatprep.mubr.bf16.mxu0 0
        %1322 = vmatmul.mubr.bf16.gmra.mrb[0].mxu0 %v1229
        %v1323 = vpop.f32.mrb[0].mxu0
        %v1324 = vadd.f32 %v1064, %v1323
        %v1325 = vpop.f32.mrb[0].mxu0
        %v1326 = vpop.f32.mrb[0].mxu0
        %v1327 = vadd.f32 %v1067, %v1326
        %v1328 = vpop.f32.mrb[0].mxu0
        %1329 = vmatprep.mubr.bf16.mxu0 0
        %1330 = vmatmul.mubr.bf16.gmra.mrb[0].mxu0 %v1232
        %v1331 = vpop.f32.mrb[0].mxu0
        %v1332 = vadd.f32 %v1072, %v1331
        %v1333 = vpop.f32.mrb[0].mxu0
        %v1334 = vpop.f32.mrb[0].mxu0
        %v1335 = vadd.f32 %v1075, %v1334
        %v1336 = vpop.f32.mrb[0].mxu0
        %1337 = vmatprep.mubr.bf16.mxu0 0
        %1338 = vmatmul.mubr.bf16.gmra.mrb[0].mxu0 %v1235
        %v1339 = vpop.f32.mrb[0].mxu0
        %v1340 = vadd.f32 %v1080, %v1339
        %v1341 = vpop.f32.mrb[0].mxu0
        %v1342 = vpop.f32.mrb[0].mxu0
        %v1343 = vadd.f32 %v1083, %v1342
        %v1344 = vpop.f32.mrb[0].mxu0
        %1345 = vmatprep.mubr.bf16.mxu0 0
        %1346 = vmatmul.mubr.bf16.gmra.mrb[0].mxu0 %v1238
        %v1347 = vpop.f32.mrb[0].mxu0
        %v1348 = vadd.f32 %v1088, %v1347
        %v1349 = vpop.f32.mrb[0].mxu0
        %v1350 = vpop.f32.mrb[0].mxu0
        %v1351 = vadd.f32 %v1091, %v1350
        %v1352 = vpop.f32.mrb[0].mxu0
        %1353 = vmatprep.mubr.bf16.mxu0 0
        %1354 = vmatmul.mubr.bf16.gmra.mrb[0].mxu0 %v1241
        %v1355 = vpop.f32.mrb[0].mxu0
        %v1356 = vadd.f32 %v1096, %v1355
        %v1357 = vpop.f32.mrb[0].mxu0
        %v1358 = vpop.f32.mrb[0].mxu0
        %v1359 = vadd.f32 %v1099, %v1358
        %v1360 = vpop.f32.mrb[0].mxu0
        %1361 = vmatprep.mubr.bf16.mxu0 0
        %1362 = vmatmul.mubr.bf16.gmra.mrb[0].mxu0 %v1244
        %v1363 = vpop.f32.mrb[0].mxu0
        %v1364 = vadd.f32 %v1104, %v1363
        %v1365 = vpop.f32.mrb[0].mxu0
        %v1366 = vpop.f32.mrb[0].mxu0
        %v1367 = vadd.f32 %v1107, %v1366
        %v1368 = vpop.f32.mrb[0].mxu0
        %1369 = vmatprep.mubr.bf16.mxu0 0
        %1370 = vmatmul.mubr.bf16.gmra.mrb[0].mxu0 %v1247
        %v1371 = vpop.f32.mrb[0].mxu0
        %v1372 = vadd.f32 %v1112, %v1371
        %v1373 = vpop.f32.mrb[0].mxu0
        %v1374 = vpop.f32.mrb[0].mxu0
        %v1375 = vadd.f32 %v1115, %v1374
        %v1376 = vpop.f32.mrb[0].mxu0
        %1377 = vmatprep.mubr.bf16.mxu0 0
        %1378 = vmatmul.mubr.bf16.gmra.mrb[0].mxu0 %v1250
        %v1379 = vpop.f32.mrb[0].mxu0
        %v1380 = vadd.f32 %v1120, %v1379
        %v1381 = vpop.f32.mrb[0].mxu0
        %v1382 = vpop.f32.mrb[0].mxu0
        %v1383 = vadd.f32 %v1123, %v1382
        %v1384 = vpop.f32.mrb[0].mxu0
        %1385 = vmatprep.mubr.bf16.mxu0 0
        %1386 = vmatmul.mubr.bf16.gmra.mrb[0].mxu0 %v1253
        %v1387 = vpop.f32.mrb[0].mxu0
        %v1388 = vadd.f32 %v1128, %v1387
        %v1389 = vpop.f32.mrb[0].mxu0
        %v1390 = vpop.f32.mrb[0].mxu0
        %v1391 = vadd.f32 %v1131, %v1390
        %v1392 = vpop.f32.mrb[0].mxu0
        %1393 = vmatprep.mubr.bf16.mxu0 0
        %1394 = vmatmul.mubr.bf16.gmra.mrb[0].mxu0 %v1256
        %v1395 = vpop.f32.mrb[0].mxu0
        %v1396 = vadd.f32 %v1136, %v1395
        %v1397 = vpop.f32.mrb[0].mxu0
        %v1398 = vpop.f32.mrb[0].mxu0
        %v1399 = vadd.f32 %v1139, %v1398
        %v1400 = vpop.f32.mrb[0].mxu0
        %1401 = vmatprep.mubr.bf16.mxu0 0
        %1402 = vmatmul.mubr.bf16.gmra.mrb[0].mxu0 %v1259
        %v1403 = vpop.f32.mrb[0].mxu0
        %v1404 = vadd.f32 %v1144, %v1403
        %v1405 = vpop.f32.mrb[0].mxu0
        %v1406 = vpop.f32.mrb[0].mxu0
        %v1407 = vadd.f32 %v1147, %v1406
        %v1408 = vpop.f32.mrb[0].mxu0
        %1409 = vmatprep.mubr.bf16.mxu0 0
        %1410 = vmatmul.mubr.bf16.gmra.mrb[0].mxu0 %v1262
        %v1411 = vpop.f32.mrb[0].mxu0
        %v1412 = vadd.f32 %v1152, %v1411
        %v1413 = vpop.f32.mrb[0].mxu0
        %v1414 = vpop.f32.mrb[0].mxu0
        %v1415 = vadd.f32 %v1155, %v1414
        %v1416 = vpop.f32.mrb[0].mxu0
        %1417 = vmatprep.mubr.bf16.mxu0 0
        %1418 = vmatmul.mubr.bf16.gmra.mrb[0].mxu0 %v1265
        %v1419 = vpop.f32.mrb[0].mxu0
        %v1420 = vadd.f32 %v1160, %v1419
        %v1421 = vpop.f32.mrb[0].mxu0
        %v1422 = vpop.f32.mrb[0].mxu0
        %v1423 = vadd.f32 %v1163, %v1422
        %v1424 = vpop.f32.mrb[0].mxu0
        %1425 = vmatprep.mubr.bf16.mxu0 0
        %1426 = vmatmul.mubr.bf16.gmra.mrb[0].mxu0 %v1268
        %v1427 = vpop.f32.mrb[0].mxu0
        %v1428 = vadd.f32 %v1168, %v1427
        %v1429 = vpop.f32.mrb[0].mxu0
        %v1430 = vpop.f32.mrb[0].mxu0
        %v1431 = vadd.f32 %v1171, %v1430
        %v1432 = vpop.f32.mrb[0].mxu0
        %1433 = vdwg.mxu0
        %s1434 = scalar_lea.vmem [#allocation5], 8
        %v1435 = vld [vmem:[%s1434] sm:$0xf]
        %v1436 = vunpack.c.l.b16 %v285
        %v1437 = vunpack.c.l.b16 %v286
        %v1438 = vpack.c.b16 %v1437, %v1436
        %v1440 = vsel %vm960, %v1438, 0
        %v1443 = vsel %vm1009, %v1435, 0
        %1445 = vmatprep.subr.bf16.mxu0 0
        %1446 = vmatpush1.bf16.msra.mxu0 %v1443
        %1447 = vmatprep.subr.bf16.mxu0 0
        %1448 = vmatpush1.bf16.msra.mxu0 0
        %1449 = vmatprep.subr.bf16.mxu0 0
        %1450 = vmatpush1.bf16.msra.mxu0 0
        %1451 = vmatprep.subr.bf16.mxu0 0
        %1452 = vmatpush1.bf16.msra.mxu0 0
        %1453 = vmatprep.subr.bf16.mxu0 0
        %1454 = vmatpush1.bf16.msra.mxu0 0
        %1455 = vmatprep.subr.bf16.mxu0 0
        %1456 = vmatpush1.bf16.msra.mxu0 0
        %1457 = vmatprep.subr.bf16.mxu0 0
        %1458 = vmatpush1.bf16.msra.mxu0 0
        %1459 = vmatprep.subr.bf16.mxu0 0
        %1460 = vmatpush1.bf16.msra.mxu0 0
        %1461 = vmatprep.subr.bf16.mxu0 0
        %1462 = vmatpush1.bf16.msra.mxu0 0
        %1463 = vmatprep.subr.bf16.mxu0 0
        %1464 = vmatpush1.bf16.msra.mxu0 0
        %1465 = vmatprep.subr.bf16.mxu0 0
        %1466 = vmatpush1.bf16.msra.mxu0 0
        %1467 = vmatprep.subr.bf16.mxu0 0
        %1468 = vmatpush1.bf16.msra.mxu0 0
        %1469 = vmatprep.subr.bf16.mxu0 0
        %1470 = vmatpush1.bf16.msra.mxu0 0
        %1471 = vmatprep.subr.bf16.mxu0 0
        %1472 = vmatpush1.bf16.msra.mxu0 0
        %1473 = vmatprep.subr.bf16.mxu0 0
        %1474 = vmatpush1.bf16.msra.mxu0 0
        %1475 = vmatprep.subr.bf16.mxu0 0
        %1476 = vmatpush1.bf16.msra.mxu0 0
        %1477 = vmatprep.mubr.bf16.mxu0 0
        %1478 = vmatmul.mubr.bf16.gmra.mrb[0].mxu0 %v1226
        %v1479 = vpop.f32.mrb[0].mxu0
        %v1480 = vadd.f32 0.0, %v1479
        %v1481 = vpop.f32.mrb[0].mxu0
        %v1482 = vpop.f32.mrb[0].mxu0
        %v1483 = vadd.f32 0.0, %v1482
        %v1484 = vpop.f32.mrb[0].mxu0
        %1485 = vmatprep.mubr.bf16.mxu0 0
        %1486 = vmatmul.mubr.bf16.gmra.mrb[0].mxu0 %v1229
        %v1487 = vpop.f32.mrb[0].mxu0
        %v1488 = vadd.f32 0.0, %v1487
        %v1489 = vpop.f32.mrb[0].mxu0
        %v1490 = vpop.f32.mrb[0].mxu0
        %v1491 = vadd.f32 0.0, %v1490
        %v1492 = vpop.f32.mrb[0].mxu0
        %1493 = vmatprep.mubr.bf16.mxu0 0
        %1494 = vmatmul.mubr.bf16.gmra.mrb[0].mxu0 %v1232
        %v1495 = vpop.f32.mrb[0].mxu0
        %v1496 = vadd.f32 0.0, %v1495
        %v1497 = vpop.f32.mrb[0].mxu0
        %v1498 = vpop.f32.mrb[0].mxu0
        %v1499 = vadd.f32 0.0, %v1498
        %v1500 = vpop.f32.mrb[0].mxu0
        %1501 = vmatprep.mubr.bf16.mxu0 0
        %1502 = vmatmul.mubr.bf16.gmra.mrb[0].mxu0 %v1235
        %v1503 = vpop.f32.mrb[0].mxu0
        %v1504 = vadd.f32 0.0, %v1503
        %v1505 = vpop.f32.mrb[0].mxu0
        %v1506 = vpop.f32.mrb[0].mxu0
        %v1507 = vadd.f32 0.0, %v1506
        %v1508 = vpop.f32.mrb[0].mxu0
        %1509 = vmatprep.mubr.bf16.mxu0 0
        %1510 = vmatmul.mubr.bf16.gmra.mrb[0].mxu0 %v1238
        %v1511 = vpop.f32.mrb[0].mxu0
        %v1512 = vadd.f32 0.0, %v1511
        %v1513 = vpop.f32.mrb[0].mxu0
        %v1514 = vpop.f32.mrb[0].mxu0
        %v1515 = vadd.f32 0.0, %v1514
        %v1516 = vpop.f32.mrb[0].mxu0
        %1517 = vmatprep.mubr.bf16.mxu0 0
        %1518 = vmatmul.mubr.bf16.gmra.mrb[0].mxu0 %v1241
        %v1519 = vpop.f32.mrb[0].mxu0
        %v1520 = vadd.f32 0.0, %v1519
        %v1521 = vpop.f32.mrb[0].mxu0
        %v1522 = vpop.f32.mrb[0].mxu0
        %v1523 = vadd.f32 0.0, %v1522
        %v1524 = vpop.f32.mrb[0].mxu0
        %1525 = vmatprep.mubr.bf16.mxu0 0
        %1526 = vmatmul.mubr.bf16.gmra.mrb[0].mxu0 %v1244
        %v1527 = vpop.f32.mrb[0].mxu0
        %v1528 = vadd.f32 0.0, %v1527
        %v1529 = vpop.f32.mrb[0].mxu0
        %v1530 = vpop.f32.mrb[0].mxu0
        %v1531 = vadd.f32 0.0, %v1530
        %v1532 = vpop.f32.mrb[0].mxu0
        %1533 = vmatprep.mubr.bf16.mxu0 0
        %1534 = vmatmul.mubr.bf16.gmra.mrb[0].mxu0 %v1247
        %v1535 = vpop.f32.mrb[0].mxu0
        %v1536 = vadd.f32 0.0, %v1535
        %v1537 = vpop.f32.mrb[0].mxu0
        %v1538 = vpop.f32.mrb[0].mxu0
        %v1539 = vadd.f32 0.0, %v1538
        %v1540 = vpop.f32.mrb[0].mxu0
        %1541 = vmatprep.mubr.bf16.mxu0 0
        %1542 = vmatmul.mubr.bf16.gmra.mrb[0].mxu0 %v1250
        %v1543 = vpop.f32.mrb[0].mxu0
        %v1544 = vadd.f32 0.0, %v1543
        %v1545 = vpop.f32.mrb[0].mxu0
        %v1546 = vpop.f32.mrb[0].mxu0
        %v1547 = vadd.f32 0.0, %v1546
        %v1548 = vpop.f32.mrb[0].mxu0
        %1549 = vmatprep.mubr.bf16.mxu0 0
        %1550 = vmatmul.mubr.bf16.gmra.mrb[0].mxu0 %v1253
        %v1551 = vpop.f32.mrb[0].mxu0
        %v1552 = vadd.f32 0.0, %v1551
        %v1553 = vpop.f32.mrb[0].mxu0
        %v1554 = vpop.f32.mrb[0].mxu0
        %v1555 = vadd.f32 0.0, %v1554
        %v1556 = vpop.f32.mrb[0].mxu0
        %1557 = vmatprep.mubr.bf16.mxu0 0
        %1558 = vmatmul.mubr.bf16.gmra.mrb[0].mxu0 %v1256
        %v1559 = vpop.f32.mrb[0].mxu0
        %v1560 = vadd.f32 0.0, %v1559
        %v1561 = vpop.f32.mrb[0].mxu0
        %v1562 = vpop.f32.mrb[0].mxu0
        %v1563 = vadd.f32 0.0, %v1562
        %v1564 = vpop.f32.mrb[0].mxu0
        %1565 = vmatprep.mubr.bf16.mxu0 0
        %1566 = vmatmul.mubr.bf16.gmra.mrb[0].mxu0 %v1259
        %v1567 = vpop.f32.mrb[0].mxu0
        %v1568 = vadd.f32 0.0, %v1567
        %v1569 = vpop.f32.mrb[0].mxu0
        %v1570 = vpop.f32.mrb[0].mxu0
        %v1571 = vadd.f32 0.0, %v1570
        %v1572 = vpop.f32.mrb[0].mxu0
        %1573 = vmatprep.mubr.bf16.mxu0 0
        %1574 = vmatmul.mubr.bf16.gmra.mrb[0].mxu0 %v1262
        %v1575 = vpop.f32.mrb[0].mxu0
        %v1576 = vadd.f32 0.0, %v1575
        %v1577 = vpop.f32.mrb[0].mxu0
        %v1578 = vpop.f32.mrb[0].mxu0
        %v1579 = vadd.f32 0.0, %v1578
        %v1580 = vpop.f32.mrb[0].mxu0
        %1581 = vmatprep.mubr.bf16.mxu0 0
        %1582 = vmatmul.mubr.bf16.gmra.mrb[0].mxu0 %v1265
        %v1583 = vpop.f32.mrb[0].mxu0
        %v1584 = vadd.f32 0.0, %v1583
        %v1585 = vpop.f32.mrb[0].mxu0
        %v1586 = vpop.f32.mrb[0].mxu0
        %v1587 = vadd.f32 0.0, %v1586
        %v1588 = vpop.f32.mrb[0].mxu0
        %1589 = vmatprep.mubr.bf16.mxu0 0
        %1590 = vmatmul.mubr.bf16.gmra.mrb[0].mxu0 %v1268
        %v1591 = vpop.f32.mrb[0].mxu0
        %v1592 = vadd.f32 0.0, %v1591
        %v1593 = vpop.f32.mrb[0].mxu0
        %v1594 = vpop.f32.mrb[0].mxu0
        %v1595 = vadd.f32 0.0, %v1594
        %v1596 = vpop.f32.mrb[0].mxu0
        %1597 = vmatprep.mubr.bf16.mxu0 0
        %1598 = vmatmul.mubr.bf16.gmra.mrb[0].mxu0 %v1440
        %v1599 = vpop.f32.mrb[0].mxu0
        %v1600 = vadd.f32 0.0, %v1599
        %v1601 = vpop.f32.mrb[0].mxu0
        %v1602 = vpop.f32.mrb[0].mxu0
        %v1603 = vadd.f32 0.0, %v1602
        %v1604 = vpop.f32.mrb[0].mxu0
        %1605 = vdwg.mxu0
        %v1606 = vadd.f32 %v1308, %v1480
        %v1607 = vadd.f32 %v1311, %v1483
        %v1608 = vadd.f32 %v1316, %v1488
        %v1609 = vadd.f32 %v1319, %v1491
        %v1610 = vadd.f32 %v1324, %v1496
        %v1611 = vadd.f32 %v1327, %v1499
        %v1612 = vadd.f32 %v1332, %v1504
        %v1613 = vadd.f32 %v1335, %v1507
        %v1614 = vadd.f32 %v1340, %v1512
        %v1615 = vadd.f32 %v1343, %v1515
        %v1616 = vadd.f32 %v1348, %v1520
        %v1617 = vadd.f32 %v1351, %v1523
        %v1618 = vadd.f32 %v1356, %v1528
        %v1619 = vadd.f32 %v1359, %v1531
        %v1620 = vadd.f32 %v1364, %v1536
        %v1621 = vadd.f32 %v1367, %v1539
        %v1622 = vadd.f32 %v1372, %v1544
        %v1623 = vadd.f32 %v1375, %v1547
        %v1624 = vadd.f32 %v1380, %v1552
        %v1625 = vadd.f32 %v1383, %v1555
        %v1626 = vadd.f32 %v1388, %v1560
        %v1627 = vadd.f32 %v1391, %v1563
        %v1628 = vadd.f32 %v1396, %v1568
        %v1629 = vadd.f32 %v1399, %v1571
        %v1630 = vadd.f32 %v1404, %v1576
        %v1631 = vadd.f32 %v1407, %v1579
        %v1632 = vadd.f32 %v1412, %v1584
        %v1633 = vadd.f32 %v1415, %v1587
        %v1634 = vadd.f32 %v1420, %v1592
        %v1635 = vadd.f32 %v1423, %v1595
        %v1636 = vadd.f32 %v1428, %v1600
        %v1637 = vadd.f32 %v1431, %v1603
        %s1638 = scalar_lea.vmem [#allocation5], 12
        %v1639 = vld [vmem:[%s1638] sm:$0xf]
        %v1640 = vunpack.c.l.b16 %v854
        %v1641 = vunpack.c.l.b16 %v864
        %v1642 = vpack.c.b16 %v1641, %v1640
        %v1644 = vsel %vm960, %v1642, 0
        %v1647 = vsel %vm1009, %v1639, 0
        %1649 = vmatprep.subr.bf16.mxu0 0
        %1650 = vmatpush1.bf16.msra.mxu0 %v1647
        %1651 = vmatprep.subr.bf16.mxu0 0
        %1652 = vmatpush1.bf16.msra.mxu0 0
        %1653 = vmatprep.subr.bf16.mxu0 0
        %1654 = vmatpush1.bf16.msra.mxu0 0
        %1655 = vmatprep.subr.bf16.mxu0 0
        %1656 = vmatpush1.bf16.msra.mxu0 0
        %1657 = vmatprep.subr.bf16.mxu0 0
        %1658 = vmatpush1.bf16.msra.mxu0 0
        %1659 = vmatprep.subr.bf16.mxu0 0
        %1660 = vmatpush1.bf16.msra.mxu0 0
        %1661 = vmatprep.subr.bf16.mxu0 0
        %1662 = vmatpush1.bf16.msra.mxu0 0
        %1663 = vmatprep.subr.bf16.mxu0 0
        %1664 = vmatpush1.bf16.msra.mxu0 0
        %1665 = vmatprep.subr.bf16.mxu0 0
        %1666 = vmatpush1.bf16.msra.mxu0 0
        %1667 = vmatprep.subr.bf16.mxu0 0
        %1668 = vmatpush1.bf16.msra.mxu0 0
        %1669 = vmatprep.subr.bf16.mxu0 0
        %1670 = vmatpush1.bf16.msra.mxu0 0
        %1671 = vmatprep.subr.bf16.mxu0 0
        %1672 = vmatpush1.bf16.msra.mxu0 0
        %1673 = vmatprep.subr.bf16.mxu0 0
        %1674 = vmatpush1.bf16.msra.mxu0 0
        %1675 = vmatprep.subr.bf16.mxu0 0
        %1676 = vmatpush1.bf16.msra.mxu0 0
        %1677 = vmatprep.subr.bf16.mxu0 0
        %1678 = vmatpush1.bf16.msra.mxu0 0
        %1679 = vmatprep.subr.bf16.mxu0 0
        %1680 = vmatpush1.bf16.msra.mxu0 0
        %1681 = vmatprep.mubr.bf16.mxu0 0
        %1682 = vmatmul.mubr.bf16.gmra.mrb[0].mxu0 %v965
        %v1683 = vpop.f32.mrb[0].mxu0
        %v1684 = vadd.f32 0.0, %v1683
        %v1685 = vpop.f32.mrb[0].mxu0
        %v1686 = vpop.f32.mrb[0].mxu0
        %v1687 = vadd.f32 0.0, %v1686
        %v1688 = vpop.f32.mrb[0].mxu0
        %1689 = vmatprep.mubr.bf16.mxu0 0
        %1690 = vmatmul.mubr.bf16.gmra.mrb[0].mxu0 %v968
        %v1691 = vpop.f32.mrb[0].mxu0
        %v1692 = vadd.f32 0.0, %v1691
        %v1693 = vpop.f32.mrb[0].mxu0
        %v1694 = vpop.f32.mrb[0].mxu0
        %v1695 = vadd.f32 0.0, %v1694
        %v1696 = vpop.f32.mrb[0].mxu0
        %1697 = vmatprep.mubr.bf16.mxu0 0
        %1698 = vmatmul.mubr.bf16.gmra.mrb[0].mxu0 %v971
        %v1699 = vpop.f32.mrb[0].mxu0
        %v1700 = vadd.f32 0.0, %v1699
        %v1701 = vpop.f32.mrb[0].mxu0
        %v1702 = vpop.f32.mrb[0].mxu0
        %v1703 = vadd.f32 0.0, %v1702
        %v1704 = vpop.f32.mrb[0].mxu0
        %1705 = vmatprep.mubr.bf16.mxu0 0
        %1706 = vmatmul.mubr.bf16.gmra.mrb[0].mxu0 %v974
        %v1707 = vpop.f32.mrb[0].mxu0
        %v1708 = vadd.f32 0.0, %v1707
        %v1709 = vpop.f32.mrb[0].mxu0
        %v1710 = vpop.f32.mrb[0].mxu0
        %v1711 = vadd.f32 0.0, %v1710
        %v1712 = vpop.f32.mrb[0].mxu0
        %1713 = vmatprep.mubr.bf16.mxu0 0
        %1714 = vmatmul.mubr.bf16.gmra.mrb[0].mxu0 %v977
        %v1715 = vpop.f32.mrb[0].mxu0
        %v1716 = vadd.f32 0.0, %v1715
        %v1717 = vpop.f32.mrb[0].mxu0
        %v1718 = vpop.f32.mrb[0].mxu0
        %v1719 = vadd.f32 0.0, %v1718
        %v1720 = vpop.f32.mrb[0].mxu0
        %1721 = vmatprep.mubr.bf16.mxu0 0
        %1722 = vmatmul.mubr.bf16.gmra.mrb[0].mxu0 %v980
        %v1723 = vpop.f32.mrb[0].mxu0
        %v1724 = vadd.f32 0.0, %v1723
        %v1725 = vpop.f32.mrb[0].mxu0
        %v1726 = vpop.f32.mrb[0].mxu0
        %v1727 = vadd.f32 0.0, %v1726
        %v1728 = vpop.f32.mrb[0].mxu0
        %1729 = vmatprep.mubr.bf16.mxu0 0
        %1730 = vmatmul.mubr.bf16.gmra.mrb[0].mxu0 %v983
        %v1731 = vpop.f32.mrb[0].mxu0
        %v1732 = vadd.f32 0.0, %v1731
        %v1733 = vpop.f32.mrb[0].mxu0
        %v1734 = vpop.f32.mrb[0].mxu0
        %v1735 = vadd.f32 0.0, %v1734
        %v1736 = vpop.f32.mrb[0].mxu0
        %1737 = vmatprep.mubr.bf16.mxu0 0
        %1738 = vmatmul.mubr.bf16.gmra.mrb[0].mxu0 %v986
        %v1739 = vpop.f32.mrb[0].mxu0
        %v1740 = vadd.f32 0.0, %v1739
        %v1741 = vpop.f32.mrb[0].mxu0
        %v1742 = vpop.f32.mrb[0].mxu0
        %v1743 = vadd.f32 0.0, %v1742
        %v1744 = vpop.f32.mrb[0].mxu0
        %1745 = vmatprep.mubr.bf16.mxu0 0
        %1746 = vmatmul.mubr.bf16.gmra.mrb[0].mxu0 %v989
        %v1747 = vpop.f32.mrb[0].mxu0
        %v1748 = vadd.f32 0.0, %v1747
        %v1749 = vpop.f32.mrb[0].mxu0
        %v1750 = vpop.f32.mrb[0].mxu0
        %v1751 = vadd.f32 0.0, %v1750
        %v1752 = vpop.f32.mrb[0].mxu0
        %1753 = vmatprep.mubr.bf16.mxu0 0
        %1754 = vmatmul.mubr.bf16.gmra.mrb[0].mxu0 %v992
        %v1755 = vpop.f32.mrb[0].mxu0
        %v1756 = vadd.f32 0.0, %v1755
        %v1757 = vpop.f32.mrb[0].mxu0
        %v1758 = vpop.f32.mrb[0].mxu0
        %v1759 = vadd.f32 0.0, %v1758
        %v1760 = vpop.f32.mrb[0].mxu0
        %1761 = vmatprep.mubr.bf16.mxu0 0
        %1762 = vmatmul.mubr.bf16.gmra.mrb[0].mxu0 %v995
        %v1763 = vpop.f32.mrb[0].mxu0
        %v1764 = vadd.f32 0.0, %v1763
        %v1765 = vpop.f32.mrb[0].mxu0
        %v1766 = vpop.f32.mrb[0].mxu0
        %v1767 = vadd.f32 0.0, %v1766
        %v1768 = vpop.f32.mrb[0].mxu0
        %1769 = vmatprep.mubr.bf16.mxu0 0
        %1770 = vmatmul.mubr.bf16.gmra.mrb[0].mxu0 %v998
        %v1771 = vpop.f32.mrb[0].mxu0
        %v1772 = vadd.f32 0.0, %v1771
        %v1773 = vpop.f32.mrb[0].mxu0
        %v1774 = vpop.f32.mrb[0].mxu0
        %v1775 = vadd.f32 0.0, %v1774
        %v1776 = vpop.f32.mrb[0].mxu0
        %1777 = vmatprep.mubr.bf16.mxu0 0
        %1778 = vmatmul.mubr.bf16.gmra.mrb[0].mxu0 %v1001
        %v1779 = vpop.f32.mrb[0].mxu0
        %v1780 = vadd.f32 0.0, %v1779
        %v1781 = vpop.f32.mrb[0].mxu0
        %v1782 = vpop.f32.mrb[0].mxu0
        %v1783 = vadd.f32 0.0, %v1782
        %v1784 = vpop.f32.mrb[0].mxu0
        %1785 = vmatprep.mubr.bf16.mxu0 0
        %1786 = vmatmul.mubr.bf16.gmra.mrb[0].mxu0 %v1004
        %v1787 = vpop.f32.mrb[0].mxu0
        %v1788 = vadd.f32 0.0, %v1787
        %v1789 = vpop.f32.mrb[0].mxu0
        %v1790 = vpop.f32.mrb[0].mxu0
        %v1791 = vadd.f32 0.0, %v1790
        %v1792 = vpop.f32.mrb[0].mxu0
        %1793 = vmatprep.mubr.bf16.mxu0 0
        %1794 = vmatmul.mubr.bf16.gmra.mrb[0].mxu0 %v1007
        %v1795 = vpop.f32.mrb[0].mxu0
        %v1796 = vadd.f32 0.0, %v1795
        %v1797 = vpop.f32.mrb[0].mxu0
        %v1798 = vpop.f32.mrb[0].mxu0
        %v1799 = vadd.f32 0.0, %v1798
        %v1800 = vpop.f32.mrb[0].mxu0
        %1801 = vmatprep.mubr.bf16.mxu0 0
        %1802 = vmatmul.mubr.bf16.gmra.mrb[0].mxu0 %v1644
        %v1803 = vpop.f32.mrb[0].mxu0
        %v1804 = vadd.f32 0.0, %v1803
        %v1805 = vpop.f32.mrb[0].mxu0
        %v1806 = vpop.f32.mrb[0].mxu0
        %v1807 = vadd.f32 0.0, %v1806
        %v1808 = vpop.f32.mrb[0].mxu0
        %1809 = vdwg.mxu0
        %v1810 = vadd.f32 %v1606, %v1684
        %v1811 = vadd.f32 %v1607, %v1687
        %v1812 = vadd.f32 %v1608, %v1692
        %v1813 = vadd.f32 %v1609, %v1695
        %v1814 = vadd.f32 %v1610, %v1700
        %v1815 = vadd.f32 %v1611, %v1703
        %v1816 = vadd.f32 %v1612, %v1708
        %v1817 = vadd.f32 %v1613, %v1711
        %v1818 = vadd.f32 %v1614, %v1716
        %v1819 = vadd.f32 %v1615, %v1719
        %v1820 = vadd.f32 %v1616, %v1724
        %v1821 = vadd.f32 %v1617, %v1727
        %v1822 = vadd.f32 %v1618, %v1732
        %v1823 = vadd.f32 %v1619, %v1735
        %v1824 = vadd.f32 %v1620, %v1740
        %v1825 = vadd.f32 %v1621, %v1743
        %v1826 = vadd.f32 %v1622, %v1748
        %v1827 = vadd.f32 %v1623, %v1751
        %v1828 = vadd.f32 %v1624, %v1756
        %v1829 = vadd.f32 %v1625, %v1759
        %v1830 = vadd.f32 %v1626, %v1764
        %v1831 = vadd.f32 %v1627, %v1767
        %v1832 = vadd.f32 %v1628, %v1772
        %v1833 = vadd.f32 %v1629, %v1775
        %v1834 = vadd.f32 %v1630, %v1780
        %v1835 = vadd.f32 %v1631, %v1783
        %v1836 = vadd.f32 %v1632, %v1788
        %v1837 = vadd.f32 %v1633, %v1791
        %v1838 = vadd.f32 %v1634, %v1796
        %v1839 = vadd.f32 %v1635, %v1799
        %v1840 = vadd.f32 %v1636, %v1804
        %v1841 = vadd.f32 %v1637, %v1807
        %v1842 = vsel %vm960, %v1810, 0.0
        %v1843 = vsel %vm960, %v1811, 0.0
        %v1844 = vadd.f32 %v1842, %v1843
        %v1845 = vsel %vm960, %v1812, 0.0
        %v1846 = vadd.f32 %v1844, %v1845
        %v1847 = vsel %vm960, %v1813, 0.0
        %v1848 = vadd.f32 %v1846, %v1847
        %v1849 = vsel %vm960, %v1814, 0.0
        %v1850 = vadd.f32 %v1848, %v1849
        %v1851 = vsel %vm960, %v1815, 0.0
        %v1852 = vadd.f32 %v1850, %v1851
        %v1853 = vsel %vm960, %v1816, 0.0
        %v1854 = vadd.f32 %v1852, %v1853
        %v1855 = vsel %vm960, %v1817, 0.0
        %v1856 = vadd.f32 %v1854, %v1855
        %v1857 = vsel %vm960, %v1818, 0.0
        %v1858 = vadd.f32 %v1856, %v1857
        %v1859 = vsel %vm960, %v1819, 0.0
        %v1860 = vadd.f32 %v1858, %v1859
        %v1861 = vsel %vm960, %v1820, 0.0
        %v1862 = vadd.f32 %v1860, %v1861
        %v1863 = vsel %vm960, %v1821, 0.0
        %v1864 = vadd.f32 %v1862, %v1863
        %v1865 = vsel %vm960, %v1822, 0.0
        %v1866 = vadd.f32 %v1864, %v1865
        %v1867 = vsel %vm960, %v1823, 0.0
        %v1868 = vadd.f32 %v1866, %v1867
        %v1869 = vsel %vm960, %v1824, 0.0
        %v1870 = vadd.f32 %v1868, %v1869
        %v1871 = vsel %vm960, %v1825, 0.0
        %v1872 = vadd.f32 %v1870, %v1871
        %v1873 = vsel %vm960, %v1826, 0.0
        %v1874 = vadd.f32 %v1872, %v1873
        %v1875 = vsel %vm960, %v1827, 0.0
        %v1876 = vadd.f32 %v1874, %v1875
        %v1877 = vsel %vm960, %v1828, 0.0
        %v1878 = vadd.f32 %v1876, %v1877
        %v1879 = vsel %vm960, %v1829, 0.0
        %v1880 = vadd.f32 %v1878, %v1879
        %v1881 = vsel %vm960, %v1830, 0.0
        %v1882 = vadd.f32 %v1880, %v1881
        %v1883 = vsel %vm960, %v1831, 0.0
        %v1884 = vadd.f32 %v1882, %v1883
        %v1885 = vsel %vm960, %v1832, 0.0
        %v1886 = vadd.f32 %v1884, %v1885
        %v1887 = vsel %vm960, %v1833, 0.0
        %v1888 = vadd.f32 %v1886, %v1887
        %v1889 = vsel %vm960, %v1834, 0.0
        %v1890 = vadd.f32 %v1888, %v1889
        %v1891 = vsel %vm960, %v1835, 0.0
        %v1892 = vadd.f32 %v1890, %v1891
        %v1893 = vsel %vm960, %v1836, 0.0
        %v1894 = vadd.f32 %v1892, %v1893
        %v1895 = vsel %vm960, %v1837, 0.0
        %v1896 = vadd.f32 %v1894, %v1895
        %v1897 = vsel %vm960, %v1838, 0.0
        %v1898 = vadd.f32 %v1896, %v1897
        %v1899 = vsel %vm960, %v1839, 0.0
        %v1900 = vadd.f32 %v1898, %v1899
        %v1901 = vsel %vm960, %v1840, 0.0
        %v1902 = vadd.f32 %v1900, %v1901
        %v1903 = vsel %vm960, %v1841, 0.0
        %v1904 = vadd.f32 %v1902, %v1903
        %v1905 = vrot.slane %v1904, 4
        %v1906 = vadd.f32 %v1904, %v1905
        %v1907 = vrot.slane %v1906, 2
        %v1908 = vadd.f32 %v1906, %v1907
        %v1909 = vrot.slane %v1908, 1
        %v1910 = vadd.f32 %v1908, %v1909
        %v1911 = vmul.f32 %v1810, %v1810
        %v1912 = vmul.f32 %v1811, %v1811
        %v1913 = vmul.f32 %v1812, %v1812
        %v1914 = vmul.f32 %v1813, %v1813
        %v1915 = vmul.f32 %v1814, %v1814
        %v1916 = vmul.f32 %v1815, %v1815
        %v1917 = vmul.f32 %v1816, %v1816
        %v1918 = vmul.f32 %v1817, %v1817
        %v1919 = vmul.f32 %v1818, %v1818
        %v1920 = vmul.f32 %v1819, %v1819
        %v1921 = vmul.f32 %v1820, %v1820
        %v1922 = vmul.f32 %v1821, %v1821
        %v1923 = vmul.f32 %v1822, %v1822
        %v1924 = vmul.f32 %v1823, %v1823
        %v1925 = vmul.f32 %v1824, %v1824
        %v1926 = vmul.f32 %v1825, %v1825
        %v1927 = vmul.f32 %v1826, %v1826
        %v1928 = vmul.f32 %v1827, %v1827
        %v1929 = vmul.f32 %v1828, %v1828
        %v1930 = vmul.f32 %v1829, %v1829
        %v1931 = vmul.f32 %v1830, %v1830
        %v1932 = vmul.f32 %v1831, %v1831
        %v1933 = vmul.f32 %v1832, %v1832
        %v1934 = vmul.f32 %v1833, %v1833
        %v1935 = vmul.f32 %v1834, %v1834
        %v1936 = vmul.f32 %v1835, %v1835
        %v1937 = vmul.f32 %v1836, %v1836
        %v1938 = vmul.f32 %v1837, %v1837
        %v1939 = vmul.f32 %v1838, %v1838
        %v1940 = vmul.f32 %v1839, %v1839
        %v1941 = vmul.f32 %v1840, %v1840
        %v1942 = vmul.f32 %v1841, %v1841
        %v1943 = vsel %vm960, %v1911, 0.0
        %v1944 = vsel %vm960, %v1912, 0.0
        %v1945 = vadd.f32 %v1943, %v1944
        %v1946 = vsel %vm960, %v1913, 0.0
        %v1947 = vadd.f32 %v1945, %v1946
        %v1948 = vsel %vm960, %v1914, 0.0
        %v1949 = vadd.f32 %v1947, %v1948
        %v1950 = vsel %vm960, %v1915, 0.0
        %v1951 = vadd.f32 %v1949, %v1950
        %v1952 = vsel %vm960, %v1916, 0.0
        %v1953 = vadd.f32 %v1951, %v1952
        %v1954 = vsel %vm960, %v1917, 0.0
        %v1955 = vadd.f32 %v1953, %v1954
        %v1956 = vsel %vm960, %v1918, 0.0
        %v1957 = vadd.f32 %v1955, %v1956
        %v1958 = vsel %vm960, %v1919, 0.0
        %v1959 = vadd.f32 %v1957, %v1958
        %v1960 = vsel %vm960, %v1920, 0.0
        %v1961 = vadd.f32 %v1959, %v1960
        %v1962 = vsel %vm960, %v1921, 0.0
        %v1963 = vadd.f32 %v1961, %v1962
        %v1964 = vsel %vm960, %v1922, 0.0
        %v1965 = vadd.f32 %v1963, %v1964
        %v1966 = vsel %vm960, %v1923, 0.0
        %v1967 = vadd.f32 %v1965, %v1966
        %v1968 = vsel %vm960, %v1924, 0.0
        %v1969 = vadd.f32 %v1967, %v1968
        %v1970 = vsel %vm960, %v1925, 0.0
        %v1971 = vadd.f32 %v1969, %v1970
        %v1972 = vsel %vm960, %v1926, 0.0
        %v1973 = vadd.f32 %v1971, %v1972
        %v1974 = vsel %vm960, %v1927, 0.0
        %v1975 = vadd.f32 %v1973, %v1974
        %v1976 = vsel %vm960, %v1928, 0.0
        %v1977 = vadd.f32 %v1975, %v1976
        %v1978 = vsel %vm960, %v1929, 0.0
        %v1979 = vadd.f32 %v1977, %v1978
        %v1980 = vsel %vm960, %v1930, 0.0
        %v1981 = vadd.f32 %v1979, %v1980
        %v1982 = vsel %vm960, %v1931, 0.0
        %v1983 = vadd.f32 %v1981, %v1982
        %v1984 = vsel %vm960, %v1932, 0.0
        %v1985 = vadd.f32 %v1983, %v1984
        %v1986 = vsel %vm960, %v1933, 0.0
        %v1987 = vadd.f32 %v1985, %v1986
        %v1988 = vsel %vm960, %v1934, 0.0
        %v1989 = vadd.f32 %v1987, %v1988
        %v1990 = vsel %vm960, %v1935, 0.0
        %v1991 = vadd.f32 %v1989, %v1990
        %v1992 = vsel %vm960, %v1936, 0.0
        %v1993 = vadd.f32 %v1991, %v1992
        %v1994 = vsel %vm960, %v1937, 0.0
        %v1995 = vadd.f32 %v1993, %v1994
        %v1996 = vsel %vm960, %v1938, 0.0
        %v1997 = vadd.f32 %v1995, %v1996
        %v1998 = vsel %vm960, %v1939, 0.0
        %v1999 = vadd.f32 %v1997, %v1998
        %v2000 = vsel %vm960, %v1940, 0.0
        %v2001 = vadd.f32 %v1999, %v2000
        %v2002 = vsel %vm960, %v1941, 0.0
        %v2003 = vadd.f32 %v2001, %v2002
        %v2004 = vsel %vm960, %v1942, 0.0
        %v2005 = vadd.f32 %v2003, %v2004
        %v2006 = vrot.slane %v2005, 4
        %v2007 = vadd.f32 %v2005, %v2006
        %v2008 = vrot.slane %v2007, 2
        %v2009 = vadd.f32 %v2007, %v2008
        %v2010 = vrot.slane %v2009, 1
        %v2011 = vadd.f32 %v2009, %v2010
        %v2012 = vpack.c.bf16 %v1811, %v1810
        %v2013 = vpack.c.bf16 %v1813, %v1812
        %v2014 = vpack.c.bf16 %v1815, %v1814
        %v2015 = vpack.c.bf16 %v1817, %v1816
        %v2016 = vpack.c.bf16 %v1819, %v1818
        %v2017 = vpack.c.bf16 %v1821, %v1820
        %v2018 = vpack.c.bf16 %v1823, %v1822
        %v2019 = vpack.c.bf16 %v1825, %v1824
        %v2020 = vpack.c.bf16 %v1827, %v1826
        %v2021 = vpack.c.bf16 %v1829, %v1828
        %v2022 = vpack.c.bf16 %v1831, %v1830
        %v2023 = vpack.c.bf16 %v1833, %v1832
        %v2024 = vpack.c.bf16 %v1835, %v1834
        %v2025 = vpack.c.bf16 %v1837, %v1836
        %v2026 = vpack.c.bf16 %v1839, %v1838
        %v2027 = vpack.c.bf16 %v1841, %v1840
        %v2044 = vunpack.c.l.b16 %v2012
        %v2045 = vunpack.c.h.b16 %v2012
        %v2046 = vunpack.c.l.b16 %v2013
        %v2047 = vunpack.c.h.b16 %v2013
        %v2048 = vunpack.c.l.b16 %v2014
        %v2049 = vunpack.c.h.b16 %v2014
        %v2050 = vunpack.c.l.b16 %v2015
        %v2051 = vunpack.c.h.b16 %v2015
        %v2052 = vunpack.c.l.b16 %v2016
        %v2053 = vunpack.c.h.b16 %v2016
        %v2054 = vunpack.c.l.b16 %v2017
        %v2055 = vunpack.c.h.b16 %v2017
        %v2056 = vunpack.c.l.b16 %v2018
        %v2057 = vunpack.c.h.b16 %v2018
        %v2058 = vunpack.c.l.b16 %v2019
        %v2059 = vunpack.c.h.b16 %v2019
        %v2060 = vunpack.c.l.b16 %v2020
        %v2061 = vunpack.c.h.b16 %v2020
        %v2062 = vunpack.c.l.b16 %v2021
        %v2063 = vunpack.c.h.b16 %v2021
        %v2064 = vunpack.c.l.b16 %v2022
        %v2065 = vunpack.c.h.b16 %v2022
        %v2066 = vunpack.c.l.b16 %v2023
        %v2067 = vunpack.c.h.b16 %v2023
        %v2068 = vunpack.c.l.b16 %v2024
        %v2069 = vunpack.c.h.b16 %v2024
        %v2070 = vunpack.c.l.b16 %v2025
        %v2071 = vunpack.c.h.b16 %v2025
        %v2072 = vunpack.c.l.b16 %v2026
        %v2073 = vunpack.c.h.b16 %v2026
        %v2074 = vunpack.c.l.b16 %v2027
        %v2075 = vunpack.c.h.b16 %v2027
        %v2076 = vpack.c.b16 %v2044, %v2044
        %v2077 = vpack.c.b16 %v2045, %v2045
        %v2078 = vpack.c.b16 %v2046, %v2046
        %v2079 = vpack.c.b16 %v2047, %v2047
        %v2080 = vpack.c.b16 %v2048, %v2048
        %v2081 = vpack.c.b16 %v2049, %v2049
        %v2082 = vpack.c.b16 %v2050, %v2050
        %v2083 = vpack.c.b16 %v2051, %v2051
        %v2084 = vpack.c.b16 %v2052, %v2052
        %v2085 = vpack.c.b16 %v2053, %v2053
        %v2086 = vpack.c.b16 %v2054, %v2054
        %v2087 = vpack.c.b16 %v2055, %v2055
        %v2088 = vpack.c.b16 %v2056, %v2056
        %v2089 = vpack.c.b16 %v2057, %v2057
        %v2090 = vpack.c.b16 %v2058, %v2058
        %v2091 = vpack.c.b16 %v2059, %v2059
        %v2092 = vpack.c.b16 %v2060, %v2060
        %v2093 = vpack.c.b16 %v2061, %v2061
        %v2094 = vpack.c.b16 %v2062, %v2062
        %v2095 = vpack.c.b16 %v2063, %v2063
        %v2096 = vpack.c.b16 %v2064, %v2064
        %v2097 = vpack.c.b16 %v2065, %v2065
        %v2098 = vpack.c.b16 %v2066, %v2066
        %v2099 = vpack.c.b16 %v2067, %v2067
        %v2100 = vpack.c.b16 %v2068, %v2068
        %v2101 = vpack.c.b16 %v2069, %v2069
        %v2102 = vpack.c.b16 %v2070, %v2070
        %v2103 = vpack.c.b16 %v2071, %v2071
        %v2104 = vpack.c.b16 %v2072, %v2072
        %v2105 = vpack.c.b16 %v2073, %v2073
        %v2106 = vpack.c.b16 %v2074, %v2074
        %v2107 = vpack.c.b16 %v2075, %v2075
        %vm2140 = vcmask 60416
        %2141 = vst.msk [vmem:[%s223] sm:$0xf] %vm2140, %v2076
        %2142 = vst.msk [vmem:[%s223 + $0x4] sm:$0xf] %vm2140, %v2077
        %2143 = vst.msk [vmem:[%s223 + $0x8] sm:$0xf] %vm2140, %v2078
        %2144 = vst.msk [vmem:[%s223 + $0xc] sm:$0xf] %vm2140, %v2079
        %2145 = vst.msk [vmem:[%s223 + $0x10] sm:$0xf] %vm2140, %v2080
        %2146 = vst.msk [vmem:[%s223 + $0x14] sm:$0xf] %vm2140, %v2081
        %2147 = vst.msk [vmem:[%s223 + $0x18] sm:$0xf] %vm2140, %v2082
        %2148 = vst.msk [vmem:[%s223 + $0x1c] sm:$0xf] %vm2140, %v2083
        %2149 = vst.msk [vmem:[%s223 + $0x20] sm:$0xf] %vm2140, %v2084
        %2150 = vst.msk [vmem:[%s223 + $0x24] sm:$0xf] %vm2140, %v2085
        %2151 = vst.msk [vmem:[%s223 + $0x28] sm:$0xf] %vm2140, %v2086
        %2152 = vst.msk [vmem:[%s223 + $0x2c] sm:$0xf] %vm2140, %v2087
        %2153 = vst.msk [vmem:[%s223 + $0x30] sm:$0xf] %vm2140, %v2088
        %2154 = vst.msk [vmem:[%s223 + $0x34] sm:$0xf] %vm2140, %v2089
        %2155 = vst.msk [vmem:[%s223 + $0x38] sm:$0xf] %vm2140, %v2090
        %2156 = vst.msk [vmem:[%s223 + $0x3c] sm:$0xf] %vm2140, %v2091
        %2157 = vst.msk [vmem:[%s223 + $0x40] sm:$0xf] %vm2140, %v2092
        %2158 = vst.msk [vmem:[%s223 + $0x44] sm:$0xf] %vm2140, %v2093
        %2159 = vst.msk [vmem:[%s223 + $0x48] sm:$0xf] %vm2140, %v2094
        %2160 = vst.msk [vmem:[%s223 + $0x4c] sm:$0xf] %vm2140, %v2095
        %2161 = vst.msk [vmem:[%s223 + $0x50] sm:$0xf] %vm2140, %v2096
        %2162 = vst.msk [vmem:[%s223 + $0x54] sm:$0xf] %vm2140, %v2097
        %2163 = vst.msk [vmem:[%s223 + $0x58] sm:$0xf] %vm2140, %v2098
        %2164 = vst.msk [vmem:[%s223 + $0x5c] sm:$0xf] %vm2140, %v2099
        %2165 = vst.msk [vmem:[%s223 + $0x60] sm:$0xf] %vm2140, %v2100
        %2166 = vst.msk [vmem:[%s223 + $0x64] sm:$0xf] %vm2140, %v2101
        %2167 = vst.msk [vmem:[%s223 + $0x68] sm:$0xf] %vm2140, %v2102
        %2168 = vst.msk [vmem:[%s223 + $0x6c] sm:$0xf] %vm2140, %v2103
        %2169 = vst.msk [vmem:[%s223 + $0x70] sm:$0xf] %vm2140, %v2104
        %2170 = vst.msk [vmem:[%s223 + $0x74] sm:$0xf] %vm2140, %v2105
        %2171 = vst.msk [vmem:[%s223 + $0x78] sm:$0xf] %vm2140, %v2106
        %2172 = vst.msk [vmem:[%s223 + $0x7c] sm:$0xf] %vm2140, %v2107
        %s2173 = scalar_lea.vmem [#allocation5], 16
        %v2174 = vld [vmem:[%s2173] sm:$0xf]
        %s2175 = scalar_lea.vmem [#allocation5], 20
        %v2176 = vld [vmem:[%s2175] sm:$0xf]
        %v2177 = vunpack.c.l.b16 %v732
        %v2178 = vunpack.c.l.b16 %v735
        %v2179 = vunpack.c.l.b16 %v739
        %v2180 = vunpack.c.l.b16 %v742
        %v2181 = vunpack.c.l.b16 %v746
        %v2182 = vunpack.c.l.b16 %v749
        %v2183 = vunpack.c.l.b16 %v753
        %v2184 = vunpack.c.l.b16 %v756
        %v2185 = vunpack.c.l.b16 %v760
        %v2186 = vunpack.c.l.b16 %v763
        %v2187 = vunpack.c.l.b16 %v767
        %v2188 = vunpack.c.l.b16 %v770
        %v2189 = vunpack.c.l.b16 %v774
        %v2190 = vunpack.c.l.b16 %v777
        %v2191 = vunpack.c.l.b16 %v781
        %v2192 = vunpack.c.l.b16 %v784
        %v2193 = vunpack.c.l.b16 %v788
        %v2194 = vunpack.c.l.b16 %v791
        %v2195 = vunpack.c.l.b16 %v795
        %v2196 = vunpack.c.l.b16 %v798
        %v2197 = vunpack.c.l.b16 %v802
        %v2198 = vunpack.c.l.b16 %v805
        %v2199 = vunpack.c.l.b16 %v809
        %v2200 = vunpack.c.l.b16 %v812
        %v2201 = vunpack.c.l.b16 %v816
        %v2202 = vunpack.c.l.b16 %v819
        %v2203 = vunpack.c.l.b16 %v823
        %v2204 = vunpack.c.l.b16 %v826
        %v2205 = vunpack.c.l.b16 %v830
        %v2206 = vunpack.c.l.b16 %v833
        %v2207 = vunpack.c.l.b16 %v837
        %v2208 = vunpack.c.l.b16 %v840
        %v2209 = vpack.c.b16 %v2178, %v2177
        %v2210 = vpack.c.b16 %v2180, %v2179
        %v2211 = vpack.c.b16 %v2182, %v2181
        %v2212 = vpack.c.b16 %v2184, %v2183
        %v2213 = vpack.c.b16 %v2186, %v2185
        %v2214 = vpack.c.b16 %v2188, %v2187
        %v2215 = vpack.c.b16 %v2190, %v2189
        %v2216 = vpack.c.b16 %v2192, %v2191
        %v2217 = vpack.c.b16 %v2194, %v2193
        %v2218 = vpack.c.b16 %v2196, %v2195
        %v2219 = vpack.c.b16 %v2198, %v2197
        %v2220 = vpack.c.b16 %v2200, %v2199
        %v2221 = vpack.c.b16 %v2202, %v2201
        %v2222 = vpack.c.b16 %v2204, %v2203
        %v2223 = vpack.c.b16 %v2206, %v2205
        %v2224 = vpack.c.b16 %v2208, %v2207
        %v2226 = vsel %vm960, %v2209, 0
        %v2229 = vsel %vm960, %v2210, 0
        %v2232 = vsel %vm960, %v2211, 0
        %v2235 = vsel %vm960, %v2212, 0
        %v2238 = vsel %vm960, %v2213, 0
        %v2241 = vsel %vm960, %v2214, 0
        %v2244 = vsel %vm960, %v2215, 0
        %v2247 = vsel %vm960, %v2216, 0
        %v2250 = vsel %vm960, %v2217, 0
        %v2253 = vsel %vm960, %v2218, 0
        %v2256 = vsel %vm960, %v2219, 0
        %v2259 = vsel %vm960, %v2220, 0
        %v2262 = vsel %vm960, %v2221, 0
        %v2265 = vsel %vm960, %v2222, 0
        %v2268 = vsel %vm960, %v2223, 0
        %v2271 = vsel %vm960, %v2224, 0
        %v2274 = vsel %vm1009, %v2176, 0
        %2276 = vmatprep.subr.bf16.mxu0 0
        %2277 = vmatpush1.bf16.msra.mxu0 %v2274
        %2278 = vmatprep.subr.bf16.mxu0 0
        %2279 = vmatpush1.bf16.msra.mxu0 0
        %2280 = vmatprep.subr.bf16.mxu0 0
        %2281 = vmatpush1.bf16.msra.mxu0 0
        %2282 = vmatprep.subr.bf16.mxu0 0
        %2283 = vmatpush1.bf16.msra.mxu0 0
        %2284 = vmatprep.subr.bf16.mxu0 0
        %2285 = vmatpush1.bf16.msra.mxu0 0
        %2286 = vmatprep.subr.bf16.mxu0 0
        %2287 = vmatpush1.bf16.msra.mxu0 0
        %2288 = vmatprep.subr.bf16.mxu0 0
        %2289 = vmatpush1.bf16.msra.mxu0 0
        %2290 = vmatprep.subr.bf16.mxu0 0
        %2291 = vmatpush1.bf16.msra.mxu0 0
        %2292 = vmatprep.subr.bf16.mxu0 0
        %2293 = vmatpush1.bf16.msra.mxu0 0
        %2294 = vmatprep.subr.bf16.mxu0 0
        %2295 = vmatpush1.bf16.msra.mxu0 0
        %2296 = vmatprep.subr.bf16.mxu0 0
        %2297 = vmatpush1.bf16.msra.mxu0 0
        %2298 = vmatprep.subr.bf16.mxu0 0
        %2299 = vmatpush1.bf16.msra.mxu0 0
        %2300 = vmatprep.subr.bf16.mxu0 0
        %2301 = vmatpush1.bf16.msra.mxu0 0
        %2302 = vmatprep.subr.bf16.mxu0 0
        %2303 = vmatpush1.bf16.msra.mxu0 0
        %2304 = vmatprep.subr.bf16.mxu0 0
        %2305 = vmatpush1.bf16.msra.mxu0 0
        %2306 = vmatprep.subr.bf16.mxu0 0
        %2307 = vmatpush1.bf16.msra.mxu0 0
        %2308 = vmatprep.mubr.bf16.mxu0 0
        %2309 = vmatmul.mubr.bf16.gmra.mrb[0].mxu0 %v2226
        %v2310 = vpop.f32.mrb[0].mxu0
        %v2311 = vadd.f32 0.0, %v2310
        %v2312 = vpop.f32.mrb[0].mxu0
        %v2313 = vpop.f32.mrb[0].mxu0
        %v2314 = vadd.f32 0.0, %v2313
        %v2315 = vpop.f32.mrb[0].mxu0
        %2316 = vmatprep.mubr.bf16.mxu0 0
        %2317 = vmatmul.mubr.bf16.gmra.mrb[0].mxu0 %v2229
        %v2318 = vpop.f32.mrb[0].mxu0
        %v2319 = vadd.f32 0.0, %v2318
        %v2320 = vpop.f32.mrb[0].mxu0
        %v2321 = vpop.f32.mrb[0].mxu0
        %v2322 = vadd.f32 0.0, %v2321
        %v2323 = vpop.f32.mrb[0].mxu0
        %2324 = vmatprep.mubr.bf16.mxu0 0
        %2325 = vmatmul.mubr.bf16.gmra.mrb[0].mxu0 %v2232
        %v2326 = vpop.f32.mrb[0].mxu0
        %v2327 = vadd.f32 0.0, %v2326
        %v2328 = vpop.f32.mrb[0].mxu0
        %v2329 = vpop.f32.mrb[0].mxu0
        %v2330 = vadd.f32 0.0, %v2329
        %v2331 = vpop.f32.mrb[0].mxu0
        %2332 = vmatprep.mubr.bf16.mxu0 0
        %2333 = vmatmul.mubr.bf16.gmra.mrb[0].mxu0 %v2235
        %v2334 = vpop.f32.mrb[0].mxu0
        %v2335 = vadd.f32 0.0, %v2334
        %v2336 = vpop.f32.mrb[0].mxu0
        %v2337 = vpop.f32.mrb[0].mxu0
        %v2338 = vadd.f32 0.0, %v2337
        %v2339 = vpop.f32.mrb[0].mxu0
        %2340 = vmatprep.mubr.bf16.mxu0 0
        %2341 = vmatmul.mubr.bf16.gmra.mrb[0].mxu0 %v2238
        %v2342 = vpop.f32.mrb[0].mxu0
        %v2343 = vadd.f32 0.0, %v2342
        %v2344 = vpop.f32.mrb[0].mxu0
        %v2345 = vpop.f32.mrb[0].mxu0
        %v2346 = vadd.f32 0.0, %v2345
        %v2347 = vpop.f32.mrb[0].mxu0
        %2348 = vmatprep.mubr.bf16.mxu0 0
        %2349 = vmatmul.mubr.bf16.gmra.mrb[0].mxu0 %v2241
        %v2350 = vpop.f32.mrb[0].mxu0
        %v2351 = vadd.f32 0.0, %v2350
        %v2352 = vpop.f32.mrb[0].mxu0
        %v2353 = vpop.f32.mrb[0].mxu0
        %v2354 = vadd.f32 0.0, %v2353
        %v2355 = vpop.f32.mrb[0].mxu0
        %2356 = vmatprep.mubr.bf16.mxu0 0
        %2357 = vmatmul.mubr.bf16.gmra.mrb[0].mxu0 %v2244
        %v2358 = vpop.f32.mrb[0].mxu0
        %v2359 = vadd.f32 0.0, %v2358
        %v2360 = vpop.f32.mrb[0].mxu0
        %v2361 = vpop.f32.mrb[0].mxu0
        %v2362 = vadd.f32 0.0, %v2361
        %v2363 = vpop.f32.mrb[0].mxu0
        %2364 = vmatprep.mubr.bf16.mxu0 0
        %2365 = vmatmul.mubr.bf16.gmra.mrb[0].mxu0 %v2247
        %v2366 = vpop.f32.mrb[0].mxu0
        %v2367 = vadd.f32 0.0, %v2366
        %v2368 = vpop.f32.mrb[0].mxu0
        %v2369 = vpop.f32.mrb[0].mxu0
        %v2370 = vadd.f32 0.0, %v2369
        %v2371 = vpop.f32.mrb[0].mxu0
        %2372 = vmatprep.mubr.bf16.mxu0 0
        %2373 = vmatmul.mubr.bf16.gmra.mrb[0].mxu0 %v2250
        %v2374 = vpop.f32.mrb[0].mxu0
        %v2375 = vadd.f32 0.0, %v2374
        %v2376 = vpop.f32.mrb[0].mxu0
        %v2377 = vpop.f32.mrb[0].mxu0
        %v2378 = vadd.f32 0.0, %v2377
        %v2379 = vpop.f32.mrb[0].mxu0
        %2380 = vmatprep.mubr.bf16.mxu0 0
        %2381 = vmatmul.mubr.bf16.gmra.mrb[0].mxu0 %v2253
        %v2382 = vpop.f32.mrb[0].mxu0
        %v2383 = vadd.f32 0.0, %v2382
        %v2384 = vpop.f32.mrb[0].mxu0
        %v2385 = vpop.f32.mrb[0].mxu0
        %v2386 = vadd.f32 0.0, %v2385
        %v2387 = vpop.f32.mrb[0].mxu0
        %2388 = vmatprep.mubr.bf16.mxu0 0
        %2389 = vmatmul.mubr.bf16.gmra.mrb[0].mxu0 %v2256
        %v2390 = vpop.f32.mrb[0].mxu0
        %v2391 = vadd.f32 0.0, %v2390
        %v2392 = vpop.f32.mrb[0].mxu0
        %v2393 = vpop.f32.mrb[0].mxu0
        %v2394 = vadd.f32 0.0, %v2393
        %v2395 = vpop.f32.mrb[0].mxu0
        %2396 = vmatprep.mubr.bf16.mxu0 0
        %2397 = vmatmul.mubr.bf16.gmra.mrb[0].mxu0 %v2259
        %v2398 = vpop.f32.mrb[0].mxu0
        %v2399 = vadd.f32 0.0, %v2398
        %v2400 = vpop.f32.mrb[0].mxu0
        %v2401 = vpop.f32.mrb[0].mxu0
        %v2402 = vadd.f32 0.0, %v2401
        %v2403 = vpop.f32.mrb[0].mxu0
        %2404 = vmatprep.mubr.bf16.mxu0 0
        %2405 = vmatmul.mubr.bf16.gmra.mrb[0].mxu0 %v2262
        %v2406 = vpop.f32.mrb[0].mxu0
        %v2407 = vadd.f32 0.0, %v2406
        %v2408 = vpop.f32.mrb[0].mxu0
        %v2409 = vpop.f32.mrb[0].mxu0
        %v2410 = vadd.f32 0.0, %v2409
        %v2411 = vpop.f32.mrb[0].mxu0
        %2412 = vmatprep.mubr.bf16.mxu0 0
        %2413 = vmatmul.mubr.bf16.gmra.mrb[0].mxu0 %v2265
        %v2414 = vpop.f32.mrb[0].mxu0
        %v2415 = vadd.f32 0.0, %v2414
        %v2416 = vpop.f32.mrb[0].mxu0
        %v2417 = vpop.f32.mrb[0].mxu0
        %v2418 = vadd.f32 0.0, %v2417
        %v2419 = vpop.f32.mrb[0].mxu0
        %2420 = vmatprep.mubr.bf16.mxu0 0
        %2421 = vmatmul.mubr.bf16.gmra.mrb[0].mxu0 %v2268
        %v2422 = vpop.f32.mrb[0].mxu0
        %v2423 = vadd.f32 0.0, %v2422
        %v2424 = vpop.f32.mrb[0].mxu0
        %v2425 = vpop.f32.mrb[0].mxu0
        %v2426 = vadd.f32 0.0, %v2425
        %v2427 = vpop.f32.mrb[0].mxu0
        %2428 = vmatprep.mubr.bf16.mxu0 0
        %2429 = vmatmul.mubr.bf16.gmra.mrb[0].mxu0 %v2271
        %v2430 = vpop.f32.mrb[0].mxu0
        %v2431 = vadd.f32 0.0, %v2430
        %v2432 = vpop.f32.mrb[0].mxu0
        %v2433 = vpop.f32.mrb[0].mxu0
        %v2434 = vadd.f32 0.0, %v2433
        %v2435 = vpop.f32.mrb[0].mxu0
        %2436 = vdwg.mxu0
        %v2438 = vsel %vm1009, %v2174, 0
        %2440 = vmatprep.subr.bf16.mxu0 0
        %2441 = vmatpush1.bf16.msra.mxu0 %v2438
        %2442 = vmatprep.subr.bf16.mxu0 0
        %2443 = vmatpush1.bf16.msra.mxu0 0
        %2444 = vmatprep.subr.bf16.mxu0 0
        %2445 = vmatpush1.bf16.msra.mxu0 0
        %2446 = vmatprep.subr.bf16.mxu0 0
        %2447 = vmatpush1.bf16.msra.mxu0 0
        %2448 = vmatprep.subr.bf16.mxu0 0
        %2449 = vmatpush1.bf16.msra.mxu0 0
        %2450 = vmatprep.subr.bf16.mxu0 0
        %2451 = vmatpush1.bf16.msra.mxu0 0
        %2452 = vmatprep.subr.bf16.mxu0 0
        %2453 = vmatpush1.bf16.msra.mxu0 0
        %2454 = vmatprep.subr.bf16.mxu0 0
        %2455 = vmatpush1.bf16.msra.mxu0 0
        %2456 = vmatprep.subr.bf16.mxu0 0
        %2457 = vmatpush1.bf16.msra.mxu0 0
        %2458 = vmatprep.subr.bf16.mxu0 0
        %2459 = vmatpush1.bf16.msra.mxu0 0
        %2460 = vmatprep.subr.bf16.mxu0 0
        %2461 = vmatpush1.bf16.msra.mxu0 0
        %2462 = vmatprep.subr.bf16.mxu0 0
        %2463 = vmatpush1.bf16.msra.mxu0 0
        %2464 = vmatprep.subr.bf16.mxu0 0
        %2465 = vmatpush1.bf16.msra.mxu0 0
        %2466 = vmatprep.subr.bf16.mxu0 0
        %2467 = vmatpush1.bf16.msra.mxu0 0
        %2468 = vmatprep.subr.bf16.mxu0 0
        %2469 = vmatpush1.bf16.msra.mxu0 0
        %2470 = vmatprep.subr.bf16.mxu0 0
        %2471 = vmatpush1.bf16.msra.mxu0 0
        %2472 = vmatprep.mubr.bf16.mxu0 0
        %2473 = vmatmul.mubr.bf16.gmra.mrb[0].mxu0 %v962
        %v2474 = vpop.f32.mrb[0].mxu0
        %v2475 = vadd.f32 %v2311, %v2474
        %v2476 = vpop.f32.mrb[0].mxu0
        %v2477 = vpop.f32.mrb[0].mxu0
        %v2478 = vadd.f32 %v2314, %v2477
        %v2479 = vpop.f32.mrb[0].mxu0
        %2480 = vmatprep.mubr.bf16.mxu0 0
        %2481 = vmatmul.mubr.bf16.gmra.mrb[0].mxu0 %v965
        %v2482 = vpop.f32.mrb[0].mxu0
        %v2483 = vadd.f32 %v2319, %v2482
        %v2484 = vpop.f32.mrb[0].mxu0
        %v2485 = vpop.f32.mrb[0].mxu0
        %v2486 = vadd.f32 %v2322, %v2485
        %v2487 = vpop.f32.mrb[0].mxu0
        %2488 = vmatprep.mubr.bf16.mxu0 0
        %2489 = vmatmul.mubr.bf16.gmra.mrb[0].mxu0 %v968
        %v2490 = vpop.f32.mrb[0].mxu0
        %v2491 = vadd.f32 %v2327, %v2490
        %v2492 = vpop.f32.mrb[0].mxu0
        %v2493 = vpop.f32.mrb[0].mxu0
        %v2494 = vadd.f32 %v2330, %v2493
        %v2495 = vpop.f32.mrb[0].mxu0
        %2496 = vmatprep.mubr.bf16.mxu0 0
        %2497 = vmatmul.mubr.bf16.gmra.mrb[0].mxu0 %v971
        %v2498 = vpop.f32.mrb[0].mxu0
        %v2499 = vadd.f32 %v2335, %v2498
        %v2500 = vpop.f32.mrb[0].mxu0
        %v2501 = vpop.f32.mrb[0].mxu0
        %v2502 = vadd.f32 %v2338, %v2501
        %v2503 = vpop.f32.mrb[0].mxu0
        %2504 = vmatprep.mubr.bf16.mxu0 0
        %2505 = vmatmul.mubr.bf16.gmra.mrb[0].mxu0 %v974
        %v2506 = vpop.f32.mrb[0].mxu0
        %v2507 = vadd.f32 %v2343, %v2506
        %v2508 = vpop.f32.mrb[0].mxu0
        %v2509 = vpop.f32.mrb[0].mxu0
        %v2510 = vadd.f32 %v2346, %v2509
        %v2511 = vpop.f32.mrb[0].mxu0
        %2512 = vmatprep.mubr.bf16.mxu0 0
        %2513 = vmatmul.mubr.bf16.gmra.mrb[0].mxu0 %v977
        %v2514 = vpop.f32.mrb[0].mxu0
        %v2515 = vadd.f32 %v2351, %v2514
        %v2516 = vpop.f32.mrb[0].mxu0
        %v2517 = vpop.f32.mrb[0].mxu0
        %v2518 = vadd.f32 %v2354, %v2517
        %v2519 = vpop.f32.mrb[0].mxu0
        %2520 = vmatprep.mubr.bf16.mxu0 0
        %2521 = vmatmul.mubr.bf16.gmra.mrb[0].mxu0 %v980
        %v2522 = vpop.f32.mrb[0].mxu0
        %v2523 = vadd.f32 %v2359, %v2522
        %v2524 = vpop.f32.mrb[0].mxu0
        %v2525 = vpop.f32.mrb[0].mxu0
        %v2526 = vadd.f32 %v2362, %v2525
        %v2527 = vpop.f32.mrb[0].mxu0
        %2528 = vmatprep.mubr.bf16.mxu0 0
        %2529 = vmatmul.mubr.bf16.gmra.mrb[0].mxu0 %v983
        %v2530 = vpop.f32.mrb[0].mxu0
        %v2531 = vadd.f32 %v2367, %v2530
        %v2532 = vpop.f32.mrb[0].mxu0
        %v2533 = vpop.f32.mrb[0].mxu0
        %v2534 = vadd.f32 %v2370, %v2533
        %v2535 = vpop.f32.mrb[0].mxu0
        %2536 = vmatprep.mubr.bf16.mxu0 0
        %2537 = vmatmul.mubr.bf16.gmra.mrb[0].mxu0 %v986
        %v2538 = vpop.f32.mrb[0].mxu0
        %v2539 = vadd.f32 %v2375, %v2538
        %v2540 = vpop.f32.mrb[0].mxu0
        %v2541 = vpop.f32.mrb[0].mxu0
        %v2542 = vadd.f32 %v2378, %v2541
        %v2543 = vpop.f32.mrb[0].mxu0
        %2544 = vmatprep.mubr.bf16.mxu0 0
        %2545 = vmatmul.mubr.bf16.gmra.mrb[0].mxu0 %v989
        %v2546 = vpop.f32.mrb[0].mxu0
        %v2547 = vadd.f32 %v2383, %v2546
        %v2548 = vpop.f32.mrb[0].mxu0
        %v2549 = vpop.f32.mrb[0].mxu0
        %v2550 = vadd.f32 %v2386, %v2549
        %v2551 = vpop.f32.mrb[0].mxu0
        %2552 = vmatprep.mubr.bf16.mxu0 0
        %2553 = vmatmul.mubr.bf16.gmra.mrb[0].mxu0 %v992
        %v2554 = vpop.f32.mrb[0].mxu0
        %v2555 = vadd.f32 %v2391, %v2554
        %v2556 = vpop.f32.mrb[0].mxu0
        %v2557 = vpop.f32.mrb[0].mxu0
        %v2558 = vadd.f32 %v2394, %v2557
        %v2559 = vpop.f32.mrb[0].mxu0
        %2560 = vmatprep.mubr.bf16.mxu0 0
        %2561 = vmatmul.mubr.bf16.gmra.mrb[0].mxu0 %v995
        %v2562 = vpop.f32.mrb[0].mxu0
        %v2563 = vadd.f32 %v2399, %v2562
        %v2564 = vpop.f32.mrb[0].mxu0
        %v2565 = vpop.f32.mrb[0].mxu0
        %v2566 = vadd.f32 %v2402, %v2565
        %v2567 = vpop.f32.mrb[0].mxu0
        %2568 = vmatprep.mubr.bf16.mxu0 0
        %2569 = vmatmul.mubr.bf16.gmra.mrb[0].mxu0 %v998
        %v2570 = vpop.f32.mrb[0].mxu0
        %v2571 = vadd.f32 %v2407, %v2570
        %v2572 = vpop.f32.mrb[0].mxu0
        %v2573 = vpop.f32.mrb[0].mxu0
        %v2574 = vadd.f32 %v2410, %v2573
        %v2575 = vpop.f32.mrb[0].mxu0
        %2576 = vmatprep.mubr.bf16.mxu0 0
        %2577 = vmatmul.mubr.bf16.gmra.mrb[0].mxu0 %v1001
        %v2578 = vpop.f32.mrb[0].mxu0
        %v2579 = vadd.f32 %v2415, %v2578
        %v2580 = vpop.f32.mrb[0].mxu0
        %v2581 = vpop.f32.mrb[0].mxu0
        %v2582 = vadd.f32 %v2418, %v2581
        %v2583 = vpop.f32.mrb[0].mxu0
        %2584 = vmatprep.mubr.bf16.mxu0 0
        %2585 = vmatmul.mubr.bf16.gmra.mrb[0].mxu0 %v1004
        %v2586 = vpop.f32.mrb[0].mxu0
        %v2587 = vadd.f32 %v2423, %v2586
        %v2588 = vpop.f32.mrb[0].mxu0
        %v2589 = vpop.f32.mrb[0].mxu0
        %v2590 = vadd.f32 %v2426, %v2589
        %v2591 = vpop.f32.mrb[0].mxu0
        %2592 = vmatprep.mubr.bf16.mxu0 0
        %2593 = vmatmul.mubr.bf16.gmra.mrb[0].mxu0 %v1007
        %v2594 = vpop.f32.mrb[0].mxu0
        %v2595 = vadd.f32 %v2431, %v2594
        %v2596 = vpop.f32.mrb[0].mxu0
        %v2597 = vpop.f32.mrb[0].mxu0
        %v2598 = vadd.f32 %v2434, %v2597
        %v2599 = vpop.f32.mrb[0].mxu0
        %2600 = vdwg.mxu0
        %s2601 = scalar_lea.vmem [#allocation5], 24
        %v2602 = vld [vmem:[%s2601] sm:$0xf]
        %v2604 = vsel %vm1009, %v2602, 0
        %2606 = vmatprep.subr.bf16.mxu0 0
        %2607 = vmatpush1.bf16.msra.mxu0 %v2604
        %2608 = vmatprep.subr.bf16.mxu0 0
        %2609 = vmatpush1.bf16.msra.mxu0 0
        %2610 = vmatprep.subr.bf16.mxu0 0
        %2611 = vmatpush1.bf16.msra.mxu0 0
        %2612 = vmatprep.subr.bf16.mxu0 0
        %2613 = vmatpush1.bf16.msra.mxu0 0
        %2614 = vmatprep.subr.bf16.mxu0 0
        %2615 = vmatpush1.bf16.msra.mxu0 0
        %2616 = vmatprep.subr.bf16.mxu0 0
        %2617 = vmatpush1.bf16.msra.mxu0 0
        %2618 = vmatprep.subr.bf16.mxu0 0
        %2619 = vmatpush1.bf16.msra.mxu0 0
        %2620 = vmatprep.subr.bf16.mxu0 0
        %2621 = vmatpush1.bf16.msra.mxu0 0
        %2622 = vmatprep.subr.bf16.mxu0 0
        %2623 = vmatpush1.bf16.msra.mxu0 0
        %2624 = vmatprep.subr.bf16.mxu0 0
        %2625 = vmatpush1.bf16.msra.mxu0 0
        %2626 = vmatprep.subr.bf16.mxu0 0
        %2627 = vmatpush1.bf16.msra.mxu0 0
        %2628 = vmatprep.subr.bf16.mxu0 0
        %2629 = vmatpush1.bf16.msra.mxu0 0
        %2630 = vmatprep.subr.bf16.mxu0 0
        %2631 = vmatpush1.bf16.msra.mxu0 0
        %2632 = vmatprep.subr.bf16.mxu0 0
        %2633 = vmatpush1.bf16.msra.mxu0 0
        %2634 = vmatprep.subr.bf16.mxu0 0
        %2635 = vmatpush1.bf16.msra.mxu0 0
        %2636 = vmatprep.subr.bf16.mxu0 0
        %2637 = vmatpush1.bf16.msra.mxu0 0
        %2638 = vmatprep.mubr.bf16.mxu0 0
        %2639 = vmatmul.mubr.bf16.gmra.mrb[0].mxu0 %v965
        %v2640 = vpop.f32.mrb[0].mxu0
        %v2641 = vadd.f32 0.0, %v2640
        %v2642 = vpop.f32.mrb[0].mxu0
        %v2643 = vpop.f32.mrb[0].mxu0
        %v2644 = vadd.f32 0.0, %v2643
        %v2645 = vpop.f32.mrb[0].mxu0
        %2646 = vmatprep.mubr.bf16.mxu0 0
        %2647 = vmatmul.mubr.bf16.gmra.mrb[0].mxu0 %v968
        %v2648 = vpop.f32.mrb[0].mxu0
        %v2649 = vadd.f32 0.0, %v2648
        %v2650 = vpop.f32.mrb[0].mxu0
        %v2651 = vpop.f32.mrb[0].mxu0
        %v2652 = vadd.f32 0.0, %v2651
        %v2653 = vpop.f32.mrb[0].mxu0
        %2654 = vmatprep.mubr.bf16.mxu0 0
        %2655 = vmatmul.mubr.bf16.gmra.mrb[0].mxu0 %v971
        %v2656 = vpop.f32.mrb[0].mxu0
        %v2657 = vadd.f32 0.0, %v2656
        %v2658 = vpop.f32.mrb[0].mxu0
        %v2659 = vpop.f32.mrb[0].mxu0
        %v2660 = vadd.f32 0.0, %v2659
        %v2661 = vpop.f32.mrb[0].mxu0
        %2662 = vmatprep.mubr.bf16.mxu0 0
        %2663 = vmatmul.mubr.bf16.gmra.mrb[0].mxu0 %v974
        %v2664 = vpop.f32.mrb[0].mxu0
        %v2665 = vadd.f32 0.0, %v2664
        %v2666 = vpop.f32.mrb[0].mxu0
        %v2667 = vpop.f32.mrb[0].mxu0
        %v2668 = vadd.f32 0.0, %v2667
        %v2669 = vpop.f32.mrb[0].mxu0
        %2670 = vmatprep.mubr.bf16.mxu0 0
        %2671 = vmatmul.mubr.bf16.gmra.mrb[0].mxu0 %v977
        %v2672 = vpop.f32.mrb[0].mxu0
        %v2673 = vadd.f32 0.0, %v2672
        %v2674 = vpop.f32.mrb[0].mxu0
        %v2675 = vpop.f32.mrb[0].mxu0
        %v2676 = vadd.f32 0.0, %v2675
        %v2677 = vpop.f32.mrb[0].mxu0
        %2678 = vmatprep.mubr.bf16.mxu0 0
        %2679 = vmatmul.mubr.bf16.gmra.mrb[0].mxu0 %v980
        %v2680 = vpop.f32.mrb[0].mxu0
        %v2681 = vadd.f32 0.0, %v2680
        %v2682 = vpop.f32.mrb[0].mxu0
        %v2683 = vpop.f32.mrb[0].mxu0
        %v2684 = vadd.f32 0.0, %v2683
        %v2685 = vpop.f32.mrb[0].mxu0
        %2686 = vmatprep.mubr.bf16.mxu0 0
        %2687 = vmatmul.mubr.bf16.gmra.mrb[0].mxu0 %v983
        %v2688 = vpop.f32.mrb[0].mxu0
        %v2689 = vadd.f32 0.0, %v2688
        %v2690 = vpop.f32.mrb[0].mxu0
        %v2691 = vpop.f32.mrb[0].mxu0
        %v2692 = vadd.f32 0.0, %v2691
        %v2693 = vpop.f32.mrb[0].mxu0
        %2694 = vmatprep.mubr.bf16.mxu0 0
        %2695 = vmatmul.mubr.bf16.gmra.mrb[0].mxu0 %v986
        %v2696 = vpop.f32.mrb[0].mxu0
        %v2697 = vadd.f32 0.0, %v2696
        %v2698 = vpop.f32.mrb[0].mxu0
        %v2699 = vpop.f32.mrb[0].mxu0
        %v2700 = vadd.f32 0.0, %v2699
        %v2701 = vpop.f32.mrb[0].mxu0
        %2702 = vmatprep.mubr.bf16.mxu0 0
        %2703 = vmatmul.mubr.bf16.gmra.mrb[0].mxu0 %v989
        %v2704 = vpop.f32.mrb[0].mxu0
        %v2705 = vadd.f32 0.0, %v2704
        %v2706 = vpop.f32.mrb[0].mxu0
        %v2707 = vpop.f32.mrb[0].mxu0
        %v2708 = vadd.f32 0.0, %v2707
        %v2709 = vpop.f32.mrb[0].mxu0
        %2710 = vmatprep.mubr.bf16.mxu0 0
        %2711 = vmatmul.mubr.bf16.gmra.mrb[0].mxu0 %v992
        %v2712 = vpop.f32.mrb[0].mxu0
        %v2713 = vadd.f32 0.0, %v2712
        %v2714 = vpop.f32.mrb[0].mxu0
        %v2715 = vpop.f32.mrb[0].mxu0
        %v2716 = vadd.f32 0.0, %v2715
        %v2717 = vpop.f32.mrb[0].mxu0
        %2718 = vmatprep.mubr.bf16.mxu0 0
        %2719 = vmatmul.mubr.bf16.gmra.mrb[0].mxu0 %v995
        %v2720 = vpop.f32.mrb[0].mxu0
        %v2721 = vadd.f32 0.0, %v2720
        %v2722 = vpop.f32.mrb[0].mxu0
        %v2723 = vpop.f32.mrb[0].mxu0
        %v2724 = vadd.f32 0.0, %v2723
        %v2725 = vpop.f32.mrb[0].mxu0
        %2726 = vmatprep.mubr.bf16.mxu0 0
        %2727 = vmatmul.mubr.bf16.gmra.mrb[0].mxu0 %v998
        %v2728 = vpop.f32.mrb[0].mxu0
        %v2729 = vadd.f32 0.0, %v2728
        %v2730 = vpop.f32.mrb[0].mxu0
        %v2731 = vpop.f32.mrb[0].mxu0
        %v2732 = vadd.f32 0.0, %v2731
        %v2733 = vpop.f32.mrb[0].mxu0
        %2734 = vmatprep.mubr.bf16.mxu0 0
        %2735 = vmatmul.mubr.bf16.gmra.mrb[0].mxu0 %v1001
        %v2736 = vpop.f32.mrb[0].mxu0
        %v2737 = vadd.f32 0.0, %v2736
        %v2738 = vpop.f32.mrb[0].mxu0
        %v2739 = vpop.f32.mrb[0].mxu0
        %v2740 = vadd.f32 0.0, %v2739
        %v2741 = vpop.f32.mrb[0].mxu0
        %2742 = vmatprep.mubr.bf16.mxu0 0
        %2743 = vmatmul.mubr.bf16.gmra.mrb[0].mxu0 %v1004
        %v2744 = vpop.f32.mrb[0].mxu0
        %v2745 = vadd.f32 0.0, %v2744
        %v2746 = vpop.f32.mrb[0].mxu0
        %v2747 = vpop.f32.mrb[0].mxu0
        %v2748 = vadd.f32 0.0, %v2747
        %v2749 = vpop.f32.mrb[0].mxu0
        %2750 = vmatprep.mubr.bf16.mxu0 0
        %2751 = vmatmul.mubr.bf16.gmra.mrb[0].mxu0 %v1007
        %v2752 = vpop.f32.mrb[0].mxu0
        %v2753 = vadd.f32 0.0, %v2752
        %v2754 = vpop.f32.mrb[0].mxu0
        %v2755 = vpop.f32.mrb[0].mxu0
        %v2756 = vadd.f32 0.0, %v2755
        %v2757 = vpop.f32.mrb[0].mxu0
        %2758 = vmatprep.mubr.bf16.mxu0 0
        %2759 = vmatmul.mubr.bf16.gmra.mrb[0].mxu0 %v1644
        %v2760 = vpop.f32.mrb[0].mxu0
        %v2761 = vadd.f32 0.0, %v2760
        %v2762 = vpop.f32.mrb[0].mxu0
        %v2763 = vpop.f32.mrb[0].mxu0
        %v2764 = vadd.f32 0.0, %v2763
        %v2765 = vpop.f32.mrb[0].mxu0
        %2766 = vdwg.mxu0
        %v2767 = vadd.f32 %v2475, %v2641
        %v2768 = vadd.f32 %v2478, %v2644
        %v2769 = vadd.f32 %v2483, %v2649
        %v2770 = vadd.f32 %v2486, %v2652
        %v2771 = vadd.f32 %v2491, %v2657
        %v2772 = vadd.f32 %v2494, %v2660
        %v2773 = vadd.f32 %v2499, %v2665
        %v2774 = vadd.f32 %v2502, %v2668
        %v2775 = vadd.f32 %v2507, %v2673
        %v2776 = vadd.f32 %v2510, %v2676
        %v2777 = vadd.f32 %v2515, %v2681
        %v2778 = vadd.f32 %v2518, %v2684
        %v2779 = vadd.f32 %v2523, %v2689
        %v2780 = vadd.f32 %v2526, %v2692
        %v2781 = vadd.f32 %v2531, %v2697
        %v2782 = vadd.f32 %v2534, %v2700
        %v2783 = vadd.f32 %v2539, %v2705
        %v2784 = vadd.f32 %v2542, %v2708
        %v2785 = vadd.f32 %v2547, %v2713
        %v2786 = vadd.f32 %v2550, %v2716
        %v2787 = vadd.f32 %v2555, %v2721
        %v2788 = vadd.f32 %v2558, %v2724
        %v2789 = vadd.f32 %v2563, %v2729
        %v2790 = vadd.f32 %v2566, %v2732
        %v2791 = vadd.f32 %v2571, %v2737
        %v2792 = vadd.f32 %v2574, %v2740
        %v2793 = vadd.f32 %v2579, %v2745
        %v2794 = vadd.f32 %v2582, %v2748
        %v2795 = vadd.f32 %v2587, %v2753
        %v2796 = vadd.f32 %v2590, %v2756
        %v2797 = vadd.f32 %v2595, %v2761
        %v2798 = vadd.f32 %v2598, %v2764
        %s2799 = scalar_lea.vmem [#allocation5], 28
        %v2800 = vld [vmem:[%s2799] sm:$0xf]
        %v2801 = vunpack.c.l.b16 %v871
        %v2802 = vunpack.c.l.b16 %v874
        %v2803 = vpack.c.b16 %v2802, %v2801
        %v2805 = vsel %vm960, %v2803, 0
        %v2808 = vsel %vm1009, %v2800, 0
        %2810 = vmatprep.subr.bf16.mxu0 0
        %2811 = vmatpush1.bf16.msra.mxu0 %v2808
        %2812 = vmatprep.subr.bf16.mxu0 0
        %2813 = vmatpush1.bf16.msra.mxu0 0
        %2814 = vmatprep.subr.bf16.mxu0 0
        %2815 = vmatpush1.bf16.msra.mxu0 0
        %2816 = vmatprep.subr.bf16.mxu0 0
        %2817 = vmatpush1.bf16.msra.mxu0 0
        %2818 = vmatprep.subr.bf16.mxu0 0
        %2819 = vmatpush1.bf16.msra.mxu0 0
        %2820 = vmatprep.subr.bf16.mxu0 0
        %2821 = vmatpush1.bf16.msra.mxu0 0
        %2822 = vmatprep.subr.bf16.mxu0 0
        %2823 = vmatpush1.bf16.msra.mxu0 0
        %2824 = vmatprep.subr.bf16.mxu0 0
        %2825 = vmatpush1.bf16.msra.mxu0 0
        %2826 = vmatprep.subr.bf16.mxu0 0
        %2827 = vmatpush1.bf16.msra.mxu0 0
        %2828 = vmatprep.subr.bf16.mxu0 0
        %2829 = vmatpush1.bf16.msra.mxu0 0
        %2830 = vmatprep.subr.bf16.mxu0 0
        %2831 = vmatpush1.bf16.msra.mxu0 0
        %2832 = vmatprep.subr.bf16.mxu0 0
        %2833 = vmatpush1.bf16.msra.mxu0 0
        %2834 = vmatprep.subr.bf16.mxu0 0
        %2835 = vmatpush1.bf16.msra.mxu0 0
        %2836 = vmatprep.subr.bf16.mxu0 0
        %2837 = vmatpush1.bf16.msra.mxu0 0
        %2838 = vmatprep.subr.bf16.mxu0 0
        %2839 = vmatpush1.bf16.msra.mxu0 0
        %2840 = vmatprep.subr.bf16.mxu0 0
        %2841 = vmatpush1.bf16.msra.mxu0 0
        %2842 = vmatprep.mubr.bf16.mxu0 0
        %2843 = vmatmul.mubr.bf16.gmra.mrb[0].mxu0 %v2229
        %v2844 = vpop.f32.mrb[0].mxu0
        %v2845 = vadd.f32 0.0, %v2844
        %v2846 = vpop.f32.mrb[0].mxu0
        %v2847 = vpop.f32.mrb[0].mxu0
        %v2848 = vadd.f32 0.0, %v2847
        %v2849 = vpop.f32.mrb[0].mxu0
        %2850 = vmatprep.mubr.bf16.mxu0 0
        %2851 = vmatmul.mubr.bf16.gmra.mrb[0].mxu0 %v2232
        %v2852 = vpop.f32.mrb[0].mxu0
        %v2853 = vadd.f32 0.0, %v2852
        %v2854 = vpop.f32.mrb[0].mxu0
        %v2855 = vpop.f32.mrb[0].mxu0
        %v2856 = vadd.f32 0.0, %v2855
        %v2857 = vpop.f32.mrb[0].mxu0
        %2858 = vmatprep.mubr.bf16.mxu0 0
        %2859 = vmatmul.mubr.bf16.gmra.mrb[0].mxu0 %v2235
        %v2860 = vpop.f32.mrb[0].mxu0
        %v2861 = vadd.f32 0.0, %v2860
        %v2862 = vpop.f32.mrb[0].mxu0
        %v2863 = vpop.f32.mrb[0].mxu0
        %v2864 = vadd.f32 0.0, %v2863
        %v2865 = vpop.f32.mrb[0].mxu0
        %2866 = vmatprep.mubr.bf16.mxu0 0
        %2867 = vmatmul.mubr.bf16.gmra.mrb[0].mxu0 %v2238
        %v2868 = vpop.f32.mrb[0].mxu0
        %v2869 = vadd.f32 0.0, %v2868
        %v2870 = vpop.f32.mrb[0].mxu0
        %v2871 = vpop.f32.mrb[0].mxu0
        %v2872 = vadd.f32 0.0, %v2871
        %v2873 = vpop.f32.mrb[0].mxu0
        %2874 = vmatprep.mubr.bf16.mxu0 0
        %2875 = vmatmul.mubr.bf16.gmra.mrb[0].mxu0 %v2241
        %v2876 = vpop.f32.mrb[0].mxu0
        %v2877 = vadd.f32 0.0, %v2876
        %v2878 = vpop.f32.mrb[0].mxu0
        %v2879 = vpop.f32.mrb[0].mxu0
        %v2880 = vadd.f32 0.0, %v2879
        %v2881 = vpop.f32.mrb[0].mxu0
        %2882 = vmatprep.mubr.bf16.mxu0 0
        %2883 = vmatmul.mubr.bf16.gmra.mrb[0].mxu0 %v2244
        %v2884 = vpop.f32.mrb[0].mxu0
        %v2885 = vadd.f32 0.0, %v2884
        %v2886 = vpop.f32.mrb[0].mxu0
        %v2887 = vpop.f32.mrb[0].mxu0
        %v2888 = vadd.f32 0.0, %v2887
        %v2889 = vpop.f32.mrb[0].mxu0
        %2890 = vmatprep.mubr.bf16.mxu0 0
        %2891 = vmatmul.mubr.bf16.gmra.mrb[0].mxu0 %v2247
        %v2892 = vpop.f32.mrb[0].mxu0
        %v2893 = vadd.f32 0.0, %v2892
        %v2894 = vpop.f32.mrb[0].mxu0
        %v2895 = vpop.f32.mrb[0].mxu0
        %v2896 = vadd.f32 0.0, %v2895
        %v2897 = vpop.f32.mrb[0].mxu0
        %2898 = vmatprep.mubr.bf16.mxu0 0
        %2899 = vmatmul.mubr.bf16.gmra.mrb[0].mxu0 %v2250
        %v2900 = vpop.f32.mrb[0].mxu0
        %v2901 = vadd.f32 0.0, %v2900
        %v2902 = vpop.f32.mrb[0].mxu0
        %v2903 = vpop.f32.mrb[0].mxu0
        %v2904 = vadd.f32 0.0, %v2903
        %v2905 = vpop.f32.mrb[0].mxu0
        %2906 = vmatprep.mubr.bf16.mxu0 0
        %2907 = vmatmul.mubr.bf16.gmra.mrb[0].mxu0 %v2253
        %v2908 = vpop.f32.mrb[0].mxu0
        %v2909 = vadd.f32 0.0, %v2908
        %v2910 = vpop.f32.mrb[0].mxu0
        %v2911 = vpop.f32.mrb[0].mxu0
        %v2912 = vadd.f32 0.0, %v2911
        %v2913 = vpop.f32.mrb[0].mxu0
        %2914 = vmatprep.mubr.bf16.mxu0 0
        %2915 = vmatmul.mubr.bf16.gmra.mrb[0].mxu0 %v2256
        %v2916 = vpop.f32.mrb[0].mxu0
        %v2917 = vadd.f32 0.0, %v2916
        %v2918 = vpop.f32.mrb[0].mxu0
        %v2919 = vpop.f32.mrb[0].mxu0
        %v2920 = vadd.f32 0.0, %v2919
        %v2921 = vpop.f32.mrb[0].mxu0
        %2922 = vmatprep.mubr.bf16.mxu0 0
        %2923 = vmatmul.mubr.bf16.gmra.mrb[0].mxu0 %v2259
        %v2924 = vpop.f32.mrb[0].mxu0
        %v2925 = vadd.f32 0.0, %v2924
        %v2926 = vpop.f32.mrb[0].mxu0
        %v2927 = vpop.f32.mrb[0].mxu0
        %v2928 = vadd.f32 0.0, %v2927
        %v2929 = vpop.f32.mrb[0].mxu0
        %2930 = vmatprep.mubr.bf16.mxu0 0
        %2931 = vmatmul.mubr.bf16.gmra.mrb[0].mxu0 %v2262
        %v2932 = vpop.f32.mrb[0].mxu0
        %v2933 = vadd.f32 0.0, %v2932
        %v2934 = vpop.f32.mrb[0].mxu0
        %v2935 = vpop.f32.mrb[0].mxu0
        %v2936 = vadd.f32 0.0, %v2935
        %v2937 = vpop.f32.mrb[0].mxu0
        %2938 = vmatprep.mubr.bf16.mxu0 0
        %2939 = vmatmul.mubr.bf16.gmra.mrb[0].mxu0 %v2265
        %v2940 = vpop.f32.mrb[0].mxu0
        %v2941 = vadd.f32 0.0, %v2940
        %v2942 = vpop.f32.mrb[0].mxu0
        %v2943 = vpop.f32.mrb[0].mxu0
        %v2944 = vadd.f32 0.0, %v2943
        %v2945 = vpop.f32.mrb[0].mxu0
        %2946 = vmatprep.mubr.bf16.mxu0 0
        %2947 = vmatmul.mubr.bf16.gmra.mrb[0].mxu0 %v2268
        %v2948 = vpop.f32.mrb[0].mxu0
        %v2949 = vadd.f32 0.0, %v2948
        %v2950 = vpop.f32.mrb[0].mxu0
        %v2951 = vpop.f32.mrb[0].mxu0
        %v2952 = vadd.f32 0.0, %v2951
        %v2953 = vpop.f32.mrb[0].mxu0
        %2954 = vmatprep.mubr.bf16.mxu0 0
        %2955 = vmatmul.mubr.bf16.gmra.mrb[0].mxu0 %v2271
        %v2956 = vpop.f32.mrb[0].mxu0
        %v2957 = vadd.f32 0.0, %v2956
        %v2958 = vpop.f32.mrb[0].mxu0
        %v2959 = vpop.f32.mrb[0].mxu0
        %v2960 = vadd.f32 0.0, %v2959
        %v2961 = vpop.f32.mrb[0].mxu0
        %2962 = vmatprep.mubr.bf16.mxu0 0
        %2963 = vmatmul.mubr.bf16.gmra.mrb[0].mxu0 %v2805
        %v2964 = vpop.f32.mrb[0].mxu0
        %v2965 = vadd.f32 0.0, %v2964
        %v2966 = vpop.f32.mrb[0].mxu0
        %v2967 = vpop.f32.mrb[0].mxu0
        %v2968 = vadd.f32 0.0, %v2967
        %v2969 = vpop.f32.mrb[0].mxu0
        %2970 = vdwg.mxu0
        %v2971 = vadd.f32 %v2767, %v2845
        %v2972 = vadd.f32 %v2768, %v2848
        %v2973 = vadd.f32 %v2769, %v2853
        %v2974 = vadd.f32 %v2770, %v2856
        %v2975 = vadd.f32 %v2771, %v2861
        %v2976 = vadd.f32 %v2772, %v2864
        %v2977 = vadd.f32 %v2773, %v2869
        %v2978 = vadd.f32 %v2774, %v2872
        %v2979 = vadd.f32 %v2775, %v2877
        %v2980 = vadd.f32 %v2776, %v2880
        %v2981 = vadd.f32 %v2777, %v2885
        %v2982 = vadd.f32 %v2778, %v2888
        %v2983 = vadd.f32 %v2779, %v2893
        %v2984 = vadd.f32 %v2780, %v2896
        %v2985 = vadd.f32 %v2781, %v2901
        %v2986 = vadd.f32 %v2782, %v2904
        %v2987 = vadd.f32 %v2783, %v2909
        %v2988 = vadd.f32 %v2784, %v2912
        %v2989 = vadd.f32 %v2785, %v2917
        %v2990 = vadd.f32 %v2786, %v2920
        %v2991 = vadd.f32 %v2787, %v2925
        %v2992 = vadd.f32 %v2788, %v2928
        %v2993 = vadd.f32 %v2789, %v2933
        %v2994 = vadd.f32 %v2790, %v2936
        %v2995 = vadd.f32 %v2791, %v2941
        %v2996 = vadd.f32 %v2792, %v2944
        %v2997 = vadd.f32 %v2793, %v2949
        %v2998 = vadd.f32 %v2794, %v2952
        %v2999 = vadd.f32 %v2795, %v2957
        %v3000 = vadd.f32 %v2796, %v2960
        %v3001 = vadd.f32 %v2797, %v2965
        %v3002 = vadd.f32 %v2798, %v2968
        %v3003 = vsel %vm960, %v2971, 0.0
        %v3004 = vsel %vm960, %v2972, 0.0
        %v3005 = vadd.f32 %v3003, %v3004
        %v3006 = vsel %vm960, %v2973, 0.0
        %v3007 = vadd.f32 %v3005, %v3006
        %v3008 = vsel %vm960, %v2974, 0.0
        %v3009 = vadd.f32 %v3007, %v3008
        %v3010 = vsel %vm960, %v2975, 0.0
        %v3011 = vadd.f32 %v3009, %v3010
        %v3012 = vsel %vm960, %v2976, 0.0
        %v3013 = vadd.f32 %v3011, %v3012
        %v3014 = vsel %vm960, %v2977, 0.0
        %v3015 = vadd.f32 %v3013, %v3014
        %v3016 = vsel %vm960, %v2978, 0.0
        %v3017 = vadd.f32 %v3015, %v3016
        %v3018 = vsel %vm960, %v2979, 0.0
        %v3019 = vadd.f32 %v3017, %v3018
        %v3020 = vsel %vm960, %v2980, 0.0
        %v3021 = vadd.f32 %v3019, %v3020
        %v3022 = vsel %vm960, %v2981, 0.0
        %v3023 = vadd.f32 %v3021, %v3022
        %v3024 = vsel %vm960, %v2982, 0.0
        %v3025 = vadd.f32 %v3023, %v3024
        %v3026 = vsel %vm960, %v2983, 0.0
        %v3027 = vadd.f32 %v3025, %v3026
        %v3028 = vsel %vm960, %v2984, 0.0
        %v3029 = vadd.f32 %v3027, %v3028
        %v3030 = vsel %vm960, %v2985, 0.0
        %v3031 = vadd.f32 %v3029, %v3030
        %v3032 = vsel %vm960, %v2986, 0.0
        %v3033 = vadd.f32 %v3031, %v3032
        %v3034 = vsel %vm960, %v2987, 0.0
        %v3035 = vadd.f32 %v3033, %v3034
        %v3036 = vsel %vm960, %v2988, 0.0
        %v3037 = vadd.f32 %v3035, %v3036
        %v3038 = vsel %vm960, %v2989, 0.0
        %v3039 = vadd.f32 %v3037, %v3038
        %v3040 = vsel %vm960, %v2990, 0.0
        %v3041 = vadd.f32 %v3039, %v3040
        %v3042 = vsel %vm960, %v2991, 0.0
        %v3043 = vadd.f32 %v3041, %v3042
        %v3044 = vsel %vm960, %v2992, 0.0
        %v3045 = vadd.f32 %v3043, %v3044
        %v3046 = vsel %vm960, %v2993, 0.0
        %v3047 = vadd.f32 %v3045, %v3046
        %v3048 = vsel %vm960, %v2994, 0.0
        %v3049 = vadd.f32 %v3047, %v3048
        %v3050 = vsel %vm960, %v2995, 0.0
        %v3051 = vadd.f32 %v3049, %v3050
        %v3052 = vsel %vm960, %v2996, 0.0
        %v3053 = vadd.f32 %v3051, %v3052
        %v3054 = vsel %vm960, %v2997, 0.0
        %v3055 = vadd.f32 %v3053, %v3054
        %v3056 = vsel %vm960, %v2998, 0.0
        %v3057 = vadd.f32 %v3055, %v3056
        %v3058 = vsel %vm960, %v2999, 0.0
        %v3059 = vadd.f32 %v3057, %v3058
        %v3060 = vsel %vm960, %v3000, 0.0
        %v3061 = vadd.f32 %v3059, %v3060
        %v3062 = vsel %vm960, %v3001, 0.0
        %v3063 = vadd.f32 %v3061, %v3062
        %v3064 = vsel %vm960, %v3002, 0.0
        %v3065 = vadd.f32 %v3063, %v3064
        %v3066 = vrot.slane %v3065, 4
        %v3067 = vadd.f32 %v3065, %v3066
        %v3068 = vrot.slane %v3067, 2
        %v3069 = vadd.f32 %v3067, %v3068
        %v3070 = vrot.slane %v3069, 1
        %v3071 = vadd.f32 %v3069, %v3070
        %v3072 = vmul.f32 %v2971, %v2971
        %v3073 = vmul.f32 %v2972, %v2972
        %v3074 = vmul.f32 %v2973, %v2973
        %v3075 = vmul.f32 %v2974, %v2974
        %v3076 = vmul.f32 %v2975, %v2975
        %v3077 = vmul.f32 %v2976, %v2976
        %v3078 = vmul.f32 %v2977, %v2977
        %v3079 = vmul.f32 %v2978, %v2978
        %v3080 = vmul.f32 %v2979, %v2979
        %v3081 = vmul.f32 %v2980, %v2980
        %v3082 = vmul.f32 %v2981, %v2981
        %v3083 = vmul.f32 %v2982, %v2982
        %v3084 = vmul.f32 %v2983, %v2983
        %v3085 = vmul.f32 %v2984, %v2984
        %v3086 = vmul.f32 %v2985, %v2985
        %v3087 = vmul.f32 %v2986, %v2986
        %v3088 = vmul.f32 %v2987, %v2987
        %v3089 = vmul.f32 %v2988, %v2988
        %v3090 = vmul.f32 %v2989, %v2989
        %v3091 = vmul.f32 %v2990, %v2990
        %v3092 = vmul.f32 %v2991, %v2991
        %v3093 = vmul.f32 %v2992, %v2992
        %v3094 = vmul.f32 %v2993, %v2993
        %v3095 = vmul.f32 %v2994, %v2994
        %v3096 = vmul.f32 %v2995, %v2995
        %v3097 = vmul.f32 %v2996, %v2996
        %v3098 = vmul.f32 %v2997, %v2997
        %v3099 = vmul.f32 %v2998, %v2998
        %v3100 = vmul.f32 %v2999, %v2999
        %v3101 = vmul.f32 %v3000, %v3000
        %v3102 = vmul.f32 %v3001, %v3001
        %v3103 = vmul.f32 %v3002, %v3002
        %v3104 = vsel %vm960, %v3072, 0.0
        %v3105 = vsel %vm960, %v3073, 0.0
        %v3106 = vadd.f32 %v3104, %v3105
        %v3107 = vsel %vm960, %v3074, 0.0
        %v3108 = vadd.f32 %v3106, %v3107
        %v3109 = vsel %vm960, %v3075, 0.0
        %v3110 = vadd.f32 %v3108, %v3109
        %v3111 = vsel %vm960, %v3076, 0.0
        %v3112 = vadd.f32 %v3110, %v3111
        %v3113 = vsel %vm960, %v3077, 0.0
        %v3114 = vadd.f32 %v3112, %v3113
        %v3115 = vsel %vm960, %v3078, 0.0
        %v3116 = vadd.f32 %v3114, %v3115
        %v3117 = vsel %vm960, %v3079, 0.0
        %v3118 = vadd.f32 %v3116, %v3117
        %v3119 = vsel %vm960, %v3080, 0.0
        %v3120 = vadd.f32 %v3118, %v3119
        %v3121 = vsel %vm960, %v3081, 0.0
        %v3122 = vadd.f32 %v3120, %v3121
        %v3123 = vsel %vm960, %v3082, 0.0
        %v3124 = vadd.f32 %v3122, %v3123
        %v3125 = vsel %vm960, %v3083, 0.0
        %v3126 = vadd.f32 %v3124, %v3125
        %v3127 = vsel %vm960, %v3084, 0.0
        %v3128 = vadd.f32 %v3126, %v3127
        %v3129 = vsel %vm960, %v3085, 0.0
        %v3130 = vadd.f32 %v3128, %v3129
        %v3131 = vsel %vm960, %v3086, 0.0
        %v3132 = vadd.f32 %v3130, %v3131
        %v3133 = vsel %vm960, %v3087, 0.0
        %v3134 = vadd.f32 %v3132, %v3133
        %v3135 = vsel %vm960, %v3088, 0.0
        %v3136 = vadd.f32 %v3134, %v3135
        %v3137 = vsel %vm960, %v3089, 0.0
        %v3138 = vadd.f32 %v3136, %v3137
        %v3139 = vsel %vm960, %v3090, 0.0
        %v3140 = vadd.f32 %v3138, %v3139
        %v3141 = vsel %vm960, %v3091, 0.0
        %v3142 = vadd.f32 %v3140, %v3141
        %v3143 = vsel %vm960, %v3092, 0.0
        %v3144 = vadd.f32 %v3142, %v3143
        %v3145 = vsel %vm960, %v3093, 0.0
        %v3146 = vadd.f32 %v3144, %v3145
        %v3147 = vsel %vm960, %v3094, 0.0
        %v3148 = vadd.f32 %v3146, %v3147
        %v3149 = vsel %vm960, %v3095, 0.0
        %v3150 = vadd.f32 %v3148, %v3149
        %v3151 = vsel %vm960, %v3096, 0.0
        %v3152 = vadd.f32 %v3150, %v3151
        %v3153 = vsel %vm960, %v3097, 0.0
        %v3154 = vadd.f32 %v3152, %v3153
        %v3155 = vsel %vm960, %v3098, 0.0
        %v3156 = vadd.f32 %v3154, %v3155
        %v3157 = vsel %vm960, %v3099, 0.0
        %v3158 = vadd.f32 %v3156, %v3157
        %v3159 = vsel %vm960, %v3100, 0.0
        %v3160 = vadd.f32 %v3158, %v3159
        %v3161 = vsel %vm960, %v3101, 0.0
        %v3162 = vadd.f32 %v3160, %v3161
        %v3163 = vsel %vm960, %v3102, 0.0
        %v3164 = vadd.f32 %v3162, %v3163
        %v3165 = vsel %vm960, %v3103, 0.0
        %v3166 = vadd.f32 %v3164, %v3165
        %v3167 = vrot.slane %v3166, 4
        %v3168 = vadd.f32 %v3166, %v3167
        %v3169 = vrot.slane %v3168, 2
        %v3170 = vadd.f32 %v3168, %v3169
        %v3171 = vrot.slane %v3170, 1
        %v3172 = vadd.f32 %v3170, %v3171
        %v3173 = vpack.c.bf16 %v2972, %v2971
        %v3174 = vpack.c.bf16 %v2974, %v2973
        %v3175 = vpack.c.bf16 %v2976, %v2975
        %v3176 = vpack.c.bf16 %v2978, %v2977
        %v3177 = vpack.c.bf16 %v2980, %v2979
        %v3178 = vpack.c.bf16 %v2982, %v2981
        %v3179 = vpack.c.bf16 %v2984, %v2983
        %v3180 = vpack.c.bf16 %v2986, %v2985
        %v3181 = vpack.c.bf16 %v2988, %v2987
        %v3182 = vpack.c.bf16 %v2990, %v2989
        %v3183 = vpack.c.bf16 %v2992, %v2991
        %v3184 = vpack.c.bf16 %v2994, %v2993
        %v3185 = vpack.c.bf16 %v2996, %v2995
        %v3186 = vpack.c.bf16 %v2998, %v2997
        %v3187 = vpack.c.bf16 %v3000, %v2999
        %v3188 = vpack.c.bf16 %v3002, %v3001
        %v3205 = vunpack.c.l.b16 %v3173
        %v3206 = vunpack.c.h.b16 %v3173
        %v3207 = vunpack.c.l.b16 %v3174
        %v3208 = vunpack.c.h.b16 %v3174
        %v3209 = vunpack.c.l.b16 %v3175
        %v3210 = vunpack.c.h.b16 %v3175
        %v3211 = vunpack.c.l.b16 %v3176
        %v3212 = vunpack.c.h.b16 %v3176
        %v3213 = vunpack.c.l.b16 %v3177
        %v3214 = vunpack.c.h.b16 %v3177
        %v3215 = vunpack.c.l.b16 %v3178
        %v3216 = vunpack.c.h.b16 %v3178
        %v3217 = vunpack.c.l.b16 %v3179
        %v3218 = vunpack.c.h.b16 %v3179
        %v3219 = vunpack.c.l.b16 %v3180
        %v3220 = vunpack.c.h.b16 %v3180
        %v3221 = vunpack.c.l.b16 %v3181
        %v3222 = vunpack.c.h.b16 %v3181
        %v3223 = vunpack.c.l.b16 %v3182
        %v3224 = vunpack.c.h.b16 %v3182
        %v3225 = vunpack.c.l.b16 %v3183
        %v3226 = vunpack.c.h.b16 %v3183
        %v3227 = vunpack.c.l.b16 %v3184
        %v3228 = vunpack.c.h.b16 %v3184
        %v3229 = vunpack.c.l.b16 %v3185
        %v3230 = vunpack.c.h.b16 %v3185
        %v3231 = vunpack.c.l.b16 %v3186
        %v3232 = vunpack.c.h.b16 %v3186
        %v3233 = vunpack.c.l.b16 %v3187
        %v3234 = vunpack.c.h.b16 %v3187
        %v3235 = vunpack.c.l.b16 %v3188
        %v3236 = vunpack.c.h.b16 %v3188
        %v3237 = vpack.c.b16 %v3205, %v3205
        %v3238 = vpack.c.b16 %v3206, %v3206
        %v3239 = vpack.c.b16 %v3207, %v3207
        %v3240 = vpack.c.b16 %v3208, %v3208
        %v3241 = vpack.c.b16 %v3209, %v3209
        %v3242 = vpack.c.b16 %v3210, %v3210
        %v3243 = vpack.c.b16 %v3211, %v3211
        %v3244 = vpack.c.b16 %v3212, %v3212
        %v3245 = vpack.c.b16 %v3213, %v3213
        %v3246 = vpack.c.b16 %v3214, %v3214
        %v3247 = vpack.c.b16 %v3215, %v3215
        %v3248 = vpack.c.b16 %v3216, %v3216
        %v3249 = vpack.c.b16 %v3217, %v3217
        %v3250 = vpack.c.b16 %v3218, %v3218
        %v3251 = vpack.c.b16 %v3219, %v3219
        %v3252 = vpack.c.b16 %v3220, %v3220
        %v3253 = vpack.c.b16 %v3221, %v3221
        %v3254 = vpack.c.b16 %v3222, %v3222
        %v3255 = vpack.c.b16 %v3223, %v3223
        %v3256 = vpack.c.b16 %v3224, %v3224
        %v3257 = vpack.c.b16 %v3225, %v3225
        %v3258 = vpack.c.b16 %v3226, %v3226
        %v3259 = vpack.c.b16 %v3227, %v3227
        %v3260 = vpack.c.b16 %v3228, %v3228
        %v3261 = vpack.c.b16 %v3229, %v3229
        %v3262 = vpack.c.b16 %v3230, %v3230
        %v3263 = vpack.c.b16 %v3231, %v3231
        %v3264 = vpack.c.b16 %v3232, %v3232
        %v3265 = vpack.c.b16 %v3233, %v3233
        %v3266 = vpack.c.b16 %v3234, %v3234
        %v3267 = vpack.c.b16 %v3235, %v3235
        %v3268 = vpack.c.b16 %v3236, %v3236
        %3269 = vrot.lane.b32.xlu0 %v3237, 8
        %v3270 = vpop.permute.xlu0 %3269
        %3271 = vrot.lane.b32.xlu0 %v3238, 8
        %v3272 = vpop.permute.xlu0 %3271
        %3273 = vrot.lane.b32.xlu0 %v3239, 8
        %v3274 = vpop.permute.xlu0 %3273
        %3275 = vrot.lane.b32.xlu0 %v3240, 8
        %v3276 = vpop.permute.xlu0 %3275
        %3277 = vrot.lane.b32.xlu0 %v3241, 8
        %v3278 = vpop.permute.xlu0 %3277
        %3279 = vrot.lane.b32.xlu0 %v3242, 8
        %v3280 = vpop.permute.xlu0 %3279
        %3281 = vrot.lane.b32.xlu0 %v3243, 8
        %v3282 = vpop.permute.xlu0 %3281
        %3283 = vrot.lane.b32.xlu0 %v3244, 8
        %v3284 = vpop.permute.xlu0 %3283
        %3285 = vrot.lane.b32.xlu0 %v3245, 8
        %v3286 = vpop.permute.xlu0 %3285
        %3287 = vrot.lane.b32.xlu0 %v3246, 8
        %v3288 = vpop.permute.xlu0 %3287
        %3289 = vrot.lane.b32.xlu0 %v3247, 8
        %v3290 = vpop.permute.xlu0 %3289
        %3291 = vrot.lane.b32.xlu0 %v3248, 8
        %v3292 = vpop.permute.xlu0 %3291
        %3293 = vrot.lane.b32.xlu0 %v3249, 8
        %v3294 = vpop.permute.xlu0 %3293
        %3295 = vrot.lane.b32.xlu0 %v3250, 8
        %v3296 = vpop.permute.xlu0 %3295
        %3297 = vrot.lane.b32.xlu0 %v3251, 8
        %v3298 = vpop.permute.xlu0 %3297
        %3299 = vrot.lane.b32.xlu0 %v3252, 8
        %v3300 = vpop.permute.xlu0 %3299
        %3301 = vrot.lane.b32.xlu0 %v3253, 8
        %v3302 = vpop.permute.xlu0 %3301
        %3303 = vrot.lane.b32.xlu0 %v3254, 8
        %v3304 = vpop.permute.xlu0 %3303
        %3305 = vrot.lane.b32.xlu0 %v3255, 8
        %v3306 = vpop.permute.xlu0 %3305
        %3307 = vrot.lane.b32.xlu0 %v3256, 8
        %v3308 = vpop.permute.xlu0 %3307
        %3309 = vrot.lane.b32.xlu0 %v3257, 8
        %v3310 = vpop.permute.xlu0 %3309
        %3311 = vrot.lane.b32.xlu0 %v3258, 8
        %v3312 = vpop.permute.xlu0 %3311
        %3313 = vrot.lane.b32.xlu0 %v3259, 8
        %v3314 = vpop.permute.xlu0 %3313
        %3315 = vrot.lane.b32.xlu0 %v3260, 8
        %v3316 = vpop.permute.xlu0 %3315
        %3317 = vrot.lane.b32.xlu0 %v3261, 8
        %v3318 = vpop.permute.xlu0 %3317
        %3319 = vrot.lane.b32.xlu0 %v3262, 8
        %v3320 = vpop.permute.xlu0 %3319
        %3321 = vrot.lane.b32.xlu0 %v3263, 8
        %v3322 = vpop.permute.xlu0 %3321
        %3323 = vrot.lane.b32.xlu0 %v3264, 8
        %v3324 = vpop.permute.xlu0 %3323
        %3325 = vrot.lane.b32.xlu0 %v3265, 8
        %v3326 = vpop.permute.xlu0 %3325
        %3327 = vrot.lane.b32.xlu0 %v3266, 8
        %v3328 = vpop.permute.xlu0 %3327
        %3329 = vrot.lane.b32.xlu0 %v3267, 8
        %v3330 = vpop.permute.xlu0 %3329
        %3331 = vrot.lane.b32.xlu0 %v3268, 8
        %v3332 = vpop.permute.xlu0 %3331
        %vm3365 = vcmask 126016
        %3366 = vst.msk [vmem:[%s223] sm:$0xf] %vm3365, %v3270
        %3367 = vst.msk [vmem:[%s223 + $0x4] sm:$0xf] %vm3365, %v3272
        %3368 = vst.msk [vmem:[%s223 + $0x8] sm:$0xf] %vm3365, %v3274
        %3369 = vst.msk [vmem:[%s223 + $0xc] sm:$0xf] %vm3365, %v3276
        %3370 = vst.msk [vmem:[%s223 + $0x10] sm:$0xf] %vm3365, %v3278
        %3371 = vst.msk [vmem:[%s223 + $0x14] sm:$0xf] %vm3365, %v3280
        %3372 = vst.msk [vmem:[%s223 + $0x18] sm:$0xf] %vm3365, %v3282
        %3373 = vst.msk [vmem:[%s223 + $0x1c] sm:$0xf] %vm3365, %v3284
        %3374 = vst.msk [vmem:[%s223 + $0x20] sm:$0xf] %vm3365, %v3286
        %3375 = vst.msk [vmem:[%s223 + $0x24] sm:$0xf] %vm3365, %v3288
        %3376 = vst.msk [vmem:[%s223 + $0x28] sm:$0xf] %vm3365, %v3290
        %3377 = vst.msk [vmem:[%s223 + $0x2c] sm:$0xf] %vm3365, %v3292
        %3378 = vst.msk [vmem:[%s223 + $0x30] sm:$0xf] %vm3365, %v3294
        %3379 = vst.msk [vmem:[%s223 + $0x34] sm:$0xf] %vm3365, %v3296
        %3380 = vst.msk [vmem:[%s223 + $0x38] sm:$0xf] %vm3365, %v3298
        %3381 = vst.msk [vmem:[%s223 + $0x3c] sm:$0xf] %vm3365, %v3300
        %3382 = vst.msk [vmem:[%s223 + $0x40] sm:$0xf] %vm3365, %v3302
        %3383 = vst.msk [vmem:[%s223 + $0x44] sm:$0xf] %vm3365, %v3304
        %3384 = vst.msk [vmem:[%s223 + $0x48] sm:$0xf] %vm3365, %v3306
        %3385 = vst.msk [vmem:[%s223 + $0x4c] sm:$0xf] %vm3365, %v3308
        %3386 = vst.msk [vmem:[%s223 + $0x50] sm:$0xf] %vm3365, %v3310
        %3387 = vst.msk [vmem:[%s223 + $0x54] sm:$0xf] %vm3365, %v3312
        %3388 = vst.msk [vmem:[%s223 + $0x58] sm:$0xf] %vm3365, %v3314
        %3389 = vst.msk [vmem:[%s223 + $0x5c] sm:$0xf] %vm3365, %v3316
        %3390 = vst.msk [vmem:[%s223 + $0x60] sm:$0xf] %vm3365, %v3318
        %3391 = vst.msk [vmem:[%s223 + $0x64] sm:$0xf] %vm3365, %v3320
        %3392 = vst.msk [vmem:[%s223 + $0x68] sm:$0xf] %vm3365, %v3322
        %3393 = vst.msk [vmem:[%s223 + $0x6c] sm:$0xf] %vm3365, %v3324
        %3394 = vst.msk [vmem:[%s223 + $0x70] sm:$0xf] %vm3365, %v3326
        %3395 = vst.msk [vmem:[%s223 + $0x74] sm:$0xf] %vm3365, %v3328
        %3396 = vst.msk [vmem:[%s223 + $0x78] sm:$0xf] %vm3365, %v3330
        %3397 = vst.msk [vmem:[%s223 + $0x7c] sm:$0xf] %vm3365, %v3332
        %s3398 = scalar_lea.vmem [#allocation5], 32
        %v3399 = vld [vmem:[%s3398] sm:$0xf]
        %s3400 = scalar_lea.vmem [#allocation5], 36
        %v3401 = vld [vmem:[%s3400] sm:$0xf]
        %v3403 = vsel %vm1009, %v3401, 0
        %3405 = vmatprep.subr.bf16.mxu0 0
        %3406 = vmatpush1.bf16.msra.mxu0 %v3403
        %3407 = vmatprep.subr.bf16.mxu0 0
        %3408 = vmatpush1.bf16.msra.mxu0 0
        %3409 = vmatprep.subr.bf16.mxu0 0
        %3410 = vmatpush1.bf16.msra.mxu0 0
        %3411 = vmatprep.subr.bf16.mxu0 0
        %3412 = vmatpush1.bf16.msra.mxu0 0
        %3413 = vmatprep.subr.bf16.mxu0 0
        %3414 = vmatpush1.bf16.msra.mxu0 0
        %3415 = vmatprep.subr.bf16.mxu0 0
        %3416 = vmatpush1.bf16.msra.mxu0 0
        %3417 = vmatprep.subr.bf16.mxu0 0
        %3418 = vmatpush1.bf16.msra.mxu0 0
        %3419 = vmatprep.subr.bf16.mxu0 0
        %3420 = vmatpush1.bf16.msra.mxu0 0
        %3421 = vmatprep.subr.bf16.mxu0 0
        %3422 = vmatpush1.bf16.msra.mxu0 0
        %3423 = vmatprep.subr.bf16.mxu0 0
        %3424 = vmatpush1.bf16.msra.mxu0 0
        %3425 = vmatprep.subr.bf16.mxu0 0
        %3426 = vmatpush1.bf16.msra.mxu0 0
        %3427 = vmatprep.subr.bf16.mxu0 0
        %3428 = vmatpush1.bf16.msra.mxu0 0
        %3429 = vmatprep.subr.bf16.mxu0 0
        %3430 = vmatpush1.bf16.msra.mxu0 0
        %3431 = vmatprep.subr.bf16.mxu0 0
        %3432 = vmatpush1.bf16.msra.mxu0 0
        %3433 = vmatprep.subr.bf16.mxu0 0
        %3434 = vmatpush1.bf16.msra.mxu0 0
        %3435 = vmatprep.subr.bf16.mxu0 0
        %3436 = vmatpush1.bf16.msra.mxu0 0
        %3437 = vmatprep.mubr.bf16.mxu0 0
        %3438 = vmatmul.mubr.bf16.gmra.mrb[0].mxu0 %v965
        %v3439 = vpop.f32.mrb[0].mxu0
        %v3440 = vadd.f32 0.0, %v3439
        %v3441 = vpop.f32.mrb[0].mxu0
        %v3442 = vpop.f32.mrb[0].mxu0
        %v3443 = vadd.f32 0.0, %v3442
        %v3444 = vpop.f32.mrb[0].mxu0
        %3445 = vmatprep.mubr.bf16.mxu0 0
        %3446 = vmatmul.mubr.bf16.gmra.mrb[0].mxu0 %v968
        %v3447 = vpop.f32.mrb[0].mxu0
        %v3448 = vadd.f32 0.0, %v3447
        %v3449 = vpop.f32.mrb[0].mxu0
        %v3450 = vpop.f32.mrb[0].mxu0
        %v3451 = vadd.f32 0.0, %v3450
        %v3452 = vpop.f32.mrb[0].mxu0
        %3453 = vmatprep.mubr.bf16.mxu0 0
        %3454 = vmatmul.mubr.bf16.gmra.mrb[0].mxu0 %v971
        %v3455 = vpop.f32.mrb[0].mxu0
        %v3456 = vadd.f32 0.0, %v3455
        %v3457 = vpop.f32.mrb[0].mxu0
        %v3458 = vpop.f32.mrb[0].mxu0
        %v3459 = vadd.f32 0.0, %v3458
        %v3460 = vpop.f32.mrb[0].mxu0
        %3461 = vmatprep.mubr.bf16.mxu0 0
        %3462 = vmatmul.mubr.bf16.gmra.mrb[0].mxu0 %v974
        %v3463 = vpop.f32.mrb[0].mxu0
        %v3464 = vadd.f32 0.0, %v3463
        %v3465 = vpop.f32.mrb[0].mxu0
        %v3466 = vpop.f32.mrb[0].mxu0
        %v3467 = vadd.f32 0.0, %v3466
        %v3468 = vpop.f32.mrb[0].mxu0
        %3469 = vmatprep.mubr.bf16.mxu0 0
        %3470 = vmatmul.mubr.bf16.gmra.mrb[0].mxu0 %v977
        %v3471 = vpop.f32.mrb[0].mxu0
        %v3472 = vadd.f32 0.0, %v3471
        %v3473 = vpop.f32.mrb[0].mxu0
        %v3474 = vpop.f32.mrb[0].mxu0
        %v3475 = vadd.f32 0.0, %v3474
        %v3476 = vpop.f32.mrb[0].mxu0
        %3477 = vmatprep.mubr.bf16.mxu0 0
        %3478 = vmatmul.mubr.bf16.gmra.mrb[0].mxu0 %v980
        %v3479 = vpop.f32.mrb[0].mxu0
        %v3480 = vadd.f32 0.0, %v3479
        %v3481 = vpop.f32.mrb[0].mxu0
        %v3482 = vpop.f32.mrb[0].mxu0
        %v3483 = vadd.f32 0.0, %v3482
        %v3484 = vpop.f32.mrb[0].mxu0
        %3485 = vmatprep.mubr.bf16.mxu0 0
        %3486 = vmatmul.mubr.bf16.gmra.mrb[0].mxu0 %v983
        %v3487 = vpop.f32.mrb[0].mxu0
        %v3488 = vadd.f32 0.0, %v3487
        %v3489 = vpop.f32.mrb[0].mxu0
        %v3490 = vpop.f32.mrb[0].mxu0
        %v3491 = vadd.f32 0.0, %v3490
        %v3492 = vpop.f32.mrb[0].mxu0
        %3493 = vmatprep.mubr.bf16.mxu0 0
        %3494 = vmatmul.mubr.bf16.gmra.mrb[0].mxu0 %v986
        %v3495 = vpop.f32.mrb[0].mxu0
        %v3496 = vadd.f32 0.0, %v3495
        %v3497 = vpop.f32.mrb[0].mxu0
        %v3498 = vpop.f32.mrb[0].mxu0
        %v3499 = vadd.f32 0.0, %v3498
        %v3500 = vpop.f32.mrb[0].mxu0
        %3501 = vmatprep.mubr.bf16.mxu0 0
        %3502 = vmatmul.mubr.bf16.gmra.mrb[0].mxu0 %v989
        %v3503 = vpop.f32.mrb[0].mxu0
        %v3504 = vadd.f32 0.0, %v3503
        %v3505 = vpop.f32.mrb[0].mxu0
        %v3506 = vpop.f32.mrb[0].mxu0
        %v3507 = vadd.f32 0.0, %v3506
        %v3508 = vpop.f32.mrb[0].mxu0
        %3509 = vmatprep.mubr.bf16.mxu0 0
        %3510 = vmatmul.mubr.bf16.gmra.mrb[0].mxu0 %v992
        %v3511 = vpop.f32.mrb[0].mxu0
        %v3512 = vadd.f32 0.0, %v3511
        %v3513 = vpop.f32.mrb[0].mxu0
        %v3514 = vpop.f32.mrb[0].mxu0
        %v3515 = vadd.f32 0.0, %v3514
        %v3516 = vpop.f32.mrb[0].mxu0
        %3517 = vmatprep.mubr.bf16.mxu0 0
        %3518 = vmatmul.mubr.bf16.gmra.mrb[0].mxu0 %v995
        %v3519 = vpop.f32.mrb[0].mxu0
        %v3520 = vadd.f32 0.0, %v3519
        %v3521 = vpop.f32.mrb[0].mxu0
        %v3522 = vpop.f32.mrb[0].mxu0
        %v3523 = vadd.f32 0.0, %v3522
        %v3524 = vpop.f32.mrb[0].mxu0
        %3525 = vmatprep.mubr.bf16.mxu0 0
        %3526 = vmatmul.mubr.bf16.gmra.mrb[0].mxu0 %v998
        %v3527 = vpop.f32.mrb[0].mxu0
        %v3528 = vadd.f32 0.0, %v3527
        %v3529 = vpop.f32.mrb[0].mxu0
        %v3530 = vpop.f32.mrb[0].mxu0
        %v3531 = vadd.f32 0.0, %v3530
        %v3532 = vpop.f32.mrb[0].mxu0
        %3533 = vmatprep.mubr.bf16.mxu0 0
        %3534 = vmatmul.mubr.bf16.gmra.mrb[0].mxu0 %v1001
        %v3535 = vpop.f32.mrb[0].mxu0
        %v3536 = vadd.f32 0.0, %v3535
        %v3537 = vpop.f32.mrb[0].mxu0
        %v3538 = vpop.f32.mrb[0].mxu0
        %v3539 = vadd.f32 0.0, %v3538
        %v3540 = vpop.f32.mrb[0].mxu0
        %3541 = vmatprep.mubr.bf16.mxu0 0
        %3542 = vmatmul.mubr.bf16.gmra.mrb[0].mxu0 %v1004
        %v3543 = vpop.f32.mrb[0].mxu0
        %v3544 = vadd.f32 0.0, %v3543
        %v3545 = vpop.f32.mrb[0].mxu0
        %v3546 = vpop.f32.mrb[0].mxu0
        %v3547 = vadd.f32 0.0, %v3546
        %v3548 = vpop.f32.mrb[0].mxu0
        %3549 = vmatprep.mubr.bf16.mxu0 0
        %3550 = vmatmul.mubr.bf16.gmra.mrb[0].mxu0 %v1007
        %v3551 = vpop.f32.mrb[0].mxu0
        %v3552 = vadd.f32 0.0, %v3551
        %v3553 = vpop.f32.mrb[0].mxu0
        %v3554 = vpop.f32.mrb[0].mxu0
        %v3555 = vadd.f32 0.0, %v3554
        %v3556 = vpop.f32.mrb[0].mxu0
        %3557 = vmatprep.mubr.bf16.mxu0 0
        %3558 = vmatmul.mubr.bf16.gmra.mrb[0].mxu0 %v1644
        %v3559 = vpop.f32.mrb[0].mxu0
        %v3560 = vadd.f32 0.0, %v3559
        %v3561 = vpop.f32.mrb[0].mxu0
        %v3562 = vpop.f32.mrb[0].mxu0
        %v3563 = vadd.f32 0.0, %v3562
        %v3564 = vpop.f32.mrb[0].mxu0
        %3565 = vdwg.mxu0
        %v3567 = vsel %vm1009, %v3399, 0
        %3569 = vmatprep.subr.bf16.mxu0 0
        %3570 = vmatpush1.bf16.msra.mxu0 %v3567
        %3571 = vmatprep.subr.bf16.mxu0 0
        %3572 = vmatpush1.bf16.msra.mxu0 0
        %3573 = vmatprep.subr.bf16.mxu0 0
        %3574 = vmatpush1.bf16.msra.mxu0 0
        %3575 = vmatprep.subr.bf16.mxu0 0
        %3576 = vmatpush1.bf16.msra.mxu0 0
        %3577 = vmatprep.subr.bf16.mxu0 0
        %3578 = vmatpush1.bf16.msra.mxu0 0
        %3579 = vmatprep.subr.bf16.mxu0 0
        %3580 = vmatpush1.bf16.msra.mxu0 0
        %3581 = vmatprep.subr.bf16.mxu0 0
        %3582 = vmatpush1.bf16.msra.mxu0 0
        %3583 = vmatprep.subr.bf16.mxu0 0
        %3584 = vmatpush1.bf16.msra.mxu0 0
        %3585 = vmatprep.subr.bf16.mxu0 0
        %3586 = vmatpush1.bf16.msra.mxu0 0
        %3587 = vmatprep.subr.bf16.mxu0 0
        %3588 = vmatpush1.bf16.msra.mxu0 0
        %3589 = vmatprep.subr.bf16.mxu0 0
        %3590 = vmatpush1.bf16.msra.mxu0 0
        %3591 = vmatprep.subr.bf16.mxu0 0
        %3592 = vmatpush1.bf16.msra.mxu0 0
        %3593 = vmatprep.subr.bf16.mxu0 0
        %3594 = vmatpush1.bf16.msra.mxu0 0
        %3595 = vmatprep.subr.bf16.mxu0 0
        %3596 = vmatpush1.bf16.msra.mxu0 0
        %3597 = vmatprep.subr.bf16.mxu0 0
        %3598 = vmatpush1.bf16.msra.mxu0 0
        %3599 = vmatprep.subr.bf16.mxu0 0
        %3600 = vmatpush1.bf16.msra.mxu0 0
        %3601 = vmatprep.mubr.bf16.mxu0 0
        %3602 = vmatmul.mubr.bf16.gmra.mrb[0].mxu0 %v1226
        %v3603 = vpop.f32.mrb[0].mxu0
        %v3604 = vadd.f32 %v3440, %v3603
        %v3605 = vpop.f32.mrb[0].mxu0
        %v3606 = vpop.f32.mrb[0].mxu0
        %v3607 = vadd.f32 %v3443, %v3606
        %v3608 = vpop.f32.mrb[0].mxu0
        %3609 = vmatprep.mubr.bf16.mxu0 0
        %3610 = vmatmul.mubr.bf16.gmra.mrb[0].mxu0 %v1229
        %v3611 = vpop.f32.mrb[0].mxu0
        %v3612 = vadd.f32 %v3448, %v3611
        %v3613 = vpop.f32.mrb[0].mxu0
        %v3614 = vpop.f32.mrb[0].mxu0
        %v3615 = vadd.f32 %v3451, %v3614
        %v3616 = vpop.f32.mrb[0].mxu0
        %3617 = vmatprep.mubr.bf16.mxu0 0
        %3618 = vmatmul.mubr.bf16.gmra.mrb[0].mxu0 %v1232
        %v3619 = vpop.f32.mrb[0].mxu0
        %v3620 = vadd.f32 %v3456, %v3619
        %v3621 = vpop.f32.mrb[0].mxu0
        %v3622 = vpop.f32.mrb[0].mxu0
        %v3623 = vadd.f32 %v3459, %v3622
        %v3624 = vpop.f32.mrb[0].mxu0
        %3625 = vmatprep.mubr.bf16.mxu0 0
        %3626 = vmatmul.mubr.bf16.gmra.mrb[0].mxu0 %v1235
        %v3627 = vpop.f32.mrb[0].mxu0
        %v3628 = vadd.f32 %v3464, %v3627
        %v3629 = vpop.f32.mrb[0].mxu0
        %v3630 = vpop.f32.mrb[0].mxu0
        %v3631 = vadd.f32 %v3467, %v3630
        %v3632 = vpop.f32.mrb[0].mxu0
        %3633 = vmatprep.mubr.bf16.mxu0 0
        %3634 = vmatmul.mubr.bf16.gmra.mrb[0].mxu0 %v1238
        %v3635 = vpop.f32.mrb[0].mxu0
        %v3636 = vadd.f32 %v3472, %v3635
        %v3637 = vpop.f32.mrb[0].mxu0
        %v3638 = vpop.f32.mrb[0].mxu0
        %v3639 = vadd.f32 %v3475, %v3638
        %v3640 = vpop.f32.mrb[0].mxu0
        %3641 = vmatprep.mubr.bf16.mxu0 0
        %3642 = vmatmul.mubr.bf16.gmra.mrb[0].mxu0 %v1241
        %v3643 = vpop.f32.mrb[0].mxu0
        %v3644 = vadd.f32 %v3480, %v3643
        %v3645 = vpop.f32.mrb[0].mxu0
        %v3646 = vpop.f32.mrb[0].mxu0
        %v3647 = vadd.f32 %v3483, %v3646
        %v3648 = vpop.f32.mrb[0].mxu0
        %3649 = vmatprep.mubr.bf16.mxu0 0
        %3650 = vmatmul.mubr.bf16.gmra.mrb[0].mxu0 %v1244
        %v3651 = vpop.f32.mrb[0].mxu0
        %v3652 = vadd.f32 %v3488, %v3651
        %v3653 = vpop.f32.mrb[0].mxu0
        %v3654 = vpop.f32.mrb[0].mxu0
        %v3655 = vadd.f32 %v3491, %v3654
        %v3656 = vpop.f32.mrb[0].mxu0
        %3657 = vmatprep.mubr.bf16.mxu0 0
        %3658 = vmatmul.mubr.bf16.gmra.mrb[0].mxu0 %v1247
        %v3659 = vpop.f32.mrb[0].mxu0
        %v3660 = vadd.f32 %v3496, %v3659
        %v3661 = vpop.f32.mrb[0].mxu0
        %v3662 = vpop.f32.mrb[0].mxu0
        %v3663 = vadd.f32 %v3499, %v3662
        %v3664 = vpop.f32.mrb[0].mxu0
        %3665 = vmatprep.mubr.bf16.mxu0 0
        %3666 = vmatmul.mubr.bf16.gmra.mrb[0].mxu0 %v1250
        %v3667 = vpop.f32.mrb[0].mxu0
        %v3668 = vadd.f32 %v3504, %v3667
        %v3669 = vpop.f32.mrb[0].mxu0
        %v3670 = vpop.f32.mrb[0].mxu0
        %v3671 = vadd.f32 %v3507, %v3670
        %v3672 = vpop.f32.mrb[0].mxu0
        %3673 = vmatprep.mubr.bf16.mxu0 0
        %3674 = vmatmul.mubr.bf16.gmra.mrb[0].mxu0 %v1253
        %v3675 = vpop.f32.mrb[0].mxu0
        %v3676 = vadd.f32 %v3512, %v3675
        %v3677 = vpop.f32.mrb[0].mxu0
        %v3678 = vpop.f32.mrb[0].mxu0
        %v3679 = vadd.f32 %v3515, %v3678
        %v3680 = vpop.f32.mrb[0].mxu0
        %3681 = vmatprep.mubr.bf16.mxu0 0
        %3682 = vmatmul.mubr.bf16.gmra.mrb[0].mxu0 %v1256
        %v3683 = vpop.f32.mrb[0].mxu0
        %v3684 = vadd.f32 %v3520, %v3683
        %v3685 = vpop.f32.mrb[0].mxu0
        %v3686 = vpop.f32.mrb[0].mxu0
        %v3687 = vadd.f32 %v3523, %v3686
        %v3688 = vpop.f32.mrb[0].mxu0
        %3689 = vmatprep.mubr.bf16.mxu0 0
        %3690 = vmatmul.mubr.bf16.gmra.mrb[0].mxu0 %v1259
        %v3691 = vpop.f32.mrb[0].mxu0
        %v3692 = vadd.f32 %v3528, %v3691
        %v3693 = vpop.f32.mrb[0].mxu0
        %v3694 = vpop.f32.mrb[0].mxu0
        %v3695 = vadd.f32 %v3531, %v3694
        %v3696 = vpop.f32.mrb[0].mxu0
        %3697 = vmatprep.mubr.bf16.mxu0 0
        %3698 = vmatmul.mubr.bf16.gmra.mrb[0].mxu0 %v1262
        %v3699 = vpop.f32.mrb[0].mxu0
        %v3700 = vadd.f32 %v3536, %v3699
        %v3701 = vpop.f32.mrb[0].mxu0
        %v3702 = vpop.f32.mrb[0].mxu0
        %v3703 = vadd.f32 %v3539, %v3702
        %v3704 = vpop.f32.mrb[0].mxu0
        %3705 = vmatprep.mubr.bf16.mxu0 0
        %3706 = vmatmul.mubr.bf16.gmra.mrb[0].mxu0 %v1265
        %v3707 = vpop.f32.mrb[0].mxu0
        %v3708 = vadd.f32 %v3544, %v3707
        %v3709 = vpop.f32.mrb[0].mxu0
        %v3710 = vpop.f32.mrb[0].mxu0
        %v3711 = vadd.f32 %v3547, %v3710
        %v3712 = vpop.f32.mrb[0].mxu0
        %3713 = vmatprep.mubr.bf16.mxu0 0
        %3714 = vmatmul.mubr.bf16.gmra.mrb[0].mxu0 %v1268
        %v3715 = vpop.f32.mrb[0].mxu0
        %v3716 = vadd.f32 %v3552, %v3715
        %v3717 = vpop.f32.mrb[0].mxu0
        %v3718 = vpop.f32.mrb[0].mxu0
        %v3719 = vadd.f32 %v3555, %v3718
        %v3720 = vpop.f32.mrb[0].mxu0
        %3721 = vmatprep.mubr.bf16.mxu0 0
        %3722 = vmatmul.mubr.bf16.gmra.mrb[0].mxu0 %v1440
        %v3723 = vpop.f32.mrb[0].mxu0
        %v3724 = vadd.f32 %v3560, %v3723
        %v3725 = vpop.f32.mrb[0].mxu0
        %v3726 = vpop.f32.mrb[0].mxu0
        %v3727 = vadd.f32 %v3563, %v3726
        %v3728 = vpop.f32.mrb[0].mxu0
        %3729 = vdwg.mxu0
        %s3730 = scalar_lea.vmem [#allocation5], 40
        %v3731 = vld [vmem:[%s3730] sm:$0xf]
        %v3732 = vunpack.c.l.b16 %v288
        %v3733 = vunpack.c.l.b16 %v289
        %v3734 = vpack.c.b16 %v3733, %v3732
        %v3736 = vsel %vm960, %v3734, 0
        %v3739 = vsel %vm1009, %v3731, 0
        %3741 = vmatprep.subr.bf16.mxu0 0
        %3742 = vmatpush1.bf16.msra.mxu0 %v3739
        %3743 = vmatprep.subr.bf16.mxu0 0
        %3744 = vmatpush1.bf16.msra.mxu0 0
        %3745 = vmatprep.subr.bf16.mxu0 0
        %3746 = vmatpush1.bf16.msra.mxu0 0
        %3747 = vmatprep.subr.bf16.mxu0 0
        %3748 = vmatpush1.bf16.msra.mxu0 0
        %3749 = vmatprep.subr.bf16.mxu0 0
        %3750 = vmatpush1.bf16.msra.mxu0 0
        %3751 = vmatprep.subr.bf16.mxu0 0
        %3752 = vmatpush1.bf16.msra.mxu0 0
        %3753 = vmatprep.subr.bf16.mxu0 0
        %3754 = vmatpush1.bf16.msra.mxu0 0
        %3755 = vmatprep.subr.bf16.mxu0 0
        %3756 = vmatpush1.bf16.msra.mxu0 0
        %3757 = vmatprep.subr.bf16.mxu0 0
        %3758 = vmatpush1.bf16.msra.mxu0 0
        %3759 = vmatprep.subr.bf16.mxu0 0
        %3760 = vmatpush1.bf16.msra.mxu0 0
        %3761 = vmatprep.subr.bf16.mxu0 0
        %3762 = vmatpush1.bf16.msra.mxu0 0
        %3763 = vmatprep.subr.bf16.mxu0 0
        %3764 = vmatpush1.bf16.msra.mxu0 0
        %3765 = vmatprep.subr.bf16.mxu0 0
        %3766 = vmatpush1.bf16.msra.mxu0 0
        %3767 = vmatprep.subr.bf16.mxu0 0
        %3768 = vmatpush1.bf16.msra.mxu0 0
        %3769 = vmatprep.subr.bf16.mxu0 0
        %3770 = vmatpush1.bf16.msra.mxu0 0
        %3771 = vmatprep.subr.bf16.mxu0 0
        %3772 = vmatpush1.bf16.msra.mxu0 0
        %3773 = vmatprep.mubr.bf16.mxu0 0
        %3774 = vmatmul.mubr.bf16.gmra.mrb[0].mxu0 %v1229
        %v3775 = vpop.f32.mrb[0].mxu0
        %v3776 = vadd.f32 0.0, %v3775
        %v3777 = vpop.f32.mrb[0].mxu0
        %v3778 = vpop.f32.mrb[0].mxu0
        %v3779 = vadd.f32 0.0, %v3778
        %v3780 = vpop.f32.mrb[0].mxu0
        %3781 = vmatprep.mubr.bf16.mxu0 0
        %3782 = vmatmul.mubr.bf16.gmra.mrb[0].mxu0 %v1232
        %v3783 = vpop.f32.mrb[0].mxu0
        %v3784 = vadd.f32 0.0, %v3783
        %v3785 = vpop.f32.mrb[0].mxu0
        %v3786 = vpop.f32.mrb[0].mxu0
        %v3787 = vadd.f32 0.0, %v3786
        %v3788 = vpop.f32.mrb[0].mxu0
        %3789 = vmatprep.mubr.bf16.mxu0 0
        %3790 = vmatmul.mubr.bf16.gmra.mrb[0].mxu0 %v1235
        %v3791 = vpop.f32.mrb[0].mxu0
        %v3792 = vadd.f32 0.0, %v3791
        %v3793 = vpop.f32.mrb[0].mxu0
        %v3794 = vpop.f32.mrb[0].mxu0
        %v3795 = vadd.f32 0.0, %v3794
        %v3796 = vpop.f32.mrb[0].mxu0
        %3797 = vmatprep.mubr.bf16.mxu0 0
        %3798 = vmatmul.mubr.bf16.gmra.mrb[0].mxu0 %v1238
        %v3799 = vpop.f32.mrb[0].mxu0
        %v3800 = vadd.f32 0.0, %v3799
        %v3801 = vpop.f32.mrb[0].mxu0
        %v3802 = vpop.f32.mrb[0].mxu0
        %v3803 = vadd.f32 0.0, %v3802
        %v3804 = vpop.f32.mrb[0].mxu0
        %3805 = vmatprep.mubr.bf16.mxu0 0
        %3806 = vmatmul.mubr.bf16.gmra.mrb[0].mxu0 %v1241
        %v3807 = vpop.f32.mrb[0].mxu0
        %v3808 = vadd.f32 0.0, %v3807
        %v3809 = vpop.f32.mrb[0].mxu0
        %v3810 = vpop.f32.mrb[0].mxu0
        %v3811 = vadd.f32 0.0, %v3810
        %v3812 = vpop.f32.mrb[0].mxu0
        %3813 = vmatprep.mubr.bf16.mxu0 0
        %3814 = vmatmul.mubr.bf16.gmra.mrb[0].mxu0 %v1244
        %v3815 = vpop.f32.mrb[0].mxu0
        %v3816 = vadd.f32 0.0, %v3815
        %v3817 = vpop.f32.mrb[0].mxu0
        %v3818 = vpop.f32.mrb[0].mxu0
        %v3819 = vadd.f32 0.0, %v3818
        %v3820 = vpop.f32.mrb[0].mxu0
        %3821 = vmatprep.mubr.bf16.mxu0 0
        %3822 = vmatmul.mubr.bf16.gmra.mrb[0].mxu0 %v1247
        %v3823 = vpop.f32.mrb[0].mxu0
        %v3824 = vadd.f32 0.0, %v3823
        %v3825 = vpop.f32.mrb[0].mxu0
        %v3826 = vpop.f32.mrb[0].mxu0
        %v3827 = vadd.f32 0.0, %v3826
        %v3828 = vpop.f32.mrb[0].mxu0
        %3829 = vmatprep.mubr.bf16.mxu0 0
        %3830 = vmatmul.mubr.bf16.gmra.mrb[0].mxu0 %v1250
        %v3831 = vpop.f32.mrb[0].mxu0
        %v3832 = vadd.f32 0.0, %v3831
        %v3833 = vpop.f32.mrb[0].mxu0
        %v3834 = vpop.f32.mrb[0].mxu0
        %v3835 = vadd.f32 0.0, %v3834
        %v3836 = vpop.f32.mrb[0].mxu0
        %3837 = vmatprep.mubr.bf16.mxu0 0
        %3838 = vmatmul.mubr.bf16.gmra.mrb[0].mxu0 %v1253
        %v3839 = vpop.f32.mrb[0].mxu0
        %v3840 = vadd.f32 0.0, %v3839
        %v3841 = vpop.f32.mrb[0].mxu0
        %v3842 = vpop.f32.mrb[0].mxu0
        %v3843 = vadd.f32 0.0, %v3842
        %v3844 = vpop.f32.mrb[0].mxu0
        %3845 = vmatprep.mubr.bf16.mxu0 0
        %3846 = vmatmul.mubr.bf16.gmra.mrb[0].mxu0 %v1256
        %v3847 = vpop.f32.mrb[0].mxu0
        %v3848 = vadd.f32 0.0, %v3847
        %v3849 = vpop.f32.mrb[0].mxu0
        %v3850 = vpop.f32.mrb[0].mxu0
        %v3851 = vadd.f32 0.0, %v3850
        %v3852 = vpop.f32.mrb[0].mxu0
        %3853 = vmatprep.mubr.bf16.mxu0 0
        %3854 = vmatmul.mubr.bf16.gmra.mrb[0].mxu0 %v1259
        %v3855 = vpop.f32.mrb[0].mxu0
        %v3856 = vadd.f32 0.0, %v3855
        %v3857 = vpop.f32.mrb[0].mxu0
        %v3858 = vpop.f32.mrb[0].mxu0
        %v3859 = vadd.f32 0.0, %v3858
        %v3860 = vpop.f32.mrb[0].mxu0
        %3861 = vmatprep.mubr.bf16.mxu0 0
        %3862 = vmatmul.mubr.bf16.gmra.mrb[0].mxu0 %v1262
        %v3863 = vpop.f32.mrb[0].mxu0
        %v3864 = vadd.f32 0.0, %v3863
        %v3865 = vpop.f32.mrb[0].mxu0
        %v3866 = vpop.f32.mrb[0].mxu0
        %v3867 = vadd.f32 0.0, %v3866
        %v3868 = vpop.f32.mrb[0].mxu0
        %3869 = vmatprep.mubr.bf16.mxu0 0
        %3870 = vmatmul.mubr.bf16.gmra.mrb[0].mxu0 %v1265
        %v3871 = vpop.f32.mrb[0].mxu0
        %v3872 = vadd.f32 0.0, %v3871
        %v3873 = vpop.f32.mrb[0].mxu0
        %v3874 = vpop.f32.mrb[0].mxu0
        %v3875 = vadd.f32 0.0, %v3874
        %v3876 = vpop.f32.mrb[0].mxu0
        %3877 = vmatprep.mubr.bf16.mxu0 0
        %3878 = vmatmul.mubr.bf16.gmra.mrb[0].mxu0 %v1268
        %v3879 = vpop.f32.mrb[0].mxu0
        %v3880 = vadd.f32 0.0, %v3879
        %v3881 = vpop.f32.mrb[0].mxu0
        %v3882 = vpop.f32.mrb[0].mxu0
        %v3883 = vadd.f32 0.0, %v3882
        %v3884 = vpop.f32.mrb[0].mxu0
        %3885 = vmatprep.mubr.bf16.mxu0 0
        %3886 = vmatmul.mubr.bf16.gmra.mrb[0].mxu0 %v1440
        %v3887 = vpop.f32.mrb[0].mxu0
        %v3888 = vadd.f32 0.0, %v3887
        %v3889 = vpop.f32.mrb[0].mxu0
        %v3890 = vpop.f32.mrb[0].mxu0
        %v3891 = vadd.f32 0.0, %v3890
        %v3892 = vpop.f32.mrb[0].mxu0
        %3893 = vmatprep.mubr.bf16.mxu0 0
        %3894 = vmatmul.mubr.bf16.gmra.mrb[0].mxu0 %v3736
        %v3895 = vpop.f32.mrb[0].mxu0
        %v3896 = vadd.f32 0.0, %v3895
        %v3897 = vpop.f32.mrb[0].mxu0
        %v3898 = vpop.f32.mrb[0].mxu0
        %v3899 = vadd.f32 0.0, %v3898
        %v3900 = vpop.f32.mrb[0].mxu0
        %3901 = vdwg.mxu0
        %v3902 = vadd.f32 %v3604, %v3776
        %v3903 = vadd.f32 %v3607, %v3779
        %v3904 = vadd.f32 %v3612, %v3784
        %v3905 = vadd.f32 %v3615, %v3787
        %v3906 = vadd.f32 %v3620, %v3792
        %v3907 = vadd.f32 %v3623, %v3795
        %v3908 = vadd.f32 %v3628, %v3800
        %v3909 = vadd.f32 %v3631, %v3803
        %v3910 = vadd.f32 %v3636, %v3808
        %v3911 = vadd.f32 %v3639, %v3811
        %v3912 = vadd.f32 %v3644, %v3816
        %v3913 = vadd.f32 %v3647, %v3819
        %v3914 = vadd.f32 %v3652, %v3824
        %v3915 = vadd.f32 %v3655, %v3827
        %v3916 = vadd.f32 %v3660, %v3832
        %v3917 = vadd.f32 %v3663, %v3835
        %v3918 = vadd.f32 %v3668, %v3840
        %v3919 = vadd.f32 %v3671, %v3843
        %v3920 = vadd.f32 %v3676, %v3848
        %v3921 = vadd.f32 %v3679, %v3851
        %v3922 = vadd.f32 %v3684, %v3856
        %v3923 = vadd.f32 %v3687, %v3859
        %v3924 = vadd.f32 %v3692, %v3864
        %v3925 = vadd.f32 %v3695, %v3867
        %v3926 = vadd.f32 %v3700, %v3872
        %v3927 = vadd.f32 %v3703, %v3875
        %v3928 = vadd.f32 %v3708, %v3880
        %v3929 = vadd.f32 %v3711, %v3883
        %v3930 = vadd.f32 %v3716, %v3888
        %v3931 = vadd.f32 %v3719, %v3891
        %v3932 = vadd.f32 %v3724, %v3896
        %v3933 = vadd.f32 %v3727, %v3899
        %s3934 = scalar_lea.vmem [#allocation5], 44
        %v3935 = vld [vmem:[%s3934] sm:$0xf]
        %v3936 = vunpack.c.l.b16 %v888
        %v3937 = vunpack.c.l.b16 %v898
        %v3938 = vpack.c.b16 %v3937, %v3936
        %v3940 = vsel %vm960, %v3938, 0
        %v3943 = vsel %vm1009, %v3935, 0
        %3945 = vmatprep.subr.bf16.mxu0 0
        %3946 = vmatpush1.bf16.msra.mxu0 %v3943
        %3947 = vmatprep.subr.bf16.mxu0 0
        %3948 = vmatpush1.bf16.msra.mxu0 0
        %3949 = vmatprep.subr.bf16.mxu0 0
        %3950 = vmatpush1.bf16.msra.mxu0 0
        %3951 = vmatprep.subr.bf16.mxu0 0
        %3952 = vmatpush1.bf16.msra.mxu0 0
        %3953 = vmatprep.subr.bf16.mxu0 0
        %3954 = vmatpush1.bf16.msra.mxu0 0
        %3955 = vmatprep.subr.bf16.mxu0 0
        %3956 = vmatpush1.bf16.msra.mxu0 0
        %3957 = vmatprep.subr.bf16.mxu0 0
        %3958 = vmatpush1.bf16.msra.mxu0 0
        %3959 = vmatprep.subr.bf16.mxu0 0
        %3960 = vmatpush1.bf16.msra.mxu0 0
        %3961 = vmatprep.subr.bf16.mxu0 0
        %3962 = vmatpush1.bf16.msra.mxu0 0
        %3963 = vmatprep.subr.bf16.mxu0 0
        %3964 = vmatpush1.bf16.msra.mxu0 0
        %3965 = vmatprep.subr.bf16.mxu0 0
        %3966 = vmatpush1.bf16.msra.mxu0 0
        %3967 = vmatprep.subr.bf16.mxu0 0
        %3968 = vmatpush1.bf16.msra.mxu0 0
        %3969 = vmatprep.subr.bf16.mxu0 0
        %3970 = vmatpush1.bf16.msra.mxu0 0
        %3971 = vmatprep.subr.bf16.mxu0 0
        %3972 = vmatpush1.bf16.msra.mxu0 0
        %3973 = vmatprep.subr.bf16.mxu0 0
        %3974 = vmatpush1.bf16.msra.mxu0 0
        %3975 = vmatprep.subr.bf16.mxu0 0
        %3976 = vmatpush1.bf16.msra.mxu0 0
        %3977 = vmatprep.mubr.bf16.mxu0 0
        %3978 = vmatmul.mubr.bf16.gmra.mrb[0].mxu0 %v968
        %v3979 = vpop.f32.mrb[0].mxu0
        %v3980 = vadd.f32 0.0, %v3979
        %v3981 = vpop.f32.mrb[0].mxu0
        %v3982 = vpop.f32.mrb[0].mxu0
        %v3983 = vadd.f32 0.0, %v3982
        %v3984 = vpop.f32.mrb[0].mxu0
        %3985 = vmatprep.mubr.bf16.mxu0 0
        %3986 = vmatmul.mubr.bf16.gmra.mrb[0].mxu0 %v971
        %v3987 = vpop.f32.mrb[0].mxu0
        %v3988 = vadd.f32 0.0, %v3987
        %v3989 = vpop.f32.mrb[0].mxu0
        %v3990 = vpop.f32.mrb[0].mxu0
        %v3991 = vadd.f32 0.0, %v3990
        %v3992 = vpop.f32.mrb[0].mxu0
        %3993 = vmatprep.mubr.bf16.mxu0 0
        %3994 = vmatmul.mubr.bf16.gmra.mrb[0].mxu0 %v974
        %v3995 = vpop.f32.mrb[0].mxu0
        %v3996 = vadd.f32 0.0, %v3995
        %v3997 = vpop.f32.mrb[0].mxu0
        %v3998 = vpop.f32.mrb[0].mxu0
        %v3999 = vadd.f32 0.0, %v3998
        %v4000 = vpop.f32.mrb[0].mxu0
        %4001 = vmatprep.mubr.bf16.mxu0 0
        %4002 = vmatmul.mubr.bf16.gmra.mrb[0].mxu0 %v977
        %v4003 = vpop.f32.mrb[0].mxu0
        %v4004 = vadd.f32 0.0, %v4003
        %v4005 = vpop.f32.mrb[0].mxu0
        %v4006 = vpop.f32.mrb[0].mxu0
        %v4007 = vadd.f32 0.0, %v4006
        %v4008 = vpop.f32.mrb[0].mxu0
        %4009 = vmatprep.mubr.bf16.mxu0 0
        %4010 = vmatmul.mubr.bf16.gmra.mrb[0].mxu0 %v980
        %v4011 = vpop.f32.mrb[0].mxu0
        %v4012 = vadd.f32 0.0, %v4011
        %v4013 = vpop.f32.mrb[0].mxu0
        %v4014 = vpop.f32.mrb[0].mxu0
        %v4015 = vadd.f32 0.0, %v4014
        %v4016 = vpop.f32.mrb[0].mxu0
        %4017 = vmatprep.mubr.bf16.mxu0 0
        %4018 = vmatmul.mubr.bf16.gmra.mrb[0].mxu0 %v983
        %v4019 = vpop.f32.mrb[0].mxu0
        %v4020 = vadd.f32 0.0, %v4019
        %v4021 = vpop.f32.mrb[0].mxu0
        %v4022 = vpop.f32.mrb[0].mxu0
        %v4023 = vadd.f32 0.0, %v4022
        %v4024 = vpop.f32.mrb[0].mxu0
        %4025 = vmatprep.mubr.bf16.mxu0 0
        %4026 = vmatmul.mubr.bf16.gmra.mrb[0].mxu0 %v986
        %v4027 = vpop.f32.mrb[0].mxu0
        %v4028 = vadd.f32 0.0, %v4027
        %v4029 = vpop.f32.mrb[0].mxu0
        %v4030 = vpop.f32.mrb[0].mxu0
        %v4031 = vadd.f32 0.0, %v4030
        %v4032 = vpop.f32.mrb[0].mxu0
        %4033 = vmatprep.mubr.bf16.mxu0 0
        %4034 = vmatmul.mubr.bf16.gmra.mrb[0].mxu0 %v989
        %v4035 = vpop.f32.mrb[0].mxu0
        %v4036 = vadd.f32 0.0, %v4035
        %v4037 = vpop.f32.mrb[0].mxu0
        %v4038 = vpop.f32.mrb[0].mxu0
        %v4039 = vadd.f32 0.0, %v4038
        %v4040 = vpop.f32.mrb[0].mxu0
        %4041 = vmatprep.mubr.bf16.mxu0 0
        %4042 = vmatmul.mubr.bf16.gmra.mrb[0].mxu0 %v992
        %v4043 = vpop.f32.mrb[0].mxu0
        %v4044 = vadd.f32 0.0, %v4043
        %v4045 = vpop.f32.mrb[0].mxu0
        %v4046 = vpop.f32.mrb[0].mxu0
        %v4047 = vadd.f32 0.0, %v4046
        %v4048 = vpop.f32.mrb[0].mxu0
        %4049 = vmatprep.mubr.bf16.mxu0 0
        %4050 = vmatmul.mubr.bf16.gmra.mrb[0].mxu0 %v995
        %v4051 = vpop.f32.mrb[0].mxu0
        %v4052 = vadd.f32 0.0, %v4051
        %v4053 = vpop.f32.mrb[0].mxu0
        %v4054 = vpop.f32.mrb[0].mxu0
        %v4055 = vadd.f32 0.0, %v4054
        %v4056 = vpop.f32.mrb[0].mxu0
        %4057 = vmatprep.mubr.bf16.mxu0 0
        %4058 = vmatmul.mubr.bf16.gmra.mrb[0].mxu0 %v998
        %v4059 = vpop.f32.mrb[0].mxu0
        %v4060 = vadd.f32 0.0, %v4059
        %v4061 = vpop.f32.mrb[0].mxu0
        %v4062 = vpop.f32.mrb[0].mxu0
        %v4063 = vadd.f32 0.0, %v4062
        %v4064 = vpop.f32.mrb[0].mxu0
        %4065 = vmatprep.mubr.bf16.mxu0 0
        %4066 = vmatmul.mubr.bf16.gmra.mrb[0].mxu0 %v1001
        %v4067 = vpop.f32.mrb[0].mxu0
        %v4068 = vadd.f32 0.0, %v4067
        %v4069 = vpop.f32.mrb[0].mxu0
        %v4070 = vpop.f32.mrb[0].mxu0
        %v4071 = vadd.f32 0.0, %v4070
        %v4072 = vpop.f32.mrb[0].mxu0
        %4073 = vmatprep.mubr.bf16.mxu0 0
        %4074 = vmatmul.mubr.bf16.gmra.mrb[0].mxu0 %v1004
        %v4075 = vpop.f32.mrb[0].mxu0
        %v4076 = vadd.f32 0.0, %v4075
        %v4077 = vpop.f32.mrb[0].mxu0
        %v4078 = vpop.f32.mrb[0].mxu0
        %v4079 = vadd.f32 0.0, %v4078
        %v4080 = vpop.f32.mrb[0].mxu0
        %4081 = vmatprep.mubr.bf16.mxu0 0
        %4082 = vmatmul.mubr.bf16.gmra.mrb[0].mxu0 %v1007
        %v4083 = vpop.f32.mrb[0].mxu0
        %v4084 = vadd.f32 0.0, %v4083
        %v4085 = vpop.f32.mrb[0].mxu0
        %v4086 = vpop.f32.mrb[0].mxu0
        %v4087 = vadd.f32 0.0, %v4086
        %v4088 = vpop.f32.mrb[0].mxu0
        %4089 = vmatprep.mubr.bf16.mxu0 0
        %4090 = vmatmul.mubr.bf16.gmra.mrb[0].mxu0 %v1644
        %v4091 = vpop.f32.mrb[0].mxu0
        %v4092 = vadd.f32 0.0, %v4091
        %v4093 = vpop.f32.mrb[0].mxu0
        %v4094 = vpop.f32.mrb[0].mxu0
        %v4095 = vadd.f32 0.0, %v4094
        %v4096 = vpop.f32.mrb[0].mxu0
        %4097 = vmatprep.mubr.bf16.mxu0 0
        %4098 = vmatmul.mubr.bf16.gmra.mrb[0].mxu0 %v3940
        %v4099 = vpop.f32.mrb[0].mxu0
        %v4100 = vadd.f32 0.0, %v4099
        %v4101 = vpop.f32.mrb[0].mxu0
        %v4102 = vpop.f32.mrb[0].mxu0
        %v4103 = vadd.f32 0.0, %v4102
        %v4104 = vpop.f32.mrb[0].mxu0
        %4105 = vdwg.mxu0
        %v4106 = vadd.f32 %v3902, %v3980
        %v4107 = vadd.f32 %v3903, %v3983
        %v4108 = vadd.f32 %v3904, %v3988
        %v4109 = vadd.f32 %v3905, %v3991
        %v4110 = vadd.f32 %v3906, %v3996
        %v4111 = vadd.f32 %v3907, %v3999
        %v4112 = vadd.f32 %v3908, %v4004
        %v4113 = vadd.f32 %v3909, %v4007
        %v4114 = vadd.f32 %v3910, %v4012
        %v4115 = vadd.f32 %v3911, %v4015
        %v4116 = vadd.f32 %v3912, %v4020
        %v4117 = vadd.f32 %v3913, %v4023
        %v4118 = vadd.f32 %v3914, %v4028
        %v4119 = vadd.f32 %v3915, %v4031
        %v4120 = vadd.f32 %v3916, %v4036
        %v4121 = vadd.f32 %v3917, %v4039
        %v4122 = vadd.f32 %v3918, %v4044
        %v4123 = vadd.f32 %v3919, %v4047
        %v4124 = vadd.f32 %v3920, %v4052
        %v4125 = vadd.f32 %v3921, %v4055
        %v4126 = vadd.f32 %v3922, %v4060
        %v4127 = vadd.f32 %v3923, %v4063
        %v4128 = vadd.f32 %v3924, %v4068
        %v4129 = vadd.f32 %v3925, %v4071
        %v4130 = vadd.f32 %v3926, %v4076
        %v4131 = vadd.f32 %v3927, %v4079
        %v4132 = vadd.f32 %v3928, %v4084
        %v4133 = vadd.f32 %v3929, %v4087
        %v4134 = vadd.f32 %v3930, %v4092
        %v4135 = vadd.f32 %v3931, %v4095
        %v4136 = vadd.f32 %v3932, %v4100
        %v4137 = vadd.f32 %v3933, %v4103
        %v4138 = vsel %vm960, %v4106, 0.0
        %v4139 = vsel %vm960, %v4107, 0.0
        %v4140 = vadd.f32 %v4138, %v4139
        %v4141 = vsel %vm960, %v4108, 0.0
        %v4142 = vadd.f32 %v4140, %v4141
        %v4143 = vsel %vm960, %v4109, 0.0
        %v4144 = vadd.f32 %v4142, %v4143
        %v4145 = vsel %vm960, %v4110, 0.0
        %v4146 = vadd.f32 %v4144, %v4145
        %v4147 = vsel %vm960, %v4111, 0.0
        %v4148 = vadd.f32 %v4146, %v4147
        %v4149 = vsel %vm960, %v4112, 0.0
        %v4150 = vadd.f32 %v4148, %v4149
        %v4151 = vsel %vm960, %v4113, 0.0
        %v4152 = vadd.f32 %v4150, %v4151
        %v4153 = vsel %vm960, %v4114, 0.0
        %v4154 = vadd.f32 %v4152, %v4153
        %v4155 = vsel %vm960, %v4115, 0.0
        %v4156 = vadd.f32 %v4154, %v4155
        %v4157 = vsel %vm960, %v4116, 0.0
        %v4158 = vadd.f32 %v4156, %v4157
        %v4159 = vsel %vm960, %v4117, 0.0
        %v4160 = vadd.f32 %v4158, %v4159
        %v4161 = vsel %vm960, %v4118, 0.0
        %v4162 = vadd.f32 %v4160, %v4161
        %v4163 = vsel %vm960, %v4119, 0.0
        %v4164 = vadd.f32 %v4162, %v4163
        %v4165 = vsel %vm960, %v4120, 0.0
        %v4166 = vadd.f32 %v4164, %v4165
        %v4167 = vsel %vm960, %v4121, 0.0
        %v4168 = vadd.f32 %v4166, %v4167
        %v4169 = vsel %vm960, %v4122, 0.0
        %v4170 = vadd.f32 %v4168, %v4169
        %v4171 = vsel %vm960, %v4123, 0.0
        %v4172 = vadd.f32 %v4170, %v4171
        %v4173 = vsel %vm960, %v4124, 0.0
        %v4174 = vadd.f32 %v4172, %v4173
        %v4175 = vsel %vm960, %v4125, 0.0
        %v4176 = vadd.f32 %v4174, %v4175
        %v4177 = vsel %vm960, %v4126, 0.0
        %v4178 = vadd.f32 %v4176, %v4177
        %v4179 = vsel %vm960, %v4127, 0.0
        %v4180 = vadd.f32 %v4178, %v4179
        %v4181 = vsel %vm960, %v4128, 0.0
        %v4182 = vadd.f32 %v4180, %v4181
        %v4183 = vsel %vm960, %v4129, 0.0
        %v4184 = vadd.f32 %v4182, %v4183
        %v4185 = vsel %vm960, %v4130, 0.0
        %v4186 = vadd.f32 %v4184, %v4185
        %v4187 = vsel %vm960, %v4131, 0.0
        %v4188 = vadd.f32 %v4186, %v4187
        %v4189 = vsel %vm960, %v4132, 0.0
        %v4190 = vadd.f32 %v4188, %v4189
        %v4191 = vsel %vm960, %v4133, 0.0
        %v4192 = vadd.f32 %v4190, %v4191
        %v4193 = vsel %vm960, %v4134, 0.0
        %v4194 = vadd.f32 %v4192, %v4193
        %v4195 = vsel %vm960, %v4135, 0.0
        %v4196 = vadd.f32 %v4194, %v4195
        %v4197 = vsel %vm960, %v4136, 0.0
        %v4198 = vadd.f32 %v4196, %v4197
        %v4199 = vsel %vm960, %v4137, 0.0
        %v4200 = vadd.f32 %v4198, %v4199
        %v4201 = vrot.slane %v4200, 4
        %v4202 = vadd.f32 %v4200, %v4201
        %v4203 = vrot.slane %v4202, 2
        %v4204 = vadd.f32 %v4202, %v4203
        %v4205 = vrot.slane %v4204, 1
        %v4206 = vadd.f32 %v4204, %v4205
        %v4207 = vmul.f32 %v4106, %v4106
        %v4208 = vmul.f32 %v4107, %v4107
        %v4209 = vmul.f32 %v4108, %v4108
        %v4210 = vmul.f32 %v4109, %v4109
        %v4211 = vmul.f32 %v4110, %v4110
        %v4212 = vmul.f32 %v4111, %v4111
        %v4213 = vmul.f32 %v4112, %v4112
        %v4214 = vmul.f32 %v4113, %v4113
        %v4215 = vmul.f32 %v4114, %v4114
        %v4216 = vmul.f32 %v4115, %v4115
        %v4217 = vmul.f32 %v4116, %v4116
        %v4218 = vmul.f32 %v4117, %v4117
        %v4219 = vmul.f32 %v4118, %v4118
        %v4220 = vmul.f32 %v4119, %v4119
        %v4221 = vmul.f32 %v4120, %v4120
        %v4222 = vmul.f32 %v4121, %v4121
        %v4223 = vmul.f32 %v4122, %v4122
        %v4224 = vmul.f32 %v4123, %v4123
        %v4225 = vmul.f32 %v4124, %v4124
        %v4226 = vmul.f32 %v4125, %v4125
        %v4227 = vmul.f32 %v4126, %v4126
        %v4228 = vmul.f32 %v4127, %v4127
        %v4229 = vmul.f32 %v4128, %v4128
        %v4230 = vmul.f32 %v4129, %v4129
        %v4231 = vmul.f32 %v4130, %v4130
        %v4232 = vmul.f32 %v4131, %v4131
        %v4233 = vmul.f32 %v4132, %v4132
        %v4234 = vmul.f32 %v4133, %v4133
        %v4235 = vmul.f32 %v4134, %v4134
        %v4236 = vmul.f32 %v4135, %v4135
        %v4237 = vmul.f32 %v4136, %v4136
        %v4238 = vmul.f32 %v4137, %v4137
        %v4239 = vsel %vm960, %v4207, 0.0
        %v4240 = vsel %vm960, %v4208, 0.0
        %v4241 = vadd.f32 %v4239, %v4240
        %v4242 = vsel %vm960, %v4209, 0.0
        %v4243 = vadd.f32 %v4241, %v4242
        %v4244 = vsel %vm960, %v4210, 0.0
        %v4245 = vadd.f32 %v4243, %v4244
        %v4246 = vsel %vm960, %v4211, 0.0
        %v4247 = vadd.f32 %v4245, %v4246
        %v4248 = vsel %vm960, %v4212, 0.0
        %v4249 = vadd.f32 %v4247, %v4248
        %v4250 = vsel %vm960, %v4213, 0.0
        %v4251 = vadd.f32 %v4249, %v4250
        %v4252 = vsel %vm960, %v4214, 0.0
        %v4253 = vadd.f32 %v4251, %v4252
        %v4254 = vsel %vm960, %v4215, 0.0
        %v4255 = vadd.f32 %v4253, %v4254
        %v4256 = vsel %vm960, %v4216, 0.0
        %v4257 = vadd.f32 %v4255, %v4256
        %v4258 = vsel %vm960, %v4217, 0.0
        %v4259 = vadd.f32 %v4257, %v4258
        %v4260 = vsel %vm960, %v4218, 0.0
        %v4261 = vadd.f32 %v4259, %v4260
        %v4262 = vsel %vm960, %v4219, 0.0
        %v4263 = vadd.f32 %v4261, %v4262
        %v4264 = vsel %vm960, %v4220, 0.0
        %v4265 = vadd.f32 %v4263, %v4264
        %v4266 = vsel %vm960, %v4221, 0.0
        %v4267 = vadd.f32 %v4265, %v4266
        %v4268 = vsel %vm960, %v4222, 0.0
        %v4269 = vadd.f32 %v4267, %v4268
        %v4270 = vsel %vm960, %v4223, 0.0
        %v4271 = vadd.f32 %v4269, %v4270
        %v4272 = vsel %vm960, %v4224, 0.0
        %v4273 = vadd.f32 %v4271, %v4272
        %v4274 = vsel %vm960, %v4225, 0.0
        %v4275 = vadd.f32 %v4273, %v4274
        %v4276 = vsel %vm960, %v4226, 0.0
        %v4277 = vadd.f32 %v4275, %v4276
        %v4278 = vsel %vm960, %v4227, 0.0
        %v4279 = vadd.f32 %v4277, %v4278
        %v4280 = vsel %vm960, %v4228, 0.0
        %v4281 = vadd.f32 %v4279, %v4280
        %v4282 = vsel %vm960, %v4229, 0.0
        %v4283 = vadd.f32 %v4281, %v4282
        %v4284 = vsel %vm960, %v4230, 0.0
        %v4285 = vadd.f32 %v4283, %v4284
        %v4286 = vsel %vm960, %v4231, 0.0
        %v4287 = vadd.f32 %v4285, %v4286
        %v4288 = vsel %vm960, %v4232, 0.0
        %v4289 = vadd.f32 %v4287, %v4288
        %v4290 = vsel %vm960, %v4233, 0.0
        %v4291 = vadd.f32 %v4289, %v4290
        %v4292 = vsel %vm960, %v4234, 0.0
        %v4293 = vadd.f32 %v4291, %v4292
        %v4294 = vsel %vm960, %v4235, 0.0
        %v4295 = vadd.f32 %v4293, %v4294
        %v4296 = vsel %vm960, %v4236, 0.0
        %v4297 = vadd.f32 %v4295, %v4296
        %v4298 = vsel %vm960, %v4237, 0.0
        %v4299 = vadd.f32 %v4297, %v4298
        %v4300 = vsel %vm960, %v4238, 0.0
        %v4301 = vadd.f32 %v4299, %v4300
        %v4302 = vrot.slane %v4301, 4
        %v4303 = vadd.f32 %v4301, %v4302
        %v4304 = vrot.slane %v4303, 2
        %v4305 = vadd.f32 %v4303, %v4304
        %v4306 = vrot.slane %v4305, 1
        %v4307 = vadd.f32 %v4305, %v4306
        %v4308 = vpack.c.bf16 %v4107, %v4106
        %v4309 = vpack.c.bf16 %v4109, %v4108
        %v4310 = vpack.c.bf16 %v4111, %v4110
        %v4311 = vpack.c.bf16 %v4113, %v4112
        %v4312 = vpack.c.bf16 %v4115, %v4114
        %v4313 = vpack.c.bf16 %v4117, %v4116
        %v4314 = vpack.c.bf16 %v4119, %v4118
        %v4315 = vpack.c.bf16 %v4121, %v4120
        %v4316 = vpack.c.bf16 %v4123, %v4122
        %v4317 = vpack.c.bf16 %v4125, %v4124
        %v4318 = vpack.c.bf16 %v4127, %v4126
        %v4319 = vpack.c.bf16 %v4129, %v4128
        %v4320 = vpack.c.bf16 %v4131, %v4130
        %v4321 = vpack.c.bf16 %v4133, %v4132
        %v4322 = vpack.c.bf16 %v4135, %v4134
        %v4323 = vpack.c.bf16 %v4137, %v4136
        %v4340 = vunpack.c.l.b16 %v4308
        %v4341 = vunpack.c.h.b16 %v4308
        %v4342 = vunpack.c.l.b16 %v4309
        %v4343 = vunpack.c.h.b16 %v4309
        %v4344 = vunpack.c.l.b16 %v4310
        %v4345 = vunpack.c.h.b16 %v4310
        %v4346 = vunpack.c.l.b16 %v4311
        %v4347 = vunpack.c.h.b16 %v4311
        %v4348 = vunpack.c.l.b16 %v4312
        %v4349 = vunpack.c.h.b16 %v4312
        %v4350 = vunpack.c.l.b16 %v4313
        %v4351 = vunpack.c.h.b16 %v4313
        %v4352 = vunpack.c.l.b16 %v4314
        %v4353 = vunpack.c.h.b16 %v4314
        %v4354 = vunpack.c.l.b16 %v4315
        %v4355 = vunpack.c.h.b16 %v4315
        %v4356 = vunpack.c.l.b16 %v4316
        %v4357 = vunpack.c.h.b16 %v4316
        %v4358 = vunpack.c.l.b16 %v4317
        %v4359 = vunpack.c.h.b16 %v4317
        %v4360 = vunpack.c.l.b16 %v4318
        %v4361 = vunpack.c.h.b16 %v4318
        %v4362 = vunpack.c.l.b16 %v4319
        %v4363 = vunpack.c.h.b16 %v4319
        %v4364 = vunpack.c.l.b16 %v4320
        %v4365 = vunpack.c.h.b16 %v4320
        %v4366 = vunpack.c.l.b16 %v4321
        %v4367 = vunpack.c.h.b16 %v4321
        %v4368 = vunpack.c.l.b16 %v4322
        %v4369 = vunpack.c.h.b16 %v4322
        %v4370 = vunpack.c.l.b16 %v4323
        %v4371 = vunpack.c.h.b16 %v4323
        %v4372 = vpack.c.b16 %v4340, %v4340
        %v4373 = vpack.c.b16 %v4341, %v4341
        %v4374 = vpack.c.b16 %v4342, %v4342
        %v4375 = vpack.c.b16 %v4343, %v4343
        %v4376 = vpack.c.b16 %v4344, %v4344
        %v4377 = vpack.c.b16 %v4345, %v4345
        %v4378 = vpack.c.b16 %v4346, %v4346
        %v4379 = vpack.c.b16 %v4347, %v4347
        %v4380 = vpack.c.b16 %v4348, %v4348
        %v4381 = vpack.c.b16 %v4349, %v4349
        %v4382 = vpack.c.b16 %v4350, %v4350
        %v4383 = vpack.c.b16 %v4351, %v4351
        %v4384 = vpack.c.b16 %v4352, %v4352
        %v4385 = vpack.c.b16 %v4353, %v4353
        %v4386 = vpack.c.b16 %v4354, %v4354
        %v4387 = vpack.c.b16 %v4355, %v4355
        %v4388 = vpack.c.b16 %v4356, %v4356
        %v4389 = vpack.c.b16 %v4357, %v4357
        %v4390 = vpack.c.b16 %v4358, %v4358
        %v4391 = vpack.c.b16 %v4359, %v4359
        %v4392 = vpack.c.b16 %v4360, %v4360
        %v4393 = vpack.c.b16 %v4361, %v4361
        %v4394 = vpack.c.b16 %v4362, %v4362
        %v4395 = vpack.c.b16 %v4363, %v4363
        %v4396 = vpack.c.b16 %v4364, %v4364
        %v4397 = vpack.c.b16 %v4365, %v4365
        %v4398 = vpack.c.b16 %v4366, %v4366
        %v4399 = vpack.c.b16 %v4367, %v4367
        %v4400 = vpack.c.b16 %v4368, %v4368
        %v4401 = vpack.c.b16 %v4369, %v4369
        %v4402 = vpack.c.b16 %v4370, %v4370
        %v4403 = vpack.c.b16 %v4371, %v4371
        %4404 = vrot.lane.b32.xlu0 %v4372, 16
        %v4405 = vpop.permute.xlu0 %4404
        %4406 = vrot.lane.b32.xlu0 %v4373, 16
        %v4407 = vpop.permute.xlu0 %4406
        %4408 = vrot.lane.b32.xlu0 %v4374, 16
        %v4409 = vpop.permute.xlu0 %4408
        %4410 = vrot.lane.b32.xlu0 %v4375, 16
        %v4411 = vpop.permute.xlu0 %4410
        %4412 = vrot.lane.b32.xlu0 %v4376, 16
        %v4413 = vpop.permute.xlu0 %4412
        %4414 = vrot.lane.b32.xlu0 %v4377, 16
        %v4415 = vpop.permute.xlu0 %4414
        %4416 = vrot.lane.b32.xlu0 %v4378, 16
        %v4417 = vpop.permute.xlu0 %4416
        %4418 = vrot.lane.b32.xlu0 %v4379, 16
        %v4419 = vpop.permute.xlu0 %4418
        %4420 = vrot.lane.b32.xlu0 %v4380, 16
        %v4421 = vpop.permute.xlu0 %4420
        %4422 = vrot.lane.b32.xlu0 %v4381, 16
        %v4423 = vpop.permute.xlu0 %4422
        %4424 = vrot.lane.b32.xlu0 %v4382, 16
        %v4425 = vpop.permute.xlu0 %4424
        %4426 = vrot.lane.b32.xlu0 %v4383, 16
        %v4427 = vpop.permute.xlu0 %4426
        %4428 = vrot.lane.b32.xlu0 %v4384, 16
        %v4429 = vpop.permute.xlu0 %4428
        %4430 = vrot.lane.b32.xlu0 %v4385, 16
        %v4431 = vpop.permute.xlu0 %4430
        %4432 = vrot.lane.b32.xlu0 %v4386, 16
        %v4433 = vpop.permute.xlu0 %4432
        %4434 = vrot.lane.b32.xlu0 %v4387, 16
        %v4435 = vpop.permute.xlu0 %4434
        %4436 = vrot.lane.b32.xlu0 %v4388, 16
        %v4437 = vpop.permute.xlu0 %4436
        %4438 = vrot.lane.b32.xlu0 %v4389, 16
        %v4439 = vpop.permute.xlu0 %4438
        %4440 = vrot.lane.b32.xlu0 %v4390, 16
        %v4441 = vpop.permute.xlu0 %4440
        %4442 = vrot.lane.b32.xlu0 %v4391, 16
        %v4443 = vpop.permute.xlu0 %4442
        %4444 = vrot.lane.b32.xlu0 %v4392, 16
        %v4445 = vpop.permute.xlu0 %4444
        %4446 = vrot.lane.b32.xlu0 %v4393, 16
        %v4447 = vpop.permute.xlu0 %4446
        %4448 = vrot.lane.b32.xlu0 %v4394, 16
        %v4449 = vpop.permute.xlu0 %4448
        %4450 = vrot.lane.b32.xlu0 %v4395, 16
        %v4451 = vpop.permute.xlu0 %4450
        %4452 = vrot.lane.b32.xlu0 %v4396, 16
        %v4453 = vpop.permute.xlu0 %4452
        %4454 = vrot.lane.b32.xlu0 %v4397, 16
        %v4455 = vpop.permute.xlu0 %4454
        %4456 = vrot.lane.b32.xlu0 %v4398, 16
        %v4457 = vpop.permute.xlu0 %4456
        %4458 = vrot.lane.b32.xlu0 %v4399, 16
        %v4459 = vpop.permute.xlu0 %4458
        %4460 = vrot.lane.b32.xlu0 %v4400, 16
        %v4461 = vpop.permute.xlu0 %4460
        %4462 = vrot.lane.b32.xlu0 %v4401, 16
        %v4463 = vpop.permute.xlu0 %4462
        %4464 = vrot.lane.b32.xlu0 %v4402, 16
        %v4465 = vpop.permute.xlu0 %4464
        %4466 = vrot.lane.b32.xlu0 %v4403, 16
        %v4467 = vpop.permute.xlu0 %4466
        %vm4500 = vcmask 191616
        %4501 = vst.msk [vmem:[%s223] sm:$0xf] %vm4500, %v4405
        %4502 = vst.msk [vmem:[%s223 + $0x4] sm:$0xf] %vm4500, %v4407
        %4503 = vst.msk [vmem:[%s223 + $0x8] sm:$0xf] %vm4500, %v4409
        %4504 = vst.msk [vmem:[%s223 + $0xc] sm:$0xf] %vm4500, %v4411
        %4505 = vst.msk [vmem:[%s223 + $0x10] sm:$0xf] %vm4500, %v4413
        %4506 = vst.msk [vmem:[%s223 + $0x14] sm:$0xf] %vm4500, %v4415
        %4507 = vst.msk [vmem:[%s223 + $0x18] sm:$0xf] %vm4500, %v4417
        %4508 = vst.msk [vmem:[%s223 + $0x1c] sm:$0xf] %vm4500, %v4419
        %4509 = vst.msk [vmem:[%s223 + $0x20] sm:$0xf] %vm4500, %v4421
        %4510 = vst.msk [vmem:[%s223 + $0x24] sm:$0xf] %vm4500, %v4423
        %4511 = vst.msk [vmem:[%s223 + $0x28] sm:$0xf] %vm4500, %v4425
        %4512 = vst.msk [vmem:[%s223 + $0x2c] sm:$0xf] %vm4500, %v4427
        %4513 = vst.msk [vmem:[%s223 + $0x30] sm:$0xf] %vm4500, %v4429
        %4514 = vst.msk [vmem:[%s223 + $0x34] sm:$0xf] %vm4500, %v4431
        %4515 = vst.msk [vmem:[%s223 + $0x38] sm:$0xf] %vm4500, %v4433
        %4516 = vst.msk [vmem:[%s223 + $0x3c] sm:$0xf] %vm4500, %v4435
        %4517 = vst.msk [vmem:[%s223 + $0x40] sm:$0xf] %vm4500, %v4437
        %4518 = vst.msk [vmem:[%s223 + $0x44] sm:$0xf] %vm4500, %v4439
        %4519 = vst.msk [vmem:[%s223 + $0x48] sm:$0xf] %vm4500, %v4441
        %4520 = vst.msk [vmem:[%s223 + $0x4c] sm:$0xf] %vm4500, %v4443
        %4521 = vst.msk [vmem:[%s223 + $0x50] sm:$0xf] %vm4500, %v4445
        %4522 = vst.msk [vmem:[%s223 + $0x54] sm:$0xf] %vm4500, %v4447
        %4523 = vst.msk [vmem:[%s223 + $0x58] sm:$0xf] %vm4500, %v4449
        %4524 = vst.msk [vmem:[%s223 + $0x5c] sm:$0xf] %vm4500, %v4451
        %4525 = vst.msk [vmem:[%s223 + $0x60] sm:$0xf] %vm4500, %v4453
        %4526 = vst.msk [vmem:[%s223 + $0x64] sm:$0xf] %vm4500, %v4455
        %4527 = vst.msk [vmem:[%s223 + $0x68] sm:$0xf] %vm4500, %v4457
        %4528 = vst.msk [vmem:[%s223 + $0x6c] sm:$0xf] %vm4500, %v4459
        %4529 = vst.msk [vmem:[%s223 + $0x70] sm:$0xf] %vm4500, %v4461
        %4530 = vst.msk [vmem:[%s223 + $0x74] sm:$0xf] %vm4500, %v4463
        %4531 = vst.msk [vmem:[%s223 + $0x78] sm:$0xf] %vm4500, %v4465
        %4532 = vst.msk [vmem:[%s223 + $0x7c] sm:$0xf] %vm4500, %v4467
        %s4533 = scalar_lea.vmem [#allocation5], 48
        %v4534 = vld [vmem:[%s4533] sm:$0xf]
        %s4535 = scalar_lea.vmem [#allocation5], 52
        %v4536 = vld [vmem:[%s4535] sm:$0xf]
        %v4538 = vsel %vm1009, %v4536, 0
        %4540 = vmatprep.subr.bf16.mxu0 0
        %4541 = vmatpush1.bf16.msra.mxu0 %v4538
        %4542 = vmatprep.subr.bf16.mxu0 0
        %4543 = vmatpush1.bf16.msra.mxu0 0
        %4544 = vmatprep.subr.bf16.mxu0 0
        %4545 = vmatpush1.bf16.msra.mxu0 0
        %4546 = vmatprep.subr.bf16.mxu0 0
        %4547 = vmatpush1.bf16.msra.mxu0 0
        %4548 = vmatprep.subr.bf16.mxu0 0
        %4549 = vmatpush1.bf16.msra.mxu0 0
        %4550 = vmatprep.subr.bf16.mxu0 0
        %4551 = vmatpush1.bf16.msra.mxu0 0
        %4552 = vmatprep.subr.bf16.mxu0 0
        %4553 = vmatpush1.bf16.msra.mxu0 0
        %4554 = vmatprep.subr.bf16.mxu0 0
        %4555 = vmatpush1.bf16.msra.mxu0 0
        %4556 = vmatprep.subr.bf16.mxu0 0
        %4557 = vmatpush1.bf16.msra.mxu0 0
        %4558 = vmatprep.subr.bf16.mxu0 0
        %4559 = vmatpush1.bf16.msra.mxu0 0
        %4560 = vmatprep.subr.bf16.mxu0 0
        %4561 = vmatpush1.bf16.msra.mxu0 0
        %4562 = vmatprep.subr.bf16.mxu0 0
        %4563 = vmatpush1.bf16.msra.mxu0 0
        %4564 = vmatprep.subr.bf16.mxu0 0
        %4565 = vmatpush1.bf16.msra.mxu0 0
        %4566 = vmatprep.subr.bf16.mxu0 0
        %4567 = vmatpush1.bf16.msra.mxu0 0
        %4568 = vmatprep.subr.bf16.mxu0 0
        %4569 = vmatpush1.bf16.msra.mxu0 0
        %4570 = vmatprep.subr.bf16.mxu0 0
        %4571 = vmatpush1.bf16.msra.mxu0 0
        %4572 = vmatprep.mubr.bf16.mxu0 0
        %4573 = vmatmul.mubr.bf16.gmra.mrb[0].mxu0 %v2229
        %v4574 = vpop.f32.mrb[0].mxu0
        %v4575 = vadd.f32 0.0, %v4574
        %v4576 = vpop.f32.mrb[0].mxu0
        %v4577 = vpop.f32.mrb[0].mxu0
        %v4578 = vadd.f32 0.0, %v4577
        %v4579 = vpop.f32.mrb[0].mxu0
        %4580 = vmatprep.mubr.bf16.mxu0 0
        %4581 = vmatmul.mubr.bf16.gmra.mrb[0].mxu0 %v2232
        %v4582 = vpop.f32.mrb[0].mxu0
        %v4583 = vadd.f32 0.0, %v4582
        %v4584 = vpop.f32.mrb[0].mxu0
        %v4585 = vpop.f32.mrb[0].mxu0
        %v4586 = vadd.f32 0.0, %v4585
        %v4587 = vpop.f32.mrb[0].mxu0
        %4588 = vmatprep.mubr.bf16.mxu0 0
        %4589 = vmatmul.mubr.bf16.gmra.mrb[0].mxu0 %v2235
        %v4590 = vpop.f32.mrb[0].mxu0
        %v4591 = vadd.f32 0.0, %v4590
        %v4592 = vpop.f32.mrb[0].mxu0
        %v4593 = vpop.f32.mrb[0].mxu0
        %v4594 = vadd.f32 0.0, %v4593
        %v4595 = vpop.f32.mrb[0].mxu0
        %4596 = vmatprep.mubr.bf16.mxu0 0
        %4597 = vmatmul.mubr.bf16.gmra.mrb[0].mxu0 %v2238
        %v4598 = vpop.f32.mrb[0].mxu0
        %v4599 = vadd.f32 0.0, %v4598
        %v4600 = vpop.f32.mrb[0].mxu0
        %v4601 = vpop.f32.mrb[0].mxu0
        %v4602 = vadd.f32 0.0, %v4601
        %v4603 = vpop.f32.mrb[0].mxu0
        %4604 = vmatprep.mubr.bf16.mxu0 0
        %4605 = vmatmul.mubr.bf16.gmra.mrb[0].mxu0 %v2241
        %v4606 = vpop.f32.mrb[0].mxu0
        %v4607 = vadd.f32 0.0, %v4606
        %v4608 = vpop.f32.mrb[0].mxu0
        %v4609 = vpop.f32.mrb[0].mxu0
        %v4610 = vadd.f32 0.0, %v4609
        %v4611 = vpop.f32.mrb[0].mxu0
        %4612 = vmatprep.mubr.bf16.mxu0 0
        %4613 = vmatmul.mubr.bf16.gmra.mrb[0].mxu0 %v2244
        %v4614 = vpop.f32.mrb[0].mxu0
        %v4615 = vadd.f32 0.0, %v4614
        %v4616 = vpop.f32.mrb[0].mxu0
        %v4617 = vpop.f32.mrb[0].mxu0
        %v4618 = vadd.f32 0.0, %v4617
        %v4619 = vpop.f32.mrb[0].mxu0
        %4620 = vmatprep.mubr.bf16.mxu0 0
        %4621 = vmatmul.mubr.bf16.gmra.mrb[0].mxu0 %v2247
        %v4622 = vpop.f32.mrb[0].mxu0
        %v4623 = vadd.f32 0.0, %v4622
        %v4624 = vpop.f32.mrb[0].mxu0
        %v4625 = vpop.f32.mrb[0].mxu0
        %v4626 = vadd.f32 0.0, %v4625
        %v4627 = vpop.f32.mrb[0].mxu0
        %4628 = vmatprep.mubr.bf16.mxu0 0
        %4629 = vmatmul.mubr.bf16.gmra.mrb[0].mxu0 %v2250
        %v4630 = vpop.f32.mrb[0].mxu0
        %v4631 = vadd.f32 0.0, %v4630
        %v4632 = vpop.f32.mrb[0].mxu0
        %v4633 = vpop.f32.mrb[0].mxu0
        %v4634 = vadd.f32 0.0, %v4633
        %v4635 = vpop.f32.mrb[0].mxu0
        %4636 = vmatprep.mubr.bf16.mxu0 0
        %4637 = vmatmul.mubr.bf16.gmra.mrb[0].mxu0 %v2253
        %v4638 = vpop.f32.mrb[0].mxu0
        %v4639 = vadd.f32 0.0, %v4638
        %v4640 = vpop.f32.mrb[0].mxu0
        %v4641 = vpop.f32.mrb[0].mxu0
        %v4642 = vadd.f32 0.0, %v4641
        %v4643 = vpop.f32.mrb[0].mxu0
        %4644 = vmatprep.mubr.bf16.mxu0 0
        %4645 = vmatmul.mubr.bf16.gmra.mrb[0].mxu0 %v2256
        %v4646 = vpop.f32.mrb[0].mxu0
        %v4647 = vadd.f32 0.0, %v4646
        %v4648 = vpop.f32.mrb[0].mxu0
        %v4649 = vpop.f32.mrb[0].mxu0
        %v4650 = vadd.f32 0.0, %v4649
        %v4651 = vpop.f32.mrb[0].mxu0
        %4652 = vmatprep.mubr.bf16.mxu0 0
        %4653 = vmatmul.mubr.bf16.gmra.mrb[0].mxu0 %v2259
        %v4654 = vpop.f32.mrb[0].mxu0
        %v4655 = vadd.f32 0.0, %v4654
        %v4656 = vpop.f32.mrb[0].mxu0
        %v4657 = vpop.f32.mrb[0].mxu0
        %v4658 = vadd.f32 0.0, %v4657
        %v4659 = vpop.f32.mrb[0].mxu0
        %4660 = vmatprep.mubr.bf16.mxu0 0
        %4661 = vmatmul.mubr.bf16.gmra.mrb[0].mxu0 %v2262
        %v4662 = vpop.f32.mrb[0].mxu0
        %v4663 = vadd.f32 0.0, %v4662
        %v4664 = vpop.f32.mrb[0].mxu0
        %v4665 = vpop.f32.mrb[0].mxu0
        %v4666 = vadd.f32 0.0, %v4665
        %v4667 = vpop.f32.mrb[0].mxu0
        %4668 = vmatprep.mubr.bf16.mxu0 0
        %4669 = vmatmul.mubr.bf16.gmra.mrb[0].mxu0 %v2265
        %v4670 = vpop.f32.mrb[0].mxu0
        %v4671 = vadd.f32 0.0, %v4670
        %v4672 = vpop.f32.mrb[0].mxu0
        %v4673 = vpop.f32.mrb[0].mxu0
        %v4674 = vadd.f32 0.0, %v4673
        %v4675 = vpop.f32.mrb[0].mxu0
        %4676 = vmatprep.mubr.bf16.mxu0 0
        %4677 = vmatmul.mubr.bf16.gmra.mrb[0].mxu0 %v2268
        %v4678 = vpop.f32.mrb[0].mxu0
        %v4679 = vadd.f32 0.0, %v4678
        %v4680 = vpop.f32.mrb[0].mxu0
        %v4681 = vpop.f32.mrb[0].mxu0
        %v4682 = vadd.f32 0.0, %v4681
        %v4683 = vpop.f32.mrb[0].mxu0
        %4684 = vmatprep.mubr.bf16.mxu0 0
        %4685 = vmatmul.mubr.bf16.gmra.mrb[0].mxu0 %v2271
        %v4686 = vpop.f32.mrb[0].mxu0
        %v4687 = vadd.f32 0.0, %v4686
        %v4688 = vpop.f32.mrb[0].mxu0
        %v4689 = vpop.f32.mrb[0].mxu0
        %v4690 = vadd.f32 0.0, %v4689
        %v4691 = vpop.f32.mrb[0].mxu0
        %4692 = vmatprep.mubr.bf16.mxu0 0
        %4693 = vmatmul.mubr.bf16.gmra.mrb[0].mxu0 %v2805
        %v4694 = vpop.f32.mrb[0].mxu0
        %v4695 = vadd.f32 0.0, %v4694
        %v4696 = vpop.f32.mrb[0].mxu0
        %v4697 = vpop.f32.mrb[0].mxu0
        %v4698 = vadd.f32 0.0, %v4697
        %v4699 = vpop.f32.mrb[0].mxu0
        %4700 = vdwg.mxu0
        %v4702 = vsel %vm1009, %v4534, 0
        %4704 = vmatprep.subr.bf16.mxu0 0
        %4705 = vmatpush1.bf16.msra.mxu0 %v4702
        %4706 = vmatprep.subr.bf16.mxu0 0
        %4707 = vmatpush1.bf16.msra.mxu0 0
        %4708 = vmatprep.subr.bf16.mxu0 0
        %4709 = vmatpush1.bf16.msra.mxu0 0
        %4710 = vmatprep.subr.bf16.mxu0 0
        %4711 = vmatpush1.bf16.msra.mxu0 0
        %4712 = vmatprep.subr.bf16.mxu0 0
        %4713 = vmatpush1.bf16.msra.mxu0 0
        %4714 = vmatprep.subr.bf16.mxu0 0
        %4715 = vmatpush1.bf16.msra.mxu0 0
        %4716 = vmatprep.subr.bf16.mxu0 0
        %4717 = vmatpush1.bf16.msra.mxu0 0
        %4718 = vmatprep.subr.bf16.mxu0 0
        %4719 = vmatpush1.bf16.msra.mxu0 0
        %4720 = vmatprep.subr.bf16.mxu0 0
        %4721 = vmatpush1.bf16.msra.mxu0 0
        %4722 = vmatprep.subr.bf16.mxu0 0
        %4723 = vmatpush1.bf16.msra.mxu0 0
        %4724 = vmatprep.subr.bf16.mxu0 0
        %4725 = vmatpush1.bf16.msra.mxu0 0
        %4726 = vmatprep.subr.bf16.mxu0 0
        %4727 = vmatpush1.bf16.msra.mxu0 0
        %4728 = vmatprep.subr.bf16.mxu0 0
        %4729 = vmatpush1.bf16.msra.mxu0 0
        %4730 = vmatprep.subr.bf16.mxu0 0
        %4731 = vmatpush1.bf16.msra.mxu0 0
        %4732 = vmatprep.subr.bf16.mxu0 0
        %4733 = vmatpush1.bf16.msra.mxu0 0
        %4734 = vmatprep.subr.bf16.mxu0 0
        %4735 = vmatpush1.bf16.msra.mxu0 0
        %4736 = vmatprep.mubr.bf16.mxu0 0
        %4737 = vmatmul.mubr.bf16.gmra.mrb[0].mxu0 %v965
        %v4738 = vpop.f32.mrb[0].mxu0
        %v4739 = vadd.f32 %v4575, %v4738
        %v4740 = vpop.f32.mrb[0].mxu0
        %v4741 = vpop.f32.mrb[0].mxu0
        %v4742 = vadd.f32 %v4578, %v4741
        %v4743 = vpop.f32.mrb[0].mxu0
        %4744 = vmatprep.mubr.bf16.mxu0 0
        %4745 = vmatmul.mubr.bf16.gmra.mrb[0].mxu0 %v968
        %v4746 = vpop.f32.mrb[0].mxu0
        %v4747 = vadd.f32 %v4583, %v4746
        %v4748 = vpop.f32.mrb[0].mxu0
        %v4749 = vpop.f32.mrb[0].mxu0
        %v4750 = vadd.f32 %v4586, %v4749
        %v4751 = vpop.f32.mrb[0].mxu0
        %4752 = vmatprep.mubr.bf16.mxu0 0
        %4753 = vmatmul.mubr.bf16.gmra.mrb[0].mxu0 %v971
        %v4754 = vpop.f32.mrb[0].mxu0
        %v4755 = vadd.f32 %v4591, %v4754
        %v4756 = vpop.f32.mrb[0].mxu0
        %v4757 = vpop.f32.mrb[0].mxu0
        %v4758 = vadd.f32 %v4594, %v4757
        %v4759 = vpop.f32.mrb[0].mxu0
        %4760 = vmatprep.mubr.bf16.mxu0 0
        %4761 = vmatmul.mubr.bf16.gmra.mrb[0].mxu0 %v974
        %v4762 = vpop.f32.mrb[0].mxu0
        %v4763 = vadd.f32 %v4599, %v4762
        %v4764 = vpop.f32.mrb[0].mxu0
        %v4765 = vpop.f32.mrb[0].mxu0
        %v4766 = vadd.f32 %v4602, %v4765
        %v4767 = vpop.f32.mrb[0].mxu0
        %4768 = vmatprep.mubr.bf16.mxu0 0
        %4769 = vmatmul.mubr.bf16.gmra.mrb[0].mxu0 %v977
        %v4770 = vpop.f32.mrb[0].mxu0
        %v4771 = vadd.f32 %v4607, %v4770
        %v4772 = vpop.f32.mrb[0].mxu0
        %v4773 = vpop.f32.mrb[0].mxu0
        %v4774 = vadd.f32 %v4610, %v4773
        %v4775 = vpop.f32.mrb[0].mxu0
        %4776 = vmatprep.mubr.bf16.mxu0 0
        %4777 = vmatmul.mubr.bf16.gmra.mrb[0].mxu0 %v980
        %v4778 = vpop.f32.mrb[0].mxu0
        %v4779 = vadd.f32 %v4615, %v4778
        %v4780 = vpop.f32.mrb[0].mxu0
        %v4781 = vpop.f32.mrb[0].mxu0
        %v4782 = vadd.f32 %v4618, %v4781
        %v4783 = vpop.f32.mrb[0].mxu0
        %4784 = vmatprep.mubr.bf16.mxu0 0
        %4785 = vmatmul.mubr.bf16.gmra.mrb[0].mxu0 %v983
        %v4786 = vpop.f32.mrb[0].mxu0
        %v4787 = vadd.f32 %v4623, %v4786
        %v4788 = vpop.f32.mrb[0].mxu0
        %v4789 = vpop.f32.mrb[0].mxu0
        %v4790 = vadd.f32 %v4626, %v4789
        %v4791 = vpop.f32.mrb[0].mxu0
        %4792 = vmatprep.mubr.bf16.mxu0 0
        %4793 = vmatmul.mubr.bf16.gmra.mrb[0].mxu0 %v986
        %v4794 = vpop.f32.mrb[0].mxu0
        %v4795 = vadd.f32 %v4631, %v4794
        %v4796 = vpop.f32.mrb[0].mxu0
        %v4797 = vpop.f32.mrb[0].mxu0
        %v4798 = vadd.f32 %v4634, %v4797
        %v4799 = vpop.f32.mrb[0].mxu0
        %4800 = vmatprep.mubr.bf16.mxu0 0
        %4801 = vmatmul.mubr.bf16.gmra.mrb[0].mxu0 %v989
        %v4802 = vpop.f32.mrb[0].mxu0
        %v4803 = vadd.f32 %v4639, %v4802
        %v4804 = vpop.f32.mrb[0].mxu0
        %v4805 = vpop.f32.mrb[0].mxu0
        %v4806 = vadd.f32 %v4642, %v4805
        %v4807 = vpop.f32.mrb[0].mxu0
        %4808 = vmatprep.mubr.bf16.mxu0 0
        %4809 = vmatmul.mubr.bf16.gmra.mrb[0].mxu0 %v992
        %v4810 = vpop.f32.mrb[0].mxu0
        %v4811 = vadd.f32 %v4647, %v4810
        %v4812 = vpop.f32.mrb[0].mxu0
        %v4813 = vpop.f32.mrb[0].mxu0
        %v4814 = vadd.f32 %v4650, %v4813
        %v4815 = vpop.f32.mrb[0].mxu0
        %4816 = vmatprep.mubr.bf16.mxu0 0
        %4817 = vmatmul.mubr.bf16.gmra.mrb[0].mxu0 %v995
        %v4818 = vpop.f32.mrb[0].mxu0
        %v4819 = vadd.f32 %v4655, %v4818
        %v4820 = vpop.f32.mrb[0].mxu0
        %v4821 = vpop.f32.mrb[0].mxu0
        %v4822 = vadd.f32 %v4658, %v4821
        %v4823 = vpop.f32.mrb[0].mxu0
        %4824 = vmatprep.mubr.bf16.mxu0 0
        %4825 = vmatmul.mubr.bf16.gmra.mrb[0].mxu0 %v998
        %v4826 = vpop.f32.mrb[0].mxu0
        %v4827 = vadd.f32 %v4663, %v4826
        %v4828 = vpop.f32.mrb[0].mxu0
        %v4829 = vpop.f32.mrb[0].mxu0
        %v4830 = vadd.f32 %v4666, %v4829
        %v4831 = vpop.f32.mrb[0].mxu0
        %4832 = vmatprep.mubr.bf16.mxu0 0
        %4833 = vmatmul.mubr.bf16.gmra.mrb[0].mxu0 %v1001
        %v4834 = vpop.f32.mrb[0].mxu0
        %v4835 = vadd.f32 %v4671, %v4834
        %v4836 = vpop.f32.mrb[0].mxu0
        %v4837 = vpop.f32.mrb[0].mxu0
        %v4838 = vadd.f32 %v4674, %v4837
        %v4839 = vpop.f32.mrb[0].mxu0
        %4840 = vmatprep.mubr.bf16.mxu0 0
        %4841 = vmatmul.mubr.bf16.gmra.mrb[0].mxu0 %v1004
        %v4842 = vpop.f32.mrb[0].mxu0
        %v4843 = vadd.f32 %v4679, %v4842
        %v4844 = vpop.f32.mrb[0].mxu0
        %v4845 = vpop.f32.mrb[0].mxu0
        %v4846 = vadd.f32 %v4682, %v4845
        %v4847 = vpop.f32.mrb[0].mxu0
        %4848 = vmatprep.mubr.bf16.mxu0 0
        %4849 = vmatmul.mubr.bf16.gmra.mrb[0].mxu0 %v1007
        %v4850 = vpop.f32.mrb[0].mxu0
        %v4851 = vadd.f32 %v4687, %v4850
        %v4852 = vpop.f32.mrb[0].mxu0
        %v4853 = vpop.f32.mrb[0].mxu0
        %v4854 = vadd.f32 %v4690, %v4853
        %v4855 = vpop.f32.mrb[0].mxu0
        %4856 = vmatprep.mubr.bf16.mxu0 0
        %4857 = vmatmul.mubr.bf16.gmra.mrb[0].mxu0 %v1644
        %v4858 = vpop.f32.mrb[0].mxu0
        %v4859 = vadd.f32 %v4695, %v4858
        %v4860 = vpop.f32.mrb[0].mxu0
        %v4861 = vpop.f32.mrb[0].mxu0
        %v4862 = vadd.f32 %v4698, %v4861
        %v4863 = vpop.f32.mrb[0].mxu0
        %4864 = vdwg.mxu0
        %s4865 = scalar_lea.vmem [#allocation5], 56
        %v4866 = vld [vmem:[%s4865] sm:$0xf]
        %v4868 = vsel %vm1009, %v4866, 0
        %4870 = vmatprep.subr.bf16.mxu0 0
        %4871 = vmatpush1.bf16.msra.mxu0 %v4868
        %4872 = vmatprep.subr.bf16.mxu0 0
        %4873 = vmatpush1.bf16.msra.mxu0 0
        %4874 = vmatprep.subr.bf16.mxu0 0
        %4875 = vmatpush1.bf16.msra.mxu0 0
        %4876 = vmatprep.subr.bf16.mxu0 0
        %4877 = vmatpush1.bf16.msra.mxu0 0
        %4878 = vmatprep.subr.bf16.mxu0 0
        %4879 = vmatpush1.bf16.msra.mxu0 0
        %4880 = vmatprep.subr.bf16.mxu0 0
        %4881 = vmatpush1.bf16.msra.mxu0 0
        %4882 = vmatprep.subr.bf16.mxu0 0
        %4883 = vmatpush1.bf16.msra.mxu0 0
        %4884 = vmatprep.subr.bf16.mxu0 0
        %4885 = vmatpush1.bf16.msra.mxu0 0
        %4886 = vmatprep.subr.bf16.mxu0 0
        %4887 = vmatpush1.bf16.msra.mxu0 0
        %4888 = vmatprep.subr.bf16.mxu0 0
        %4889 = vmatpush1.bf16.msra.mxu0 0
        %4890 = vmatprep.subr.bf16.mxu0 0
        %4891 = vmatpush1.bf16.msra.mxu0 0
        %4892 = vmatprep.subr.bf16.mxu0 0
        %4893 = vmatpush1.bf16.msra.mxu0 0
        %4894 = vmatprep.subr.bf16.mxu0 0
        %4895 = vmatpush1.bf16.msra.mxu0 0
        %4896 = vmatprep.subr.bf16.mxu0 0
        %4897 = vmatpush1.bf16.msra.mxu0 0
        %4898 = vmatprep.subr.bf16.mxu0 0
        %4899 = vmatpush1.bf16.msra.mxu0 0
        %4900 = vmatprep.subr.bf16.mxu0 0
        %4901 = vmatpush1.bf16.msra.mxu0 0
        %4902 = vmatprep.mubr.bf16.mxu0 0
        %4903 = vmatmul.mubr.bf16.gmra.mrb[0].mxu0 %v968
        %v4904 = vpop.f32.mrb[0].mxu0
        %v4905 = vadd.f32 0.0, %v4904
        %v4906 = vpop.f32.mrb[0].mxu0
        %v4907 = vpop.f32.mrb[0].mxu0
        %v4908 = vadd.f32 0.0, %v4907
        %v4909 = vpop.f32.mrb[0].mxu0
        %4910 = vmatprep.mubr.bf16.mxu0 0
        %4911 = vmatmul.mubr.bf16.gmra.mrb[0].mxu0 %v971
        %v4912 = vpop.f32.mrb[0].mxu0
        %v4913 = vadd.f32 0.0, %v4912
        %v4914 = vpop.f32.mrb[0].mxu0
        %v4915 = vpop.f32.mrb[0].mxu0
        %v4916 = vadd.f32 0.0, %v4915
        %v4917 = vpop.f32.mrb[0].mxu0
        %4918 = vmatprep.mubr.bf16.mxu0 0
        %4919 = vmatmul.mubr.bf16.gmra.mrb[0].mxu0 %v974
        %v4920 = vpop.f32.mrb[0].mxu0
        %v4921 = vadd.f32 0.0, %v4920
        %v4922 = vpop.f32.mrb[0].mxu0
        %v4923 = vpop.f32.mrb[0].mxu0
        %v4924 = vadd.f32 0.0, %v4923
        %v4925 = vpop.f32.mrb[0].mxu0
        %4926 = vmatprep.mubr.bf16.mxu0 0
        %4927 = vmatmul.mubr.bf16.gmra.mrb[0].mxu0 %v977
        %v4928 = vpop.f32.mrb[0].mxu0
        %v4929 = vadd.f32 0.0, %v4928
        %v4930 = vpop.f32.mrb[0].mxu0
        %v4931 = vpop.f32.mrb[0].mxu0
        %v4932 = vadd.f32 0.0, %v4931
        %v4933 = vpop.f32.mrb[0].mxu0
        %4934 = vmatprep.mubr.bf16.mxu0 0
        %4935 = vmatmul.mubr.bf16.gmra.mrb[0].mxu0 %v980
        %v4936 = vpop.f32.mrb[0].mxu0
        %v4937 = vadd.f32 0.0, %v4936
        %v4938 = vpop.f32.mrb[0].mxu0
        %v4939 = vpop.f32.mrb[0].mxu0
        %v4940 = vadd.f32 0.0, %v4939
        %v4941 = vpop.f32.mrb[0].mxu0
        %4942 = vmatprep.mubr.bf16.mxu0 0
        %4943 = vmatmul.mubr.bf16.gmra.mrb[0].mxu0 %v983
        %v4944 = vpop.f32.mrb[0].mxu0
        %v4945 = vadd.f32 0.0, %v4944
        %v4946 = vpop.f32.mrb[0].mxu0
        %v4947 = vpop.f32.mrb[0].mxu0
        %v4948 = vadd.f32 0.0, %v4947
        %v4949 = vpop.f32.mrb[0].mxu0
        %4950 = vmatprep.mubr.bf16.mxu0 0
        %4951 = vmatmul.mubr.bf16.gmra.mrb[0].mxu0 %v986
        %v4952 = vpop.f32.mrb[0].mxu0
        %v4953 = vadd.f32 0.0, %v4952
        %v4954 = vpop.f32.mrb[0].mxu0
        %v4955 = vpop.f32.mrb[0].mxu0
        %v4956 = vadd.f32 0.0, %v4955
        %v4957 = vpop.f32.mrb[0].mxu0
        %4958 = vmatprep.mubr.bf16.mxu0 0
        %4959 = vmatmul.mubr.bf16.gmra.mrb[0].mxu0 %v989
        %v4960 = vpop.f32.mrb[0].mxu0
        %v4961 = vadd.f32 0.0, %v4960
        %v4962 = vpop.f32.mrb[0].mxu0
        %v4963 = vpop.f32.mrb[0].mxu0
        %v4964 = vadd.f32 0.0, %v4963
        %v4965 = vpop.f32.mrb[0].mxu0
        %4966 = vmatprep.mubr.bf16.mxu0 0
        %4967 = vmatmul.mubr.bf16.gmra.mrb[0].mxu0 %v992
        %v4968 = vpop.f32.mrb[0].mxu0
        %v4969 = vadd.f32 0.0, %v4968
        %v4970 = vpop.f32.mrb[0].mxu0
        %v4971 = vpop.f32.mrb[0].mxu0
        %v4972 = vadd.f32 0.0, %v4971
        %v4973 = vpop.f32.mrb[0].mxu0
        %4974 = vmatprep.mubr.bf16.mxu0 0
        %4975 = vmatmul.mubr.bf16.gmra.mrb[0].mxu0 %v995
        %v4976 = vpop.f32.mrb[0].mxu0
        %v4977 = vadd.f32 0.0, %v4976
        %v4978 = vpop.f32.mrb[0].mxu0
        %v4979 = vpop.f32.mrb[0].mxu0
        %v4980 = vadd.f32 0.0, %v4979
        %v4981 = vpop.f32.mrb[0].mxu0
        %4982 = vmatprep.mubr.bf16.mxu0 0
        %4983 = vmatmul.mubr.bf16.gmra.mrb[0].mxu0 %v998
        %v4984 = vpop.f32.mrb[0].mxu0
        %v4985 = vadd.f32 0.0, %v4984
        %v4986 = vpop.f32.mrb[0].mxu0
        %v4987 = vpop.f32.mrb[0].mxu0
        %v4988 = vadd.f32 0.0, %v4987
        %v4989 = vpop.f32.mrb[0].mxu0
        %4990 = vmatprep.mubr.bf16.mxu0 0
        %4991 = vmatmul.mubr.bf16.gmra.mrb[0].mxu0 %v1001
        %v4992 = vpop.f32.mrb[0].mxu0
        %v4993 = vadd.f32 0.0, %v4992
        %v4994 = vpop.f32.mrb[0].mxu0
        %v4995 = vpop.f32.mrb[0].mxu0
        %v4996 = vadd.f32 0.0, %v4995
        %v4997 = vpop.f32.mrb[0].mxu0
        %4998 = vmatprep.mubr.bf16.mxu0 0
        %4999 = vmatmul.mubr.bf16.gmra.mrb[0].mxu0 %v1004
        %v5000 = vpop.f32.mrb[0].mxu0
        %v5001 = vadd.f32 0.0, %v5000
        %v5002 = vpop.f32.mrb[0].mxu0
        %v5003 = vpop.f32.mrb[0].mxu0
        %v5004 = vadd.f32 0.0, %v5003
        %v5005 = vpop.f32.mrb[0].mxu0
        %5006 = vmatprep.mubr.bf16.mxu0 0
        %5007 = vmatmul.mubr.bf16.gmra.mrb[0].mxu0 %v1007
        %v5008 = vpop.f32.mrb[0].mxu0
        %v5009 = vadd.f32 0.0, %v5008
        %v5010 = vpop.f32.mrb[0].mxu0
        %v5011 = vpop.f32.mrb[0].mxu0
        %v5012 = vadd.f32 0.0, %v5011
        %v5013 = vpop.f32.mrb[0].mxu0
        %5014 = vmatprep.mubr.bf16.mxu0 0
        %5015 = vmatmul.mubr.bf16.gmra.mrb[0].mxu0 %v1644
        %v5016 = vpop.f32.mrb[0].mxu0
        %v5017 = vadd.f32 0.0, %v5016
        %v5018 = vpop.f32.mrb[0].mxu0
        %v5019 = vpop.f32.mrb[0].mxu0
        %v5020 = vadd.f32 0.0, %v5019
        %v5021 = vpop.f32.mrb[0].mxu0
        %5022 = vmatprep.mubr.bf16.mxu0 0
        %5023 = vmatmul.mubr.bf16.gmra.mrb[0].mxu0 %v3940
        %v5024 = vpop.f32.mrb[0].mxu0
        %v5025 = vadd.f32 0.0, %v5024
        %v5026 = vpop.f32.mrb[0].mxu0
        %v5027 = vpop.f32.mrb[0].mxu0
        %v5028 = vadd.f32 0.0, %v5027
        %v5029 = vpop.f32.mrb[0].mxu0
        %5030 = vdwg.mxu0
        %v5031 = vadd.f32 %v4739, %v4905
        %v5032 = vadd.f32 %v4742, %v4908
        %v5033 = vadd.f32 %v4747, %v4913
        %v5034 = vadd.f32 %v4750, %v4916
        %v5035 = vadd.f32 %v4755, %v4921
        %v5036 = vadd.f32 %v4758, %v4924
        %v5037 = vadd.f32 %v4763, %v4929
        %v5038 = vadd.f32 %v4766, %v4932
        %v5039 = vadd.f32 %v4771, %v4937
        %v5040 = vadd.f32 %v4774, %v4940
        %v5041 = vadd.f32 %v4779, %v4945
        %v5042 = vadd.f32 %v4782, %v4948
        %v5043 = vadd.f32 %v4787, %v4953
        %v5044 = vadd.f32 %v4790, %v4956
        %v5045 = vadd.f32 %v4795, %v4961
        %v5046 = vadd.f32 %v4798, %v4964
        %v5047 = vadd.f32 %v4803, %v4969
        %v5048 = vadd.f32 %v4806, %v4972
        %v5049 = vadd.f32 %v4811, %v4977
        %v5050 = vadd.f32 %v4814, %v4980
        %v5051 = vadd.f32 %v4819, %v4985
        %v5052 = vadd.f32 %v4822, %v4988
        %v5053 = vadd.f32 %v4827, %v4993
        %v5054 = vadd.f32 %v4830, %v4996
        %v5055 = vadd.f32 %v4835, %v5001
        %v5056 = vadd.f32 %v4838, %v5004
        %v5057 = vadd.f32 %v4843, %v5009
        %v5058 = vadd.f32 %v4846, %v5012
        %v5059 = vadd.f32 %v4851, %v5017
        %v5060 = vadd.f32 %v4854, %v5020
        %v5061 = vadd.f32 %v4859, %v5025
        %v5062 = vadd.f32 %v4862, %v5028
        %s5063 = scalar_lea.vmem [#allocation5], 60
        %v5064 = vld [vmem:[%s5063] sm:$0xf]
        %v5065 = vunpack.c.l.b16 %v905
        %v5066 = vunpack.c.l.b16 %v908
        %v5067 = vpack.c.b16 %v5066, %v5065
        %v5069 = vsel %vm960, %v5067, 0
        %v5072 = vsel %vm1009, %v5064, 0
        %5074 = vmatprep.subr.bf16.mxu0 0
        %5075 = vmatpush1.bf16.msra.mxu0 %v5072
        %5076 = vmatprep.subr.bf16.mxu0 0
        %5077 = vmatpush1.bf16.msra.mxu0 0
        %5078 = vmatprep.subr.bf16.mxu0 0
        %5079 = vmatpush1.bf16.msra.mxu0 0
        %5080 = vmatprep.subr.bf16.mxu0 0
        %5081 = vmatpush1.bf16.msra.mxu0 0
        %5082 = vmatprep.subr.bf16.mxu0 0
        %5083 = vmatpush1.bf16.msra.mxu0 0
        %5084 = vmatprep.subr.bf16.mxu0 0
        %5085 = vmatpush1.bf16.msra.mxu0 0
        %5086 = vmatprep.subr.bf16.mxu0 0
        %5087 = vmatpush1.bf16.msra.mxu0 0
        %5088 = vmatprep.subr.bf16.mxu0 0
        %5089 = vmatpush1.bf16.msra.mxu0 0
        %5090 = vmatprep.subr.bf16.mxu0 0
        %5091 = vmatpush1.bf16.msra.mxu0 0
        %5092 = vmatprep.subr.bf16.mxu0 0
        %5093 = vmatpush1.bf16.msra.mxu0 0
        %5094 = vmatprep.subr.bf16.mxu0 0
        %5095 = vmatpush1.bf16.msra.mxu0 0
        %5096 = vmatprep.subr.bf16.mxu0 0
        %5097 = vmatpush1.bf16.msra.mxu0 0
        %5098 = vmatprep.subr.bf16.mxu0 0
        %5099 = vmatpush1.bf16.msra.mxu0 0
        %5100 = vmatprep.subr.bf16.mxu0 0
        %5101 = vmatpush1.bf16.msra.mxu0 0
        %5102 = vmatprep.subr.bf16.mxu0 0
        %5103 = vmatpush1.bf16.msra.mxu0 0
        %5104 = vmatprep.subr.bf16.mxu0 0
        %5105 = vmatpush1.bf16.msra.mxu0 0
        %5106 = vmatprep.mubr.bf16.mxu0 0
        %5107 = vmatmul.mubr.bf16.gmra.mrb[0].mxu0 %v2232
        %v5108 = vpop.f32.mrb[0].mxu0
        %v5109 = vadd.f32 0.0, %v5108
        %v5110 = vpop.f32.mrb[0].mxu0
        %v5111 = vpop.f32.mrb[0].mxu0
        %v5112 = vadd.f32 0.0, %v5111
        %v5113 = vpop.f32.mrb[0].mxu0
        %5114 = vmatprep.mubr.bf16.mxu0 0
        %5115 = vmatmul.mubr.bf16.gmra.mrb[0].mxu0 %v2235
        %v5116 = vpop.f32.mrb[0].mxu0
        %v5117 = vadd.f32 0.0, %v5116
        %v5118 = vpop.f32.mrb[0].mxu0
        %v5119 = vpop.f32.mrb[0].mxu0
        %v5120 = vadd.f32 0.0, %v5119
        %v5121 = vpop.f32.mrb[0].mxu0
        %5122 = vmatprep.mubr.bf16.mxu0 0
        %5123 = vmatmul.mubr.bf16.gmra.mrb[0].mxu0 %v2238
        %v5124 = vpop.f32.mrb[0].mxu0
        %v5125 = vadd.f32 0.0, %v5124
        %v5126 = vpop.f32.mrb[0].mxu0
        %v5127 = vpop.f32.mrb[0].mxu0
        %v5128 = vadd.f32 0.0, %v5127
        %v5129 = vpop.f32.mrb[0].mxu0
        %5130 = vmatprep.mubr.bf16.mxu0 0
        %5131 = vmatmul.mubr.bf16.gmra.mrb[0].mxu0 %v2241
        %v5132 = vpop.f32.mrb[0].mxu0
        %v5133 = vadd.f32 0.0, %v5132
        %v5134 = vpop.f32.mrb[0].mxu0
        %v5135 = vpop.f32.mrb[0].mxu0
        %v5136 = vadd.f32 0.0, %v5135
        %v5137 = vpop.f32.mrb[0].mxu0
        %5138 = vmatprep.mubr.bf16.mxu0 0
        %5139 = vmatmul.mubr.bf16.gmra.mrb[0].mxu0 %v2244
        %v5140 = vpop.f32.mrb[0].mxu0
        %v5141 = vadd.f32 0.0, %v5140
        %v5142 = vpop.f32.mrb[0].mxu0
        %v5143 = vpop.f32.mrb[0].mxu0
        %v5144 = vadd.f32 0.0, %v5143
        %v5145 = vpop.f32.mrb[0].mxu0
        %5146 = vmatprep.mubr.bf16.mxu0 0
        %5147 = vmatmul.mubr.bf16.gmra.mrb[0].mxu0 %v2247
        %v5148 = vpop.f32.mrb[0].mxu0
        %v5149 = vadd.f32 0.0, %v5148
        %v5150 = vpop.f32.mrb[0].mxu0
        %v5151 = vpop.f32.mrb[0].mxu0
        %v5152 = vadd.f32 0.0, %v5151
        %v5153 = vpop.f32.mrb[0].mxu0
        %5154 = vmatprep.mubr.bf16.mxu0 0
        %5155 = vmatmul.mubr.bf16.gmra.mrb[0].mxu0 %v2250
        %v5156 = vpop.f32.mrb[0].mxu0
        %v5157 = vadd.f32 0.0, %v5156
        %v5158 = vpop.f32.mrb[0].mxu0
        %v5159 = vpop.f32.mrb[0].mxu0
        %v5160 = vadd.f32 0.0, %v5159
        %v5161 = vpop.f32.mrb[0].mxu0
        %5162 = vmatprep.mubr.bf16.mxu0 0
        %5163 = vmatmul.mubr.bf16.gmra.mrb[0].mxu0 %v2253
        %v5164 = vpop.f32.mrb[0].mxu0
        %v5165 = vadd.f32 0.0, %v5164
        %v5166 = vpop.f32.mrb[0].mxu0
        %v5167 = vpop.f32.mrb[0].mxu0
        %v5168 = vadd.f32 0.0, %v5167
        %v5169 = vpop.f32.mrb[0].mxu0
        %5170 = vmatprep.mubr.bf16.mxu0 0
        %5171 = vmatmul.mubr.bf16.gmra.mrb[0].mxu0 %v2256
        %v5172 = vpop.f32.mrb[0].mxu0
        %v5173 = vadd.f32 0.0, %v5172
        %v5174 = vpop.f32.mrb[0].mxu0
        %v5175 = vpop.f32.mrb[0].mxu0
        %v5176 = vadd.f32 0.0, %v5175
        %v5177 = vpop.f32.mrb[0].mxu0
        %5178 = vmatprep.mubr.bf16.mxu0 0
        %5179 = vmatmul.mubr.bf16.gmra.mrb[0].mxu0 %v2259
        %v5180 = vpop.f32.mrb[0].mxu0
        %v5181 = vadd.f32 0.0, %v5180
        %v5182 = vpop.f32.mrb[0].mxu0
        %v5183 = vpop.f32.mrb[0].mxu0
        %v5184 = vadd.f32 0.0, %v5183
        %v5185 = vpop.f32.mrb[0].mxu0
        %5186 = vmatprep.mubr.bf16.mxu0 0
        %5187 = vmatmul.mubr.bf16.gmra.mrb[0].mxu0 %v2262
        %v5188 = vpop.f32.mrb[0].mxu0
        %v5189 = vadd.f32 0.0, %v5188
        %v5190 = vpop.f32.mrb[0].mxu0
        %v5191 = vpop.f32.mrb[0].mxu0
        %v5192 = vadd.f32 0.0, %v5191
        %v5193 = vpop.f32.mrb[0].mxu0
        %5194 = vmatprep.mubr.bf16.mxu0 0
        %5195 = vmatmul.mubr.bf16.gmra.mrb[0].mxu0 %v2265
        %v5196 = vpop.f32.mrb[0].mxu0
        %v5197 = vadd.f32 0.0, %v5196
        %v5198 = vpop.f32.mrb[0].mxu0
        %v5199 = vpop.f32.mrb[0].mxu0
        %v5200 = vadd.f32 0.0, %v5199
        %v5201 = vpop.f32.mrb[0].mxu0
        %5202 = vmatprep.mubr.bf16.mxu0 0
        %5203 = vmatmul.mubr.bf16.gmra.mrb[0].mxu0 %v2268
        %v5204 = vpop.f32.mrb[0].mxu0
        %v5205 = vadd.f32 0.0, %v5204
        %v5206 = vpop.f32.mrb[0].mxu0
        %v5207 = vpop.f32.mrb[0].mxu0
        %v5208 = vadd.f32 0.0, %v5207
        %v5209 = vpop.f32.mrb[0].mxu0
        %5210 = vmatprep.mubr.bf16.mxu0 0
        %5211 = vmatmul.mubr.bf16.gmra.mrb[0].mxu0 %v2271
        %v5212 = vpop.f32.mrb[0].mxu0
        %v5213 = vadd.f32 0.0, %v5212
        %v5214 = vpop.f32.mrb[0].mxu0
        %v5215 = vpop.f32.mrb[0].mxu0
        %v5216 = vadd.f32 0.0, %v5215
        %v5217 = vpop.f32.mrb[0].mxu0
        %5218 = vmatprep.mubr.bf16.mxu0 0
        %5219 = vmatmul.mubr.bf16.gmra.mrb[0].mxu0 %v2805
        %v5220 = vpop.f32.mrb[0].mxu0
        %v5221 = vadd.f32 0.0, %v5220
        %v5222 = vpop.f32.mrb[0].mxu0
        %v5223 = vpop.f32.mrb[0].mxu0
        %v5224 = vadd.f32 0.0, %v5223
        %v5225 = vpop.f32.mrb[0].mxu0
        %5226 = vmatprep.mubr.bf16.mxu0 0
        %5227 = vmatmul.mubr.bf16.gmra.mrb[0].mxu0 %v5069
        %v5228 = vpop.f32.mrb[0].mxu0
        %v5229 = vadd.f32 0.0, %v5228
        %v5230 = vpop.f32.mrb[0].mxu0
        %v5231 = vpop.f32.mrb[0].mxu0
        %v5232 = vadd.f32 0.0, %v5231
        %v5233 = vpop.f32.mrb[0].mxu0
        %5234 = vdwg.mxu0
        %v5235 = vadd.f32 %v5031, %v5109
        %v5236 = vadd.f32 %v5032, %v5112
        %v5237 = vadd.f32 %v5033, %v5117
        %v5238 = vadd.f32 %v5034, %v5120
        %v5239 = vadd.f32 %v5035, %v5125
        %v5240 = vadd.f32 %v5036, %v5128
        %v5241 = vadd.f32 %v5037, %v5133
        %v5242 = vadd.f32 %v5038, %v5136
        %v5243 = vadd.f32 %v5039, %v5141
        %v5244 = vadd.f32 %v5040, %v5144
        %v5245 = vadd.f32 %v5041, %v5149
        %v5246 = vadd.f32 %v5042, %v5152
        %v5247 = vadd.f32 %v5043, %v5157
        %v5248 = vadd.f32 %v5044, %v5160
        %v5249 = vadd.f32 %v5045, %v5165
        %v5250 = vadd.f32 %v5046, %v5168
        %v5251 = vadd.f32 %v5047, %v5173
        %v5252 = vadd.f32 %v5048, %v5176
        %v5253 = vadd.f32 %v5049, %v5181
        %v5254 = vadd.f32 %v5050, %v5184
        %v5255 = vadd.f32 %v5051, %v5189
        %v5256 = vadd.f32 %v5052, %v5192
        %v5257 = vadd.f32 %v5053, %v5197
        %v5258 = vadd.f32 %v5054, %v5200
        %v5259 = vadd.f32 %v5055, %v5205
        %v5260 = vadd.f32 %v5056, %v5208
        %v5261 = vadd.f32 %v5057, %v5213
        %v5262 = vadd.f32 %v5058, %v5216
        %v5263 = vadd.f32 %v5059, %v5221
        %v5264 = vadd.f32 %v5060, %v5224
        %v5265 = vadd.f32 %v5061, %v5229
        %v5266 = vadd.f32 %v5062, %v5232
        %v5267 = vsel %vm960, %v5235, 0.0
        %v5268 = vsel %vm960, %v5236, 0.0
        %v5269 = vadd.f32 %v5267, %v5268
        %v5270 = vsel %vm960, %v5237, 0.0
        %v5271 = vadd.f32 %v5269, %v5270
        %v5272 = vsel %vm960, %v5238, 0.0
        %v5273 = vadd.f32 %v5271, %v5272
        %v5274 = vsel %vm960, %v5239, 0.0
        %v5275 = vadd.f32 %v5273, %v5274
        %v5276 = vsel %vm960, %v5240, 0.0
        %v5277 = vadd.f32 %v5275, %v5276
        %v5278 = vsel %vm960, %v5241, 0.0
        %v5279 = vadd.f32 %v5277, %v5278
        %v5280 = vsel %vm960, %v5242, 0.0
        %v5281 = vadd.f32 %v5279, %v5280
        %v5282 = vsel %vm960, %v5243, 0.0
        %v5283 = vadd.f32 %v5281, %v5282
        %v5284 = vsel %vm960, %v5244, 0.0
        %v5285 = vadd.f32 %v5283, %v5284
        %v5286 = vsel %vm960, %v5245, 0.0
        %v5287 = vadd.f32 %v5285, %v5286
        %v5288 = vsel %vm960, %v5246, 0.0
        %v5289 = vadd.f32 %v5287, %v5288
        %v5290 = vsel %vm960, %v5247, 0.0
        %v5291 = vadd.f32 %v5289, %v5290
        %v5292 = vsel %vm960, %v5248, 0.0
        %v5293 = vadd.f32 %v5291, %v5292
        %v5294 = vsel %vm960, %v5249, 0.0
        %v5295 = vadd.f32 %v5293, %v5294
        %v5296 = vsel %vm960, %v5250, 0.0
        %v5297 = vadd.f32 %v5295, %v5296
        %v5298 = vsel %vm960, %v5251, 0.0
        %v5299 = vadd.f32 %v5297, %v5298
        %v5300 = vsel %vm960, %v5252, 0.0
        %v5301 = vadd.f32 %v5299, %v5300
        %v5302 = vsel %vm960, %v5253, 0.0
        %v5303 = vadd.f32 %v5301, %v5302
        %v5304 = vsel %vm960, %v5254, 0.0
        %v5305 = vadd.f32 %v5303, %v5304
        %v5306 = vsel %vm960, %v5255, 0.0
        %v5307 = vadd.f32 %v5305, %v5306
        %v5308 = vsel %vm960, %v5256, 0.0
        %v5309 = vadd.f32 %v5307, %v5308
        %v5310 = vsel %vm960, %v5257, 0.0
        %v5311 = vadd.f32 %v5309, %v5310
        %v5312 = vsel %vm960, %v5258, 0.0
        %v5313 = vadd.f32 %v5311, %v5312
        %v5314 = vsel %vm960, %v5259, 0.0
        %v5315 = vadd.f32 %v5313, %v5314
        %v5316 = vsel %vm960, %v5260, 0.0
        %v5317 = vadd.f32 %v5315, %v5316
        %v5318 = vsel %vm960, %v5261, 0.0
        %v5319 = vadd.f32 %v5317, %v5318
        %v5320 = vsel %vm960, %v5262, 0.0
        %v5321 = vadd.f32 %v5319, %v5320
        %v5322 = vsel %vm960, %v5263, 0.0
        %v5323 = vadd.f32 %v5321, %v5322
        %v5324 = vsel %vm960, %v5264, 0.0
        %v5325 = vadd.f32 %v5323, %v5324
        %v5326 = vsel %vm960, %v5265, 0.0
        %v5327 = vadd.f32 %v5325, %v5326
        %v5328 = vsel %vm960, %v5266, 0.0
        %v5329 = vadd.f32 %v5327, %v5328
        %v5330 = vrot.slane %v5329, 4
        %v5331 = vadd.f32 %v5329, %v5330
        %v5332 = vrot.slane %v5331, 2
        %v5333 = vadd.f32 %v5331, %v5332
        %v5334 = vrot.slane %v5333, 1
        %v5335 = vadd.f32 %v5333, %v5334
        %v5336 = vmul.f32 %v5235, %v5235
        %v5337 = vmul.f32 %v5236, %v5236
        %v5338 = vmul.f32 %v5237, %v5237
        %v5339 = vmul.f32 %v5238, %v5238
        %v5340 = vmul.f32 %v5239, %v5239
        %v5341 = vmul.f32 %v5240, %v5240
        %v5342 = vmul.f32 %v5241, %v5241
        %v5343 = vmul.f32 %v5242, %v5242
        %v5344 = vmul.f32 %v5243, %v5243
        %v5345 = vmul.f32 %v5244, %v5244
        %v5346 = vmul.f32 %v5245, %v5245
        %v5347 = vmul.f32 %v5246, %v5246
        %v5348 = vmul.f32 %v5247, %v5247
        %v5349 = vmul.f32 %v5248, %v5248
        %v5350 = vmul.f32 %v5249, %v5249
        %v5351 = vmul.f32 %v5250, %v5250
        %v5352 = vmul.f32 %v5251, %v5251
        %v5353 = vmul.f32 %v5252, %v5252
        %v5354 = vmul.f32 %v5253, %v5253
        %v5355 = vmul.f32 %v5254, %v5254
        %v5356 = vmul.f32 %v5255, %v5255
        %v5357 = vmul.f32 %v5256, %v5256
        %v5358 = vmul.f32 %v5257, %v5257
        %v5359 = vmul.f32 %v5258, %v5258
        %v5360 = vmul.f32 %v5259, %v5259
        %v5361 = vmul.f32 %v5260, %v5260
        %v5362 = vmul.f32 %v5261, %v5261
        %v5363 = vmul.f32 %v5262, %v5262
        %v5364 = vmul.f32 %v5263, %v5263
        %v5365 = vmul.f32 %v5264, %v5264
        %v5366 = vmul.f32 %v5265, %v5265
        %v5367 = vmul.f32 %v5266, %v5266
        %v5368 = vsel %vm960, %v5336, 0.0
        %v5369 = vsel %vm960, %v5337, 0.0
        %v5370 = vadd.f32 %v5368, %v5369
        %v5371 = vsel %vm960, %v5338, 0.0
        %v5372 = vadd.f32 %v5370, %v5371
        %v5373 = vsel %vm960, %v5339, 0.0
        %v5374 = vadd.f32 %v5372, %v5373
        %v5375 = vsel %vm960, %v5340, 0.0
        %v5376 = vadd.f32 %v5374, %v5375
        %v5377 = vsel %vm960, %v5341, 0.0
        %v5378 = vadd.f32 %v5376, %v5377
        %v5379 = vsel %vm960, %v5342, 0.0
        %v5380 = vadd.f32 %v5378, %v5379
        %v5381 = vsel %vm960, %v5343, 0.0
        %v5382 = vadd.f32 %v5380, %v5381
        %v5383 = vsel %vm960, %v5344, 0.0
        %v5384 = vadd.f32 %v5382, %v5383
        %v5385 = vsel %vm960, %v5345, 0.0
        %v5386 = vadd.f32 %v5384, %v5385
        %v5387 = vsel %vm960, %v5346, 0.0
        %v5388 = vadd.f32 %v5386, %v5387
        %v5389 = vsel %vm960, %v5347, 0.0
        %v5390 = vadd.f32 %v5388, %v5389
        %v5391 = vsel %vm960, %v5348, 0.0
        %v5392 = vadd.f32 %v5390, %v5391
        %v5393 = vsel %vm960, %v5349, 0.0
        %v5394 = vadd.f32 %v5392, %v5393
        %v5395 = vsel %vm960, %v5350, 0.0
        %v5396 = vadd.f32 %v5394, %v5395
        %v5397 = vsel %vm960, %v5351, 0.0
        %v5398 = vadd.f32 %v5396, %v5397
        %v5399 = vsel %vm960, %v5352, 0.0
        %v5400 = vadd.f32 %v5398, %v5399
        %v5401 = vsel %vm960, %v5353, 0.0
        %v5402 = vadd.f32 %v5400, %v5401
        %v5403 = vsel %vm960, %v5354, 0.0
        %v5404 = vadd.f32 %v5402, %v5403
        %v5405 = vsel %vm960, %v5355, 0.0
        %v5406 = vadd.f32 %v5404, %v5405
        %v5407 = vsel %vm960, %v5356, 0.0
        %v5408 = vadd.f32 %v5406, %v5407
        %v5409 = vsel %vm960, %v5357, 0.0
        %v5410 = vadd.f32 %v5408, %v5409
        %v5411 = vsel %vm960, %v5358, 0.0
        %v5412 = vadd.f32 %v5410, %v5411
        %v5413 = vsel %vm960, %v5359, 0.0
        %v5414 = vadd.f32 %v5412, %v5413
        %v5415 = vsel %vm960, %v5360, 0.0
        %v5416 = vadd.f32 %v5414, %v5415
        %v5417 = vsel %vm960, %v5361, 0.0
        %v5418 = vadd.f32 %v5416, %v5417
        %v5419 = vsel %vm960, %v5362, 0.0
        %v5420 = vadd.f32 %v5418, %v5419
        %v5421 = vsel %vm960, %v5363, 0.0
        %v5422 = vadd.f32 %v5420, %v5421
        %v5423 = vsel %vm960, %v5364, 0.0
        %v5424 = vadd.f32 %v5422, %v5423
        %v5425 = vsel %vm960, %v5365, 0.0
        %v5426 = vadd.f32 %v5424, %v5425
        %v5427 = vsel %vm960, %v5366, 0.0
        %v5428 = vadd.f32 %v5426, %v5427
        %v5429 = vsel %vm960, %v5367, 0.0
        %v5430 = vadd.f32 %v5428, %v5429
        %v5431 = vrot.slane %v5430, 4
        %v5432 = vadd.f32 %v5430, %v5431
        %v5433 = vrot.slane %v5432, 2
        %v5434 = vadd.f32 %v5432, %v5433
        %v5435 = vrot.slane %v5434, 1
        %v5436 = vadd.f32 %v5434, %v5435
        %v5437 = vpack.c.bf16 %v5236, %v5235
        %v5438 = vpack.c.bf16 %v5238, %v5237
        %v5439 = vpack.c.bf16 %v5240, %v5239
        %v5440 = vpack.c.bf16 %v5242, %v5241
        %v5441 = vpack.c.bf16 %v5244, %v5243
        %v5442 = vpack.c.bf16 %v5246, %v5245
        %v5443 = vpack.c.bf16 %v5248, %v5247
        %v5444 = vpack.c.bf16 %v5250, %v5249
        %v5445 = vpack.c.bf16 %v5252, %v5251
        %v5446 = vpack.c.bf16 %v5254, %v5253
        %v5447 = vpack.c.bf16 %v5256, %v5255
        %v5448 = vpack.c.bf16 %v5258, %v5257
        %v5449 = vpack.c.bf16 %v5260, %v5259
        %v5450 = vpack.c.bf16 %v5262, %v5261
        %v5451 = vpack.c.bf16 %v5264, %v5263
        %v5452 = vpack.c.bf16 %v5266, %v5265
        %v5469 = vunpack.c.l.b16 %v5437
        %v5470 = vunpack.c.h.b16 %v5437
        %v5471 = vunpack.c.l.b16 %v5438
        %v5472 = vunpack.c.h.b16 %v5438
        %v5473 = vunpack.c.l.b16 %v5439
        %v5474 = vunpack.c.h.b16 %v5439
        %v5475 = vunpack.c.l.b16 %v5440
        %v5476 = vunpack.c.h.b16 %v5440
        %v5477 = vunpack.c.l.b16 %v5441
        %v5478 = vunpack.c.h.b16 %v5441
        %v5479 = vunpack.c.l.b16 %v5442
        %v5480 = vunpack.c.h.b16 %v5442
        %v5481 = vunpack.c.l.b16 %v5443
        %v5482 = vunpack.c.h.b16 %v5443
        %v5483 = vunpack.c.l.b16 %v5444
        %v5484 = vunpack.c.h.b16 %v5444
        %v5485 = vunpack.c.l.b16 %v5445
        %v5486 = vunpack.c.h.b16 %v5445
        %v5487 = vunpack.c.l.b16 %v5446
        %v5488 = vunpack.c.h.b16 %v5446
        %v5489 = vunpack.c.l.b16 %v5447
        %v5490 = vunpack.c.h.b16 %v5447
        %v5491 = vunpack.c.l.b16 %v5448
        %v5492 = vunpack.c.h.b16 %v5448
        %v5493 = vunpack.c.l.b16 %v5449
        %v5494 = vunpack.c.h.b16 %v5449
        %v5495 = vunpack.c.l.b16 %v5450
        %v5496 = vunpack.c.h.b16 %v5450
        %v5497 = vunpack.c.l.b16 %v5451
        %v5498 = vunpack.c.h.b16 %v5451
        %v5499 = vunpack.c.l.b16 %v5452
        %v5500 = vunpack.c.h.b16 %v5452
        %v5501 = vpack.c.b16 %v5469, %v5469
        %v5502 = vpack.c.b16 %v5470, %v5470
        %v5503 = vpack.c.b16 %v5471, %v5471
        %v5504 = vpack.c.b16 %v5472, %v5472
        %v5505 = vpack.c.b16 %v5473, %v5473
        %v5506 = vpack.c.b16 %v5474, %v5474
        %v5507 = vpack.c.b16 %v5475, %v5475
        %v5508 = vpack.c.b16 %v5476, %v5476
        %v5509 = vpack.c.b16 %v5477, %v5477
        %v5510 = vpack.c.b16 %v5478, %v5478
        %v5511 = vpack.c.b16 %v5479, %v5479
        %v5512 = vpack.c.b16 %v5480, %v5480
        %v5513 = vpack.c.b16 %v5481, %v5481
        %v5514 = vpack.c.b16 %v5482, %v5482
        %v5515 = vpack.c.b16 %v5483, %v5483
        %v5516 = vpack.c.b16 %v5484, %v5484
        %v5517 = vpack.c.b16 %v5485, %v5485
        %v5518 = vpack.c.b16 %v5486, %v5486
        %v5519 = vpack.c.b16 %v5487, %v5487
        %v5520 = vpack.c.b16 %v5488, %v5488
        %v5521 = vpack.c.b16 %v5489, %v5489
        %v5522 = vpack.c.b16 %v5490, %v5490
        %v5523 = vpack.c.b16 %v5491, %v5491
        %v5524 = vpack.c.b16 %v5492, %v5492
        %v5525 = vpack.c.b16 %v5493, %v5493
        %v5526 = vpack.c.b16 %v5494, %v5494
        %v5527 = vpack.c.b16 %v5495, %v5495
        %v5528 = vpack.c.b16 %v5496, %v5496
        %v5529 = vpack.c.b16 %v5497, %v5497
        %v5530 = vpack.c.b16 %v5498, %v5498
        %v5531 = vpack.c.b16 %v5499, %v5499
        %v5532 = vpack.c.b16 %v5500, %v5500
        %5533 = vrot.lane.b32.xlu0 %v5501, 24
        %v5534 = vpop.permute.xlu0 %5533
        %5535 = vrot.lane.b32.xlu0 %v5502, 24
        %v5536 = vpop.permute.xlu0 %5535
        %5537 = vrot.lane.b32.xlu0 %v5503, 24
        %v5538 = vpop.permute.xlu0 %5537
        %5539 = vrot.lane.b32.xlu0 %v5504, 24
        %v5540 = vpop.permute.xlu0 %5539
        %5541 = vrot.lane.b32.xlu0 %v5505, 24
        %v5542 = vpop.permute.xlu0 %5541
        %5543 = vrot.lane.b32.xlu0 %v5506, 24
        %v5544 = vpop.permute.xlu0 %5543
        %5545 = vrot.lane.b32.xlu0 %v5507, 24
        %v5546 = vpop.permute.xlu0 %5545
        %5547 = vrot.lane.b32.xlu0 %v5508, 24
        %v5548 = vpop.permute.xlu0 %5547
        %5549 = vrot.lane.b32.xlu0 %v5509, 24
        %v5550 = vpop.permute.xlu0 %5549
        %5551 = vrot.lane.b32.xlu0 %v5510, 24
        %v5552 = vpop.permute.xlu0 %5551
        %5553 = vrot.lane.b32.xlu0 %v5511, 24
        %v5554 = vpop.permute.xlu0 %5553
        %5555 = vrot.lane.b32.xlu0 %v5512, 24
        %v5556 = vpop.permute.xlu0 %5555
        %5557 = vrot.lane.b32.xlu0 %v5513, 24
        %v5558 = vpop.permute.xlu0 %5557
        %5559 = vrot.lane.b32.xlu0 %v5514, 24
        %v5560 = vpop.permute.xlu0 %5559
        %5561 = vrot.lane.b32.xlu0 %v5515, 24
        %v5562 = vpop.permute.xlu0 %5561
        %5563 = vrot.lane.b32.xlu0 %v5516, 24
        %v5564 = vpop.permute.xlu0 %5563
        %5565 = vrot.lane.b32.xlu0 %v5517, 24
        %v5566 = vpop.permute.xlu0 %5565
        %5567 = vrot.lane.b32.xlu0 %v5518, 24
        %v5568 = vpop.permute.xlu0 %5567
        %5569 = vrot.lane.b32.xlu0 %v5519, 24
        %v5570 = vpop.permute.xlu0 %5569
        %5571 = vrot.lane.b32.xlu0 %v5520, 24
        %v5572 = vpop.permute.xlu0 %5571
        %5573 = vrot.lane.b32.xlu0 %v5521, 24
        %v5574 = vpop.permute.xlu0 %5573
        %5575 = vrot.lane.b32.xlu0 %v5522, 24
        %v5576 = vpop.permute.xlu0 %5575
        %5577 = vrot.lane.b32.xlu0 %v5523, 24
        %v5578 = vpop.permute.xlu0 %5577
        %5579 = vrot.lane.b32.xlu0 %v5524, 24
        %v5580 = vpop.permute.xlu0 %5579
        %5581 = vrot.lane.b32.xlu0 %v5525, 24
        %v5582 = vpop.permute.xlu0 %5581
        %5583 = vrot.lane.b32.xlu0 %v5526, 24
        %v5584 = vpop.permute.xlu0 %5583
        %5585 = vrot.lane.b32.xlu0 %v5527, 24
        %v5586 = vpop.permute.xlu0 %5585
        %5587 = vrot.lane.b32.xlu0 %v5528, 24
        %v5588 = vpop.permute.xlu0 %5587
        %5589 = vrot.lane.b32.xlu0 %v5529, 24
        %v5590 = vpop.permute.xlu0 %5589
        %5591 = vrot.lane.b32.xlu0 %v5530, 24
        %v5592 = vpop.permute.xlu0 %5591
        %5593 = vrot.lane.b32.xlu0 %v5531, 24
        %v5594 = vpop.permute.xlu0 %5593
        %5595 = vrot.lane.b32.xlu0 %v5532, 24
        %v5596 = vpop.permute.xlu0 %5595
        %vm5629 = vcmask 257216
        %5630 = vst.msk [vmem:[%s223] sm:$0xf] %vm5629, %v5534
        %5631 = vst.msk [vmem:[%s223 + $0x4] sm:$0xf] %vm5629, %v5536
        %5632 = vst.msk [vmem:[%s223 + $0x8] sm:$0xf] %vm5629, %v5538
        %5633 = vst.msk [vmem:[%s223 + $0xc] sm:$0xf] %vm5629, %v5540
        %5634 = vst.msk [vmem:[%s223 + $0x10] sm:$0xf] %vm5629, %v5542
        %5635 = vst.msk [vmem:[%s223 + $0x14] sm:$0xf] %vm5629, %v5544
        %5636 = vst.msk [vmem:[%s223 + $0x18] sm:$0xf] %vm5629, %v5546
        %5637 = vst.msk [vmem:[%s223 + $0x1c] sm:$0xf] %vm5629, %v5548
        %5638 = vst.msk [vmem:[%s223 + $0x20] sm:$0xf] %vm5629, %v5550
        %5639 = vst.msk [vmem:[%s223 + $0x24] sm:$0xf] %vm5629, %v5552
        %5640 = vst.msk [vmem:[%s223 + $0x28] sm:$0xf] %vm5629, %v5554
        %5641 = vst.msk [vmem:[%s223 + $0x2c] sm:$0xf] %vm5629, %v5556
        %5642 = vst.msk [vmem:[%s223 + $0x30] sm:$0xf] %vm5629, %v5558
        %5643 = vst.msk [vmem:[%s223 + $0x34] sm:$0xf] %vm5629, %v5560
        %5644 = vst.msk [vmem:[%s223 + $0x38] sm:$0xf] %vm5629, %v5562
        %5645 = vst.msk [vmem:[%s223 + $0x3c] sm:$0xf] %vm5629, %v5564
        %5646 = vst.msk [vmem:[%s223 + $0x40] sm:$0xf] %vm5629, %v5566
        %5647 = vst.msk [vmem:[%s223 + $0x44] sm:$0xf] %vm5629, %v5568
        %5648 = vst.msk [vmem:[%s223 + $0x48] sm:$0xf] %vm5629, %v5570
        %5649 = vst.msk [vmem:[%s223 + $0x4c] sm:$0xf] %vm5629, %v5572
        %5650 = vst.msk [vmem:[%s223 + $0x50] sm:$0xf] %vm5629, %v5574
        %5651 = vst.msk [vmem:[%s223 + $0x54] sm:$0xf] %vm5629, %v5576
        %5652 = vst.msk [vmem:[%s223 + $0x58] sm:$0xf] %vm5629, %v5578
        %5653 = vst.msk [vmem:[%s223 + $0x5c] sm:$0xf] %vm5629, %v5580
        %5654 = vst.msk [vmem:[%s223 + $0x60] sm:$0xf] %vm5629, %v5582
        %5655 = vst.msk [vmem:[%s223 + $0x64] sm:$0xf] %vm5629, %v5584
        %5656 = vst.msk [vmem:[%s223 + $0x68] sm:$0xf] %vm5629, %v5586
        %5657 = vst.msk [vmem:[%s223 + $0x6c] sm:$0xf] %vm5629, %v5588
        %5658 = vst.msk [vmem:[%s223 + $0x70] sm:$0xf] %vm5629, %v5590
        %5659 = vst.msk [vmem:[%s223 + $0x74] sm:$0xf] %vm5629, %v5592
        %5660 = vst.msk [vmem:[%s223 + $0x78] sm:$0xf] %vm5629, %v5594
        %5661 = vst.msk [vmem:[%s223 + $0x7c] sm:$0xf] %vm5629, %v5596
        %5663 = vrot.lane.b32.xlu0 %v3071, 8
        %v5664 = vpop.permute.xlu0 %5663
        %5667 = vrot.lane.b32.xlu0 %v4206, 16
        %v5668 = vpop.permute.xlu0 %5667
        %5671 = vrot.lane.b32.xlu0 %v5335, 24
        %v5672 = vpop.permute.xlu0 %5671
        %v5674 = vsel %vm960, %v1910, %v5664
        %vm5675 = vcmask 130048
        %v5676 = vsel %vm5675, %v5674, %v5668
        %vm5677 = vcmask 195584
        %v5678 = vsel %vm5677, %v5676, %v5672
        %5680 = vrot.lane.b32.xlu0 %v3172, 8
        %v5681 = vpop.permute.xlu0 %5680
        %5684 = vrot.lane.b32.xlu0 %v4307, 16
        %v5685 = vpop.permute.xlu0 %5684
        %5688 = vrot.lane.b32.xlu0 %v5436, 24
        %v5689 = vpop.permute.xlu0 %5688
        %v5691 = vsel %vm960, %v2011, %v5681
        %v5692 = vsel %vm5675, %v5691, %v5685
        %v5693 = vsel %vm5677, %v5692, %v5689
        %v5695 = vrot.slane %v5693, 7
        %vm5697 = vcmask 1040384
        %v5698 = vsel %vm5697, %v5678, %v5695
        %vm5699 = vcmask 254976
        %5700 = vst.msk [vmem:[%s230] sm:$0x3] %vm5699, %v5698
        %s5701 = sand.u32 %s94, 1
        %s5702 = scalar_lea.sflag [#allocation4], %s5701
        %s5703 = sand.u32 %s94, 1
        %s5704 = smul.addr %s5703, 128
        %s5705 = scalar_lea.vmem [#allocation7], %s5704
        %s5706 = sand.u32 %s122, 1
        %s5707 = scalar_lea.sflag [#allocation9], %s5706
        %s5708 = sand.u32 %s122, 1
        %s5709 = smul.addr %s5708, 2
        %s5710 = scalar_lea.vmem [#allocation8], %s5709
        // Predicated region
        $region37: #{deconv4x4_forward.1} parent=27 // pred_check
          %p5711 = pneg %p104
        $region38: #{deconv4x4_forward.1} parent=27 // pred_check_branch
          %5713 = sbr.rel (%p5711) target = $region40
        $region39: #{deconv4x4_forward.1} parent=27 // pred_region
          %s5714 = smul.u32 16, %s30
          %s5716 = ssub.s32 2048, 2048
          %5717 = vsyncadd %s5702, %s5716
          %s5718 = smul.addr %s5714, 2
          %s5719 = smul.addr %s29, 32
          %s5720 = sadd.s32 %s5718, %s5719
          %s5721 = smul.addr %s5720, 64
          %s5722 = scalar_lea.hbm %s2, %s5721
          %s5723 = sshll.u32 %s5705, 4
          %s5724 = int_to_ptr.vmem [resolvable:$true] %s5723
          %5729 = dma.vmem_to_hbm [thread:$0]  %s5724, 2048, %s5722, %s5702, 64, 64, 4
        $region40: #{deconv4x4_forward.1} parent=27 // pred_fallthru
          _
        // Predicated region
        $region41: #{deconv4x4_forward.1} parent=27 // pred_check
          %p5730 = pneg %p132
        $region42: #{deconv4x4_forward.1} parent=27 // pred_check_branch
          %5732 = sbr.rel (%p5730) target = $region44
        $region43: #{deconv4x4_forward.1} parent=27 // pred_region
          %s5734 = ssub.s32 32, 32
          %5735 = vsyncadd %s5707, %s5734
          %s5736 = sadd.s32 %s30, %s29
          %s5737 = smul.addr %s5736, 32
          %s5738 = scalar_lea.hbm %s3, %s5737
          %s5740 = sshll.u32 %s5710, 4
          %s5741 = int_to_ptr.vmem [resolvable:$true] %s5740
          %5743 = dma.vmem_to_hbm [thread:$0]  %s5741, 32, %s5738, %s5707
        $region44: #{deconv4x4_forward.1} parent=27 // pred_fallthru
          _
      $region28: #{deconv4x4_forward.1} parent=5 // pred_fallthru
        _
      %p5744 = scmp.le.s32.totalorder 2, %s20
      // Predicated region
      $region45: #{deconv4x4_forward.1} parent=5 // pred_check
        %p5745 = pneg %p5744
      $region46: #{deconv4x4_forward.1} parent=5 // pred_check_branch
        %5747 = sbr.rel (%p5745) target = $region48
      $region47: #{deconv4x4_forward.1} parent=5 // pred_region
        %s5748 = ssub.s32 %s20, 2
        // Predicated region
        $region49: #{deconv4x4_forward.1} parent=47 // pred_check
          %p5749 = pneg %p110
        $region50: #{deconv4x4_forward.1} parent=47 // pred_check_branch
          %5751 = sbr.rel (%p5749) target = $region52
        $region51: #{deconv4x4_forward.1} parent=47 // pred_region
          %s5752 = sand.u32 %s95, 1
          %s5753 = scalar_lea.sflag [#allocation4], %s5752
          %s5754 = sand.u32 %s95, 1
          %s5755 = smul.addr %s5754, 128
          %s5756 = scalar_lea.vmem [#allocation7], %s5755
          %5757 = dma.done %s5753, 2048
        $region52: #{deconv4x4_forward.1} parent=47 // pred_fallthru
          _
        // Predicated region
        $region53: #{deconv4x4_forward.1} parent=47 // pred_check
          %p5758 = pneg %p138
        $region54: #{deconv4x4_forward.1} parent=47 // pred_check_branch
          %5760 = sbr.rel (%p5758) target = $region56
        $region55: #{deconv4x4_forward.1} parent=47 // pred_region
          %s5761 = sand.u32 %s123, 1
          %s5762 = scalar_lea.sflag [#allocation9], %s5761
          %s5763 = sand.u32 %s123, 1
          %s5764 = smul.addr %s5763, 2
          %s5765 = scalar_lea.vmem [#allocation8], %s5764
          %5766 = dma.done %s5762, 32
        $region56: #{deconv4x4_forward.1} parent=47 // pred_fallthru
          _
      $region48: #{deconv4x4_forward.1} parent=5 // pred_fallthru
        _
    $region6: #{deconv4x4_forward.1} parent=1 // loop_footer
      %s24 = sadd.s32 1, %s20
    $region7: #{deconv4x4_forward.1} parent=1 // loop_footer_branch
      %19 = sbr.rel target = $region3
    $region8: #{deconv4x4_forward.1} parent=1 // loop_exit
      _
    %5767 = vsyncpa [#allocation3], 1
    %s5768 = scalar_lea.sflag [#allocation3], 1
    %5769 = vsyncpa %s5768, 1
    %5770 = vsyncpa [#allocation6], 1
    %5771 = vsyncpa [#allocation4], 1
    %s5772 = scalar_lea.sflag [#allocation4], 1
    %5773 = vsyncpa %s5772, 1
    %5774 = vsyncpa [#allocation9], 1
    %s5775 = scalar_lea.sflag [#allocation9], 1
    %5776 = vsyncpa %s5775, 1

</llo_original>
